<compile_context>
chip_gen: v7x
topology: tpu7x:2x2x1
jax: 0.10.0
libtpu: 0.0.40
codegen_flags: <defaults>
</compile_context>

<pallas_src>
import math

import jax
import jax.numpy as jnp
from jax import lax
from jax.experimental import pallas as pl
from jax.experimental.pallas import tpu as pltpu


# ---------------------------------------------------------------------------
# Fused MHA kernel: one (batch, query-tile) per grid step
# ---------------------------------------------------------------------------
def _make_mha_kernel(n_heads, k_channels, compute_dtype):
    del k_channels  # shape information comes from the refs

    def kernel(x_ref, c_ref,
               wq_ref, bq_ref, wk_ref, bk_ref, wv_ref, bv_ref,
               wo_ref, bo_ref,
               o_ref,
               k_scr, v_scr):
        # x_ref:  (1, tq, C)           query source tile            (compute dtype)
        # c_ref:  (1, Ts, C)           key/value source (full)      (compute dtype)
        # wq/wk/wv_ref: (H, C, kc)     per-head projection weights  (compute dtype)
        # bq/bk/bv_ref: (H, 1, kc)     per-head biases (f32; bq pre-scaled)
        # wo_ref: (H, kc, Cout)        per-head output projection   (compute dtype)
        # bo_ref: (1, Cout)            output bias (f32)
        # o_ref:  (1, tq, Cout)
        # k_scr/v_scr: (H, Ts, kc)     per-batch K/V projections (compute dtype)

        # ---- K/V projection: once per batch, reused by all query tiles.
        @pl.when(pl.program_id(1) == 0)
        def _():
            c_in = c_ref[0]                                        # (Ts, C)
            for h in range(n_heads):
                kh = jnp.dot(c_in, wk_ref[h],
                             preferred_element_type=jnp.float32)   # (Ts, kc) f32
                vh = jnp.dot(c_in, wv_ref[h],
                             preferred_element_type=jnp.float32)
                k_scr[h] = (kh + bk_ref[h]).astype(k_scr.dtype)
                v_scr[h] = (vh + bv_ref[h]).astype(v_scr.dtype)

        x = x_ref[0]                                               # (tq, C)

        # ---- per-head attention, head merge fused into the output projection.
        # TODO(synk): for very long Ts, stream K/V in tk-sized blocks with an
        # online (flash-style) softmax instead of holding (Ts, kc) per head and
        # materializing (tq, Ts) scores.
        y = None
        for h in range(n_heads):
            # 1/sqrt(kc) already folded into wq_ref / bq_ref in the wrapper.
            qh = jnp.dot(x, wq_ref[h],
                         preferred_element_type=jnp.float32) + bq_ref[h]
            qh = qh.astype(compute_dtype)                          # (tq, kc)
            kh = k_scr[h]                                          # (Ts, kc)
            vh = v_scr[h]                                          # (Ts, kc)

            # scores = qh @ kh^T without materializing a transpose of kh.
            scores = lax.dot_general(
                qh, kh, (((1,), (1,)), ((), ())),
                preferred_element_type=jnp.float32)                # (tq, Ts) f32

            # softmax statistics stay in f32.
            m = jnp.max(scores, axis=-1, keepdims=True)
            e = jnp.exp(scores - m)
            s = jnp.sum(e, axis=-1, keepdims=True)
            oh = jnp.dot(e.astype(compute_dtype), vh,
                         preferred_element_type=jnp.float32)       # (tq, kc) f32
            # normalize on the small per-head output; approx -> EUP vrcp slot
            oh = oh * pl.reciprocal(s, approx=True)

            # head merge + output projection in one go (rows of wo_h[h] are
            # sublane-aligned; no lane-offset slices, no concat).
            yh = jnp.dot(oh.astype(compute_dtype), wo_ref[h],
                         preferred_element_type=jnp.float32)       # (tq, Cout)
            y = yh if y is None else y + yh

        o_ref[0] = (y + bo_ref[...]).astype(o_ref.dtype)

    return kernel


# ---------------------------------------------------------------------------
# Module wrapper
# ---------------------------------------------------------------------------
def _pick_tq(Tt, max_tq=256):
    """Largest query-tile that divides Tt, is <= max_tq and sublane-aligned."""
    if Tt <= max_tq:
        return Tt
    for d in range(max_tq, 0, -1):
        if Tt % d == 0 and d % 8 == 0:
            return d
    # TODO(synk): pad Tt and mask the tail tile instead of one full-Tt tile.
    return Tt


def multi_head_attention_forward(x, c, params, n_heads, *, tq=None,
                                 compute_dtype=jnp.bfloat16,
                                 attn_mask=None, window_size=None,
                                 proximal_bias=False, block_length=None,
                                 p_dropout=0.0):
    """x: (B, channels, Tt), c: (B, channels, Ts)  ->  (B, out_channels, Tt)

    Matches MultiHeadAttention.forward with the default constructor arguments.
    Non-default configurations are rejected explicitly rather than silently
    ignored.
    """
    if (attn_mask is not None or window_size is not None or proximal_bias
            or block_length is not None or p_dropout != 0.0):
        # TODO(synk): relative-position (window_size), proximal_bias,
        # block_length masking, attn_mask and dropout are not implemented.
        raise NotImplementedError(
            "Only the default MultiHeadAttention config is supported.")

    B, C, Tt = x.shape
    Ts = c.shape[2]
    assert C % n_heads == 0
    kc = C // n_heads
    Cout = params["wo"].shape[0]
    out_dtype = x.dtype
    scale = 1.0 / math.sqrt(kc)

    # (B, C, T) -> (B, T, C): channels on lanes inside the kernel.
    # TODO(synk): adopt T-major activations in the surrounding graph (or emit a
    # (Cout, tq)-oriented output block) to drop these HBM-level copies.
    x_btc = jnp.transpose(x, (0, 2, 1)).astype(compute_dtype)
    c_btc = jnp.transpose(c, (0, 2, 1)).astype(compute_dtype)

    # Per-head weight split so every head's projection lands at lane 0.
    # PyTorch Conv1d weight is (Cout, Cin); head h owns output rows
    # [h*kc, (h+1)*kc).  Result layout: (H, Cin, kc) -> x(tq,C) @ w -> (tq,kc).
    def head_major(w):
        return jnp.transpose(w.reshape(n_heads, kc, C), (0, 2, 1)).astype(
            compute_dtype)

    wq_h = head_major(params["wq"] * scale)          # scale folded into weights
    wk_h = head_major(params["wk"])
    wv_h = head_major(params["wv"])
    bq_h = (params["bq"] * scale).reshape(n_heads, 1, kc).astype(jnp.float32)
    bk_h = params["bk"].reshape(n_heads, 1, kc).astype(jnp.float32)
    bv_h = params["bv"].reshape(n_heads, 1, kc).astype(jnp.float32)
    # conv_o consumes the merged heads: split its *input* channels per head.
    wo_h = jnp.transpose(params["wo"]).reshape(n_heads, kc, Cout).astype(
        compute_dtype)
    bo = params["bo"].reshape(1, Cout).astype(jnp.float32)

    if tq is None:
        tq = _pick_tq(Tt)
    assert Tt % tq == 0
    num_tq = Tt // tq

    kernel = _make_mha_kernel(n_heads, kc, compute_dtype)

    wspec3 = lambda shape: pl.BlockSpec(shape, lambda b, t: (0, 0, 0))

    y_btc = pl.pallas_call(
        kernel,
        out_shape=jax.ShapeDtypeStruct((B, Tt, Cout), out_dtype),
        grid=(B, num_tq),
        in_specs=[
            pl.BlockSpec((1, tq, C), lambda b, t: (b, t, 0)),    # x tile
            pl.BlockSpec((1, Ts, C), lambda b, t: (b, 0, 0)),    # c (per batch)
            wspec3((n_heads, C, kc)),                            # wq
            wspec3((n_heads, 1, kc)),                            # bq
            wspec3((n_heads, C, kc)),                            # wk
            wspec3((n_heads, 1, kc)),                            # bk
            wspec3((n_heads, C, kc)),                            # wv
            wspec3((n_heads, 1, kc)),                            # bv
            wspec3((n_heads, kc, Cout)),                         # wo
            pl.BlockSpec((1, Cout), lambda b, t: (0, 0)),        # bo
        ],
        out_specs=pl.BlockSpec((1, tq, Cout), lambda b, t: (b, t, 0)),
        scratch_shapes=[
            pltpu.VMEM((n_heads, Ts, kc), compute_dtype),        # K scratch
            pltpu.VMEM((n_heads, Ts, kc), compute_dtype),        # V scratch
        ],
        compiler_params=pltpu.CompilerParams(
            # K/V scratch carries across the query-tile axis -> "arbitrary";
            # batch axis can shard freely across TensorCores.
            dimension_semantics=("parallel", "arbitrary"),
            # Above the 16/32 MiB scoped defaults, below v7x's 64 MiB physical.
            vmem_limit_bytes=48 * 1024 * 1024,
        ),
    )(x_btc, c_btc, wq_h, bq_h, wk_h, bk_h, wv_h, bv_h, wo_h, bo)

    return jnp.transpose(y_btc, (0, 2, 1))                       # (B, Cout, Tt)


# ---------------------------------------------------------------------------
# Deterministic parameter init (mirrors shapes in __init__)
# ---------------------------------------------------------------------------
def init_params(key, channels, out_channels):
    def xavier(key, cout, cin):
        bound = math.sqrt(6.0 / (cin + cout))
        return jax.random.uniform(key, (cout, cin), jnp.float32, -bound, bound)

    def bias(key, cout, cin):
        bound = 1.0 / math.sqrt(cin)
        return jax.random.uniform(key, (cout,), jnp.float32, -bound, bound)

    ks = jax.random.split(key, 8)
    return {
        "wq": xavier(ks[0], channels, channels),
        "bq": bias(ks[1], channels, channels),
        "wk": xavier(ks[2], channels, channels),
        "bk": bias(ks[3], channels, channels),
        "wv": xavier(ks[4], channels, channels),
        "bv": bias(ks[5], channels, channels),
        "wo": xavier(ks[6], out_channels, channels),
        "bo": bias(ks[7], out_channels, channels),
    }


# ---------------------------------------------------------------------------
# Pure-JAX reference for correctness check
# ---------------------------------------------------------------------------
def reference_forward(x, c, params, n_heads):
    B, C, Tt = x.shape
    Ts = c.shape[2]
    kc = C // n_heads

    def conv1x1(inp, w, b):  # inp (B, C, T)
        return jnp.einsum("oc,bct->bot", w, inp) + b[None, :, None]

    q = conv1x1(x, params["wq"], params["bq"])
    k = conv1x1(c, params["wk"], params["bk"])
    v = conv1x1(c, params["wv"], params["bv"])

    qh = jnp.transpose(q.reshape(B, n_heads, kc, Tt), (0, 1, 3, 2))
    kh = jnp.transpose(k.reshape(B, n_heads, kc, Ts), (0, 1, 3, 2))
    vh = jnp.transpose(v.reshape(B, n_heads, kc, Ts), (0, 1, 3, 2))

    scores = jnp.einsum("bhtd,bhsd->bhts", qh / math.sqrt(kc), kh)
    p = jax.nn.softmax(scores, axis=-1)
    out = jnp.einsum("bhts,bhsd->bhtd", p, vh)
    out = jnp.transpose(out, (0, 1, 3, 2)).reshape(B, C, Tt)
    return conv1x1(out, params["wo"], params["bo"])


if __name__ == "__main__":
    B, channels, out_channels, n_heads = 2, 32, 32, 4
    Tt, Ts = 16, 12

    key = jax.random.PRNGKey(0)
    kx, kc_, kp = jax.random.split(key, 3)
    x = jax.random.normal(kx, (B, channels, Tt), jnp.float32)   # query source
    c = jax.random.normal(kc_, (B, channels, Ts), jnp.float32)  # key/value source
    params = init_params(kp, channels, out_channels)

    y_ref = reference_forward(x, c, params, n_heads)

    # f32 compute path: only the approximate EUP reciprocal differs from the
    # reference -> tight tolerance validates the kernel math.
    y32 = multi_head_attention_forward(x, c, params, n_heads,
                                       compute_dtype=jnp.float32)
    y32 = jax.block_until_ready(y32)
    assert y32.shape == (B, out_channels, Tt)
    assert jnp.allclose(y32, y_ref, atol=5e-3, rtol=5e-3), "f32 mismatch vs ref"

    # Default bf16 compute path (MXU-native on v5e/v6e/v7x).  Tolerance is
    # deliberately widened to absorb bf16 operand rounding (f32 accumulation,
    # f32 softmax statistics).
    y = multi_head_attention_forward(x, c, params, n_heads)
    y = jax.block_until_ready(y)
    assert y.shape == (B, out_channels, Tt)
    assert jnp.allclose(y, y_ref, atol=5e-2, rtol=5e-2), "bf16 mismatch vs ref"

    print("KERNEL_OK")
</pallas_src>

<mosaic_0001>
module attributes {stable_mosaic.version = 11 : i64} {
  func.func @kernel(%arg0: i32, %arg1: i32, %arg2: memref<1x16x32xf32, #tpu.memory_space<vmem>>, %arg3: memref<1x12x32xf32, #tpu.memory_space<vmem>>, %arg4: memref<4x32x8xf32, #tpu.memory_space<vmem>>, %arg5: memref<4x1x8xf32, #tpu.memory_space<vmem>>, %arg6: memref<4x32x8xf32, #tpu.memory_space<vmem>>, %arg7: memref<4x1x8xf32, #tpu.memory_space<vmem>>, %arg8: memref<4x32x8xf32, #tpu.memory_space<vmem>>, %arg9: memref<4x1x8xf32, #tpu.memory_space<vmem>>, %arg10: memref<4x8x32xf32, #tpu.memory_space<vmem>>, %arg11: memref<1x32xf32, #tpu.memory_space<vmem>>, %arg12: memref<1x16x32xf32, #tpu.memory_space<vmem>>, %arg13: memref<4x12x8xf32, #tpu.memory_space<vmem>>, %arg14: memref<4x12x8xf32, #tpu.memory_space<vmem>>) attributes {dimension_semantics = [#tpu.dimension_semantics<parallel>, #tpu.dimension_semantics<arbitrary>], iteration_bounds = array<i64: 2, 1>, scalar_prefetch = 0 : i64, scratch_operands = 2 : i64, tpu.core_type = #tpu.core_type<tc>, window_params = [{transform_indices = @transform_0, window_bounds = array<i64: 1, 16, 32>}, {transform_indices = @transform_1, window_bounds = array<i64: 1, 12, 32>}, {pipeline_mode = #tpu.pipeline_mode<synchronous>, transform_indices = @transform_2, window_bounds = array<i64: 4, 32, 8>}, {pipeline_mode = #tpu.pipeline_mode<synchronous>, transform_indices = @transform_3, window_bounds = array<i64: 4, 1, 8>}, {pipeline_mode = #tpu.pipeline_mode<synchronous>, transform_indices = @transform_4, window_bounds = array<i64: 4, 32, 8>}, {pipeline_mode = #tpu.pipeline_mode<synchronous>, transform_indices = @transform_5, window_bounds = array<i64: 4, 1, 8>}, {pipeline_mode = #tpu.pipeline_mode<synchronous>, transform_indices = @transform_6, window_bounds = array<i64: 4, 32, 8>}, {pipeline_mode = #tpu.pipeline_mode<synchronous>, transform_indices = @transform_7, window_bounds = array<i64: 4, 1, 8>}, {pipeline_mode = #tpu.pipeline_mode<synchronous>, transform_indices = @transform_8, window_bounds = array<i64: 4, 8, 32>}, {pipeline_mode = #tpu.pipeline_mode<synchronous>, transform_indices = @transform_9, window_bounds = array<i64: 1, 32>}, {transform_indices = @transform_10, window_bounds = array<i64: 1, 16, 32>}]} {
    %c0_i32 = arith.constant 0 : i32
    %0 = arith.cmpi eq, %arg1, %c0_i32 : i32
    %1 = arith.extui %0 : i1 to i32
    %c0_i32_0 = arith.constant 0 : i32
    %2 = arith.cmpi ne, %1, %c0_i32_0 : i32
    scf.if %2 {
      %c0_88 = arith.constant 0 : index
      %c0_89 = arith.constant 0 : index
      %c0_90 = arith.constant 0 : index
      %118 = vector.load %arg3[%c0_88, %c0_89, %c0_90] : memref<1x12x32xf32, #tpu.memory_space<vmem>>, vector<1x12x32xf32>
      %119 = vector.shape_cast %118 : vector<1x12x32xf32> to vector<12x32xf32>
      %c0_91 = arith.constant 0 : index
      %c0_92 = arith.constant 0 : index
      %c0_93 = arith.constant 0 : index
      %120 = vector.load %arg6[%c0_91, %c0_92, %c0_93] : memref<4x32x8xf32, #tpu.memory_space<vmem>>, vector<1x32x8xf32>
      %121 = vector.shape_cast %120 : vector<1x32x8xf32> to vector<32x8xf32>
      %cst_94 = arith.constant dense<0.000000e+00> : vector<12x8xf32>
      %122 = tpu.matmul %119, %121, %cst_94 {dimension_numbers = #tpu.dot_dimension_numbers<[1], [0], [0], [1], [0, 0, 1, 1], [], []>} : vector<12x32xf32>, vector<32x8xf32>, vector<12x8xf32> -> vector<12x8xf32>
      %c0_95 = arith.constant 0 : index
      %c0_96 = arith.constant 0 : index
      %c0_97 = arith.constant 0 : index
      %123 = vector.load %arg8[%c0_95, %c0_96, %c0_97] : memref<4x32x8xf32, #tpu.memory_space<vmem>>, vector<1x32x8xf32>
      %124 = vector.shape_cast %123 : vector<1x32x8xf32> to vector<32x8xf32>
      %cst_98 = arith.constant dense<0.000000e+00> : vector<12x8xf32>
      %125 = tpu.matmul %119, %124, %cst_98 {dimension_numbers = #tpu.dot_dimension_numbers<[1], [0], [0], [1], [0, 0, 1, 1], [], []>} : vector<12x32xf32>, vector<32x8xf32>, vector<12x8xf32> -> vector<12x8xf32>
      %c0_99 = arith.constant 0 : index
      %c0_100 = arith.constant 0 : index
      %c0_101 = arith.constant 0 : index
      %126 = vector.load %arg7[%c0_99, %c0_100, %c0_101] : memref<4x1x8xf32, #tpu.memory_space<vmem>>, vector<1x1x8xf32>
      %127 = vector.shape_cast %126 : vector<1x1x8xf32> to vector<1x8xf32>
      %128 = vector.broadcast %127 : vector<1x8xf32> to vector<12x8xf32>
      %129 = arith.addf %122, %128 : vector<12x8xf32>
      %c0_102 = arith.constant 0 : index
      %c0_103 = arith.constant 0 : index
      %c0_104 = arith.constant 0 : index
      %130 = vector.load %arg13[%c0_102, %c0_103, %c0_104] : memref<4x12x8xf32, #tpu.memory_space<vmem>>, vector<1x12x8xf32>
      %131 = vector.shape_cast %130 : vector<1x12x8xf32> to vector<12x8xf32>
      %132 = vector.shape_cast %129 : vector<12x8xf32> to vector<1x12x8xf32>
      tpu.vector_store %arg13[%c0_102, %c0_103, %c0_104], %132 {strides = array<i32>} : memref<4x12x8xf32, #tpu.memory_space<vmem>>, vector<1x12x8xf32>,
      %c0_105 = arith.constant 0 : index
      %c0_106 = arith.constant 0 : index
      %c0_107 = arith.constant 0 : index
      %133 = vector.load %arg9[%c0_105, %c0_106, %c0_107] : memref<4x1x8xf32, #tpu.memory_space<vmem>>, vector<1x1x8xf32>
      %134 = vector.shape_cast %133 : vector<1x1x8xf32> to vector<1x8xf32>
      %135 = vector.broadcast %134 : vector<1x8xf32> to vector<12x8xf32>
      %136 = arith.addf %125, %135 : vector<12x8xf32>
      %c0_108 = arith.constant 0 : index
      %c0_109 = arith.constant 0 : index
      %c0_110 = arith.constant 0 : index
      %137 = vector.load %arg14[%c0_108, %c0_109, %c0_110] : memref<4x12x8xf32, #tpu.memory_space<vmem>>, vector<1x12x8xf32>
      %138 = vector.shape_cast %137 : vector<1x12x8xf32> to vector<12x8xf32>
      %139 = vector.shape_cast %136 : vector<12x8xf32> to vector<1x12x8xf32>
      tpu.vector_store %arg14[%c0_108, %c0_109, %c0_110], %139 {strides = array<i32>} : memref<4x12x8xf32, #tpu.memory_space<vmem>>, vector<1x12x8xf32>,
      %c1_111 = arith.constant 1 : index
      %c0_112 = arith.constant 0 : index
      %c0_113 = arith.constant 0 : index
      %140 = vector.load %arg6[%c1_111, %c0_112, %c0_113] : memref<4x32x8xf32, #tpu.memory_space<vmem>>, vector<1x32x8xf32>
      %141 = vector.shape_cast %140 : vector<1x32x8xf32> to vector<32x8xf32>
      %cst_114 = arith.constant dense<0.000000e+00> : vector<12x8xf32>
      %142 = tpu.matmul %119, %141, %cst_114 {dimension_numbers = #tpu.dot_dimension_numbers<[1], [0], [0], [1], [0, 0, 1, 1], [], []>} : vector<12x32xf32>, vector<32x8xf32>, vector<12x8xf32> -> vector<12x8xf32>
      %c1_115 = arith.constant 1 : index
      %c0_116 = arith.constant 0 : index
      %c0_117 = arith.constant 0 : index
      %143 = vector.load %arg8[%c1_115, %c0_116, %c0_117] : memref<4x32x8xf32, #tpu.memory_space<vmem>>, vector<1x32x8xf32>
      %144 = vector.shape_cast %143 : vector<1x32x8xf32> to vector<32x8xf32>
      %cst_118 = arith.constant dense<0.000000e+00> : vector<12x8xf32>
      %145 = tpu.matmul %119, %144, %cst_118 {dimension_numbers = #tpu.dot_dimension_numbers<[1], [0], [0], [1], [0, 0, 1, 1], [], []>} : vector<12x32xf32>, vector<32x8xf32>, vector<12x8xf32> -> vector<12x8xf32>
      %c1_119 = arith.constant 1 : index
      %c0_120 = arith.constant 0 : index
      %c0_121 = arith.constant 0 : index
      %146 = vector.load %arg7[%c1_119, %c0_120, %c0_121] : memref<4x1x8xf32, #tpu.memory_space<vmem>>, vector<1x1x8xf32>
      %147 = vector.shape_cast %146 : vector<1x1x8xf32> to vector<1x8xf32>
      %148 = vector.broadcast %147 : vector<1x8xf32> to vector<12x8xf32>
      %149 = arith.addf %142, %148 : vector<12x8xf32>
      %c1_122 = arith.constant 1 : index
      %c0_123 = arith.constant 0 : index
      %c0_124 = arith.constant 0 : index
      %150 = vector.load %arg13[%c1_122, %c0_123, %c0_124] : memref<4x12x8xf32, #tpu.memory_space<vmem>>, vector<1x12x8xf32>
      %151 = vector.shape_cast %150 : vector<1x12x8xf32> to vector<12x8xf32>
      %152 = vector.shape_cast %149 : vector<12x8xf32> to vector<1x12x8xf32>
      tpu.vector_store %arg13[%c1_122, %c0_123, %c0_124], %152 {strides = array<i32>} : memref<4x12x8xf32, #tpu.memory_space<vmem>>, vector<1x12x8xf32>,
      %c1_125 = arith.constant 1 : index
      %c0_126 = arith.constant 0 : index
      %c0_127 = arith.constant 0 : index
      %153 = vector.load %arg9[%c1_125, %c0_126, %c0_127] : memref<4x1x8xf32, #tpu.memory_space<vmem>>, vector<1x1x8xf32>
      %154 = vector.shape_cast %153 : vector<1x1x8xf32> to vector<1x8xf32>
      %155 = vector.broadcast %154 : vector<1x8xf32> to vector<12x8xf32>
      %156 = arith.addf %145, %155 : vector<12x8xf32>
      %c1_128 = arith.constant 1 : index
      %c0_129 = arith.constant 0 : index
      %c0_130 = arith.constant 0 : index
      %157 = vector.load %arg14[%c1_128, %c0_129, %c0_130] : memref<4x12x8xf32, #tpu.memory_space<vmem>>, vector<1x12x8xf32>
      %158 = vector.shape_cast %157 : vector<1x12x8xf32> to vector<12x8xf32>
      %159 = vector.shape_cast %156 : vector<12x8xf32> to vector<1x12x8xf32>
      tpu.vector_store %arg14[%c1_128, %c0_129, %c0_130], %159 {strides = array<i32>} : memref<4x12x8xf32, #tpu.memory_space<vmem>>, vector<1x12x8xf32>,
      %c2_131 = arith.constant 2 : index
      %c0_132 = arith.constant 0 : index
      %c0_133 = arith.constant 0 : index
      %160 = vector.load %arg6[%c2_131, %c0_132, %c0_133] : memref<4x32x8xf32, #tpu.memory_space<vmem>>, vector<1x32x8xf32>
      %161 = vector.shape_cast %160 : vector<1x32x8xf32> to vector<32x8xf32>
      %cst_134 = arith.constant dense<0.000000e+00> : vector<12x8xf32>
      %162 = tpu.matmul %119, %161, %cst_134 {dimension_numbers = #tpu.dot_dimension_numbers<[1], [0], [0], [1], [0, 0, 1, 1], [], []>} : vector<12x32xf32>, vector<32x8xf32>, vector<12x8xf32> -> vector<12x8xf32>
      %c2_135 = arith.constant 2 : index
      %c0_136 = arith.constant 0 : index
      %c0_137 = arith.constant 0 : index
      %163 = vector.load %arg8[%c2_135, %c0_136, %c0_137] : memref<4x32x8xf32, #tpu.memory_space<vmem>>, vector<1x32x8xf32>
      %164 = vector.shape_cast %163 : vector<1x32x8xf32> to vector<32x8xf32>
      %cst_138 = arith.constant dense<0.000000e+00> : vector<12x8xf32>
      %165 = tpu.matmul %119, %164, %cst_138 {dimension_numbers = #tpu.dot_dimension_numbers<[1], [0], [0], [1], [0, 0, 1, 1], [], []>} : vector<12x32xf32>, vector<32x8xf32>, vector<12x8xf32> -> vector<12x8xf32>
      %c2_139 = arith.constant 2 : index
      %c0_140 = arith.constant 0 : index
      %c0_141 = arith.constant 0 : index
      %166 = vector.load %arg7[%c2_139, %c0_140, %c0_141] : memref<4x1x8xf32, #tpu.memory_space<vmem>>, vector<1x1x8xf32>
      %167 = vector.shape_cast %166 : vector<1x1x8xf32> to vector<1x8xf32>
      %168 = vector.broadcast %167 : vector<1x8xf32> to vector<12x8xf32>
      %169 = arith.addf %162, %168 : vector<12x8xf32>
      %c2_142 = arith.constant 2 : index
      %c0_143 = arith.constant 0 : index
      %c0_144 = arith.constant 0 : index
      %170 = vector.load %arg13[%c2_142, %c0_143, %c0_144] : memref<4x12x8xf32, #tpu.memory_space<vmem>>, vector<1x12x8xf32>
      %171 = vector.shape_cast %170 : vector<1x12x8xf32> to vector<12x8xf32>
      %172 = vector.shape_cast %169 : vector<12x8xf32> to vector<1x12x8xf32>
      tpu.vector_store %arg13[%c2_142, %c0_143, %c0_144], %172 {strides = array<i32>} : memref<4x12x8xf32, #tpu.memory_space<vmem>>, vector<1x12x8xf32>,
      %c2_145 = arith.constant 2 : index
      %c0_146 = arith.constant 0 : index
      %c0_147 = arith.constant 0 : index
      %173 = vector.load %arg9[%c2_145, %c0_146, %c0_147] : memref<4x1x8xf32, #tpu.memory_space<vmem>>, vector<1x1x8xf32>
      %174 = vector.shape_cast %173 : vector<1x1x8xf32> to vector<1x8xf32>
      %175 = vector.broadcast %174 : vector<1x8xf32> to vector<12x8xf32>
      %176 = arith.addf %165, %175 : vector<12x8xf32>
      %c2_148 = arith.constant 2 : index
      %c0_149 = arith.constant 0 : index
      %c0_150 = arith.constant 0 : index
      %177 = vector.load %arg14[%c2_148, %c0_149, %c0_150] : memref<4x12x8xf32, #tpu.memory_space<vmem>>, vector<1x12x8xf32>
      %178 = vector.shape_cast %177 : vector<1x12x8xf32> to vector<12x8xf32>
      %179 = vector.shape_cast %176 : vector<12x8xf32> to vector<1x12x8xf32>
      tpu.vector_store %arg14[%c2_148, %c0_149, %c0_150], %179 {strides = array<i32>} : memref<4x12x8xf32, #tpu.memory_space<vmem>>, vector<1x12x8xf32>,
      %c3_151 = arith.constant 3 : index
      %c0_152 = arith.constant 0 : index
      %c0_153 = arith.constant 0 : index
      %180 = vector.load %arg6[%c3_151, %c0_152, %c0_153] : memref<4x32x8xf32, #tpu.memory_space<vmem>>, vector<1x32x8xf32>
      %181 = vector.shape_cast %180 : vector<1x32x8xf32> to vector<32x8xf32>
      %cst_154 = arith.constant dense<0.000000e+00> : vector<12x8xf32>
      %182 = tpu.matmul %119, %181, %cst_154 {dimension_numbers = #tpu.dot_dimension_numbers<[1], [0], [0], [1], [0, 0, 1, 1], [], []>} : vector<12x32xf32>, vector<32x8xf32>, vector<12x8xf32> -> vector<12x8xf32>
      %c3_155 = arith.constant 3 : index
      %c0_156 = arith.constant 0 : index
      %c0_157 = arith.constant 0 : index
      %183 = vector.load %arg8[%c3_155, %c0_156, %c0_157] : memref<4x32x8xf32, #tpu.memory_space<vmem>>, vector<1x32x8xf32>
      %184 = vector.shape_cast %183 : vector<1x32x8xf32> to vector<32x8xf32>
      %cst_158 = arith.constant dense<0.000000e+00> : vector<12x8xf32>
      %185 = tpu.matmul %119, %184, %cst_158 {dimension_numbers = #tpu.dot_dimension_numbers<[1], [0], [0], [1], [0, 0, 1, 1], [], []>} : vector<12x32xf32>, vector<32x8xf32>, vector<12x8xf32> -> vector<12x8xf32>
      %c3_159 = arith.constant 3 : index
      %c0_160 = arith.constant 0 : index
      %c0_161 = arith.constant 0 : index
      %186 = vector.load %arg7[%c3_159, %c0_160, %c0_161] : memref<4x1x8xf32, #tpu.memory_space<vmem>>, vector<1x1x8xf32>
      %187 = vector.shape_cast %186 : vector<1x1x8xf32> to vector<1x8xf32>
      %188 = vector.broadcast %187 : vector<1x8xf32> to vector<12x8xf32>
      %189 = arith.addf %182, %188 : vector<12x8xf32>
      %c3_162 = arith.constant 3 : index
      %c0_163 = arith.constant 0 : index
      %c0_164 = arith.constant 0 : index
      %190 = vector.load %arg13[%c3_162, %c0_163, %c0_164] : memref<4x12x8xf32, #tpu.memory_space<vmem>>, vector<1x12x8xf32>
      %191 = vector.shape_cast %190 : vector<1x12x8xf32> to vector<12x8xf32>
      %192 = vector.shape_cast %189 : vector<12x8xf32> to vector<1x12x8xf32>
      tpu.vector_store %arg13[%c3_162, %c0_163, %c0_164], %192 {strides = array<i32>} : memref<4x12x8xf32, #tpu.memory_space<vmem>>, vector<1x12x8xf32>,
      %c3_165 = arith.constant 3 : index
      %c0_166 = arith.constant 0 : index
      %c0_167 = arith.constant 0 : index
      %193 = vector.load %arg9[%c3_165, %c0_166, %c0_167] : memref<4x1x8xf32, #tpu.memory_space<vmem>>, vector<1x1x8xf32>
      %194 = vector.shape_cast %193 : vector<1x1x8xf32> to vector<1x8xf32>
      %195 = vector.broadcast %194 : vector<1x8xf32> to vector<12x8xf32>
      %196 = arith.addf %185, %195 : vector<12x8xf32>
      %c3_168 = arith.constant 3 : index
      %c0_169 = arith.constant 0 : index
      %c0_170 = arith.constant 0 : index
      %197 = vector.load %arg14[%c3_168, %c0_169, %c0_170] : memref<4x12x8xf32, #tpu.memory_space<vmem>>, vector<1x12x8xf32>
      %198 = vector.shape_cast %197 : vector<1x12x8xf32> to vector<12x8xf32>
      %199 = vector.shape_cast %196 : vector<12x8xf32> to vector<1x12x8xf32>
      tpu.vector_store %arg14[%c3_168, %c0_169, %c0_170], %199 {strides = array<i32>} : memref<4x12x8xf32, #tpu.memory_space<vmem>>, vector<1x12x8xf32>,
    } else {
    }
    %c0 = arith.constant 0 : index
    %c0_1 = arith.constant 0 : index
    %c0_2 = arith.constant 0 : index
    %3 = vector.load %arg2[%c0, %c0_1, %c0_2] : memref<1x16x32xf32, #tpu.memory_space<vmem>>, vector<1x16x32xf32>
    %4 = vector.shape_cast %3 : vector<1x16x32xf32> to vector<16x32xf32>
    %c0_3 = arith.constant 0 : index
    %c0_4 = arith.constant 0 : index
    %c0_5 = arith.constant 0 : index
    %5 = vector.load %arg4[%c0_3, %c0_4, %c0_5] : memref<4x32x8xf32, #tpu.memory_space<vmem>>, vector<1x32x8xf32>
    %6 = vector.shape_cast %5 : vector<1x32x8xf32> to vector<32x8xf32>
    %cst = arith.constant dense<0.000000e+00> : vector<16x8xf32>
    %7 = tpu.matmul %4, %6, %cst {dimension_numbers = #tpu.dot_dimension_numbers<[1], [0], [0], [1], [0, 0, 1, 1], [], []>} : vector<16x32xf32>, vector<32x8xf32>, vector<16x8xf32> -> vector<16x8xf32>
    %c0_6 = arith.constant 0 : index
    %c0_7 = arith.constant 0 : index
    %c0_8 = arith.constant 0 : index
    %8 = vector.load %arg5[%c0_6, %c0_7, %c0_8] : memref<4x1x8xf32, #tpu.memory_space<vmem>>, vector<1x1x8xf32>
    %9 = vector.shape_cast %8 : vector<1x1x8xf32> to vector<1x8xf32>
    %10 = vector.broadcast %9 : vector<1x8xf32> to vector<16x8xf32>
    %11 = arith.addf %7, %10 : vector<16x8xf32>
    %c0_9 = arith.constant 0 : index
    %c0_10 = arith.constant 0 : index
    %c0_11 = arith.constant 0 : index
    %12 = vector.load %arg13[%c0_9, %c0_10, %c0_11] : memref<4x12x8xf32, #tpu.memory_space<vmem>>, vector<1x12x8xf32>
    %13 = vector.shape_cast %12 : vector<1x12x8xf32> to vector<12x8xf32>
    %c0_12 = arith.constant 0 : index
    %c0_13 = arith.constant 0 : index
    %c0_14 = arith.constant 0 : index
    %14 = vector.load %arg14[%c0_12, %c0_13, %c0_14] : memref<4x12x8xf32, #tpu.memory_space<vmem>>, vector<1x12x8xf32>
    %15 = vector.shape_cast %14 : vector<1x12x8xf32> to vector<12x8xf32>
    %cst_15 = arith.constant dense<0.000000e+00> : vector<16x12xf32>
    %16 = tpu.matmul %11, %13, %cst_15 {dimension_numbers = #tpu.dot_dimension_numbers<[1], [1], [0], [0], [0, 0, 1, 0], [], []>} : vector<16x8xf32>, vector<12x8xf32>, vector<16x12xf32> -> vector<16x12xf32>
    %cst_16 = arith.constant dense<0xFF800000> : vector<16xf32>
    %17 = vector.multi_reduction <maximumf>, %16, %cst_16 [1] : vector<16x12xf32> to vector<16xf32>
    %18 = vector.shape_cast %17 : vector<16xf32> to vector<16x1xf32>
    %19 = vector.broadcast %18 : vector<16x1xf32> to vector<16x12xf32>
    %20 = arith.subf %16, %19 : vector<16x12xf32>
    %21 = math.exp %20 : vector<16x12xf32>
    %cst_17 = arith.constant dense<0.000000e+00> : vector<16xf32>
    %22 = vector.multi_reduction <add>, %21, %cst_17 [1] : vector<16x12xf32> to vector<16xf32>
    %23 = vector.shape_cast %22 : vector<16xf32> to vector<16x1xf32>
    %cst_18 = arith.constant dense<0.000000e+00> : vector<16x8xf32>
    %24 = tpu.matmul %21, %15, %cst_18 {dimension_numbers = #tpu.dot_dimension_numbers<[1], [0], [0], [1], [0, 0, 1, 1], [], []>} : vector<16x12xf32>, vector<12x8xf32>, vector<16x8xf32> -> vector<16x8xf32>
    %25 = tpu.reciprocal %23 {approx = true} : vector<16x1xf32> -> vector<16x1xf32>
    %26 = vector.broadcast %25 : vector<16x1xf32> to vector<16x8xf32>
    %27 = arith.mulf %24, %26 : vector<16x8xf32>
    %c0_19 = arith.constant 0 : index
    %c0_20 = arith.constant 0 : index
    %c0_21 = arith.constant 0 : index
    %28 = vector.load %arg10[%c0_19, %c0_20, %c0_21] : memref<4x8x32xf32, #tpu.memory_space<vmem>>, vector<1x8x32xf32>
    %29 = vector.shape_cast %28 : vector<1x8x32xf32> to vector<8x32xf32>
    %cst_22 = arith.constant dense<0.000000e+00> : vector<16x32xf32>
    %30 = tpu.matmul %27, %29, %cst_22 {dimension_numbers = #tpu.dot_dimension_numbers<[1], [0], [0], [1], [0, 0, 1, 1], [], []>} : vector<16x8xf32>, vector<8x32xf32>, vector<16x32xf32> -> vector<16x32xf32>
    %c1 = arith.constant 1 : index
    %c0_23 = arith.constant 0 : index
    %c0_24 = arith.constant 0 : index
    %31 = vector.load %arg4[%c1, %c0_23, %c0_24] : memref<4x32x8xf32, #tpu.memory_space<vmem>>, vector<1x32x8xf32>
    %32 = vector.shape_cast %31 : vector<1x32x8xf32> to vector<32x8xf32>
    %cst_25 = arith.constant dense<0.000000e+00> : vector<16x8xf32>
    %33 = tpu.matmul %4, %32, %cst_25 {dimension_numbers = #tpu.dot_dimension_numbers<[1], [0], [0], [1], [0, 0, 1, 1], [], []>} : vector<16x32xf32>, vector<32x8xf32>, vector<16x8xf32> -> vector<16x8xf32>
    %c1_26 = arith.constant 1 : index
    %c0_27 = arith.constant 0 : index
    %c0_28 = arith.constant 0 : index
    %34 = vector.load %arg5[%c1_26, %c0_27, %c0_28] : memref<4x1x8xf32, #tpu.memory_space<vmem>>, vector<1x1x8xf32>
    %35 = vector.shape_cast %34 : vector<1x1x8xf32> to vector<1x8xf32>
    %36 = vector.broadcast %35 : vector<1x8xf32> to vector<16x8xf32>
    %37 = arith.addf %33, %36 : vector<16x8xf32>
    %c1_29 = arith.constant 1 : index
    %c0_30 = arith.constant 0 : index
    %c0_31 = arith.constant 0 : index
    %38 = vector.load %arg13[%c1_29, %c0_30, %c0_31] : memref<4x12x8xf32, #tpu.memory_space<vmem>>, vector<1x12x8xf32>
    %39 = vector.shape_cast %38 : vector<1x12x8xf32> to vector<12x8xf32>
    %c1_32 = arith.constant 1 : index
    %c0_33 = arith.constant 0 : index
    %c0_34 = arith.constant 0 : index
    %40 = vector.load %arg14[%c1_32, %c0_33, %c0_34] : memref<4x12x8xf32, #tpu.memory_space<vmem>>, vector<1x12x8xf32>
    %41 = vector.shape_cast %40 : vector<1x12x8xf32> to vector<12x8xf32>
    %cst_35 = arith.constant dense<0.000000e+00> : vector<16x12xf32>
    %42 = tpu.matmul %37, %39, %cst_35 {dimension_numbers = #tpu.dot_dimension_numbers<[1], [1], [0], [0], [0, 0, 1, 0], [], []>} : vector<16x8xf32>, vector<12x8xf32>, vector<16x12xf32> -> vector<16x12xf32>
    %cst_36 = arith.constant dense<0xFF800000> : vector<16xf32>
    %43 = vector.multi_reduction <maximumf>, %42, %cst_36 [1] : vector<16x12xf32> to vector<16xf32>
    %44 = vector.shape_cast %43 : vector<16xf32> to vector<16x1xf32>
    %45 = vector.broadcast %44 : vector<16x1xf32> to vector<16x12xf32>
    %46 = arith.subf %42, %45 : vector<16x12xf32>
    %47 = math.exp %46 : vector<16x12xf32>
    %cst_37 = arith.constant dense<0.000000e+00> : vector<16xf32>
    %48 = vector.multi_reduction <add>, %47, %cst_37 [1] : vector<16x12xf32> to vector<16xf32>
    %49 = vector.shape_cast %48 : vector<16xf32> to vector<16x1xf32>
    %cst_38 = arith.constant dense<0.000000e+00> : vector<16x8xf32>
    %50 = tpu.matmul %47, %41, %cst_38 {dimension_numbers = #tpu.dot_dimension_numbers<[1], [0], [0], [1], [0, 0, 1, 1], [], []>} : vector<16x12xf32>, vector<12x8xf32>, vector<16x8xf32> -> vector<16x8xf32>
    %51 = tpu.reciprocal %49 {approx = true} : vector<16x1xf32> -> vector<16x1xf32>
    %52 = vector.broadcast %51 : vector<16x1xf32> to vector<16x8xf32>
    %53 = arith.mulf %50, %52 : vector<16x8xf32>
    %c1_39 = arith.constant 1 : index
    %c0_40 = arith.constant 0 : index
    %c0_41 = arith.constant 0 : index
    %54 = vector.load %arg10[%c1_39, %c0_40, %c0_41] : memref<4x8x32xf32, #tpu.memory_space<vmem>>, vector<1x8x32xf32>
    %55 = vector.shape_cast %54 : vector<1x8x32xf32> to vector<8x32xf32>
    %cst_42 = arith.constant dense<0.000000e+00> : vector<16x32xf32>
    %56 = tpu.matmul %53, %55, %cst_42 {dimension_numbers = #tpu.dot_dimension_numbers<[1], [0], [0], [1], [0, 0, 1, 1], [], []>} : vector<16x8xf32>, vector<8x32xf32>, vector<16x32xf32> -> vector<16x32xf32>
    %57 = arith.addf %30, %56 : vector<16x32xf32>
    %c2 = arith.constant 2 : index
    %c0_43 = arith.constant 0 : index
    %c0_44 = arith.constant 0 : index
    %58 = vector.load %arg4[%c2, %c0_43, %c0_44] : memref<4x32x8xf32, #tpu.memory_space<vmem>>, vector<1x32x8xf32>
    %59 = vector.shape_cast %58 : vector<1x32x8xf32> to vector<32x8xf32>
    %cst_45 = arith.constant dense<0.000000e+00> : vector<16x8xf32>
    %60 = tpu.matmul %4, %59, %cst_45 {dimension_numbers = #tpu.dot_dimension_numbers<[1], [0], [0], [1], [0, 0, 1, 1], [], []>} : vector<16x32xf32>, vector<32x8xf32>, vector<16x8xf32> -> vector<16x8xf32>
    %c2_46 = arith.constant 2 : index
    %c0_47 = arith.constant 0 : index
    %c0_48 = arith.constant 0 : index
    %61 = vector.load %arg5[%c2_46, %c0_47, %c0_48] : memref<4x1x8xf32, #tpu.memory_space<vmem>>, vector<1x1x8xf32>
    %62 = vector.shape_cast %61 : vector<1x1x8xf32> to vector<1x8xf32>
    %63 = vector.broadcast %62 : vector<1x8xf32> to vector<16x8xf32>
    %64 = arith.addf %60, %63 : vector<16x8xf32>
    %c2_49 = arith.constant 2 : index
    %c0_50 = arith.constant 0 : index
    %c0_51 = arith.constant 0 : index
    %65 = vector.load %arg13[%c2_49, %c0_50, %c0_51] : memref<4x12x8xf32, #tpu.memory_space<vmem>>, vector<1x12x8xf32>
    %66 = vector.shape_cast %65 : vector<1x12x8xf32> to vector<12x8xf32>
    %c2_52 = arith.constant 2 : index
    %c0_53 = arith.constant 0 : index
    %c0_54 = arith.constant 0 : index
    %67 = vector.load %arg14[%c2_52, %c0_53, %c0_54] : memref<4x12x8xf32, #tpu.memory_space<vmem>>, vector<1x12x8xf32>
    %68 = vector.shape_cast %67 : vector<1x12x8xf32> to vector<12x8xf32>
    %cst_55 = arith.constant dense<0.000000e+00> : vector<16x12xf32>
    %69 = tpu.matmul %64, %66, %cst_55 {dimension_numbers = #tpu.dot_dimension_numbers<[1], [1], [0], [0], [0, 0, 1, 0], [], []>} : vector<16x8xf32>, vector<12x8xf32>, vector<16x12xf32> -> vector<16x12xf32>
    %cst_56 = arith.constant dense<0xFF800000> : vector<16xf32>
    %70 = vector.multi_reduction <maximumf>, %69, %cst_56 [1] : vector<16x12xf32> to vector<16xf32>
    %71 = vector.shape_cast %70 : vector<16xf32> to vector<16x1xf32>
    %72 = vector.broadcast %71 : vector<16x1xf32> to vector<16x12xf32>
    %73 = arith.subf %69, %72 : vector<16x12xf32>
    %74 = math.exp %73 : vector<16x12xf32>
    %cst_57 = arith.constant dense<0.000000e+00> : vector<16xf32>
    %75 = vector.multi_reduction <add>, %74, %cst_57 [1] : vector<16x12xf32> to vector<16xf32>
    %76 = vector.shape_cast %75 : vector<16xf32> to vector<16x1xf32>
    %cst_58 = arith.constant dense<0.000000e+00> : vector<16x8xf32>
    %77 = tpu.matmul %74, %68, %cst_58 {dimension_numbers = #tpu.dot_dimension_numbers<[1], [0], [0], [1], [0, 0, 1, 1], [], []>} : vector<16x12xf32>, vector<12x8xf32>, vector<16x8xf32> -> vector<16x8xf32>
    %78 = tpu.reciprocal %76 {approx = true} : vector<16x1xf32> -> vector<16x1xf32>
    %79 = vector.broadcast %78 : vector<16x1xf32> to vector<16x8xf32>
    %80 = arith.mulf %77, %79 : vector<16x8xf32>
    %c2_59 = arith.constant 2 : index
    %c0_60 = arith.constant 0 : index
    %c0_61 = arith.constant 0 : index
    %81 = vector.load %arg10[%c2_59, %c0_60, %c0_61] : memref<4x8x32xf32, #tpu.memory_space<vmem>>, vector<1x8x32xf32>
    %82 = vector.shape_cast %81 : vector<1x8x32xf32> to vector<8x32xf32>
    %cst_62 = arith.constant dense<0.000000e+00> : vector<16x32xf32>
    %83 = tpu.matmul %80, %82, %cst_62 {dimension_numbers = #tpu.dot_dimension_numbers<[1], [0], [0], [1], [0, 0, 1, 1], [], []>} : vector<16x8xf32>, vector<8x32xf32>, vector<16x32xf32> -> vector<16x32xf32>
    %84 = arith.addf %57, %83 : vector<16x32xf32>
    %c3 = arith.constant 3 : index
    %c0_63 = arith.constant 0 : index
    %c0_64 = arith.constant 0 : index
    %85 = vector.load %arg4[%c3, %c0_63, %c0_64] : memref<4x32x8xf32, #tpu.memory_space<vmem>>, vector<1x32x8xf32>
    %86 = vector.shape_cast %85 : vector<1x32x8xf32> to vector<32x8xf32>
    %cst_65 = arith.constant dense<0.000000e+00> : vector<16x8xf32>
    %87 = tpu.matmul %4, %86, %cst_65 {dimension_numbers = #tpu.dot_dimension_numbers<[1], [0], [0], [1], [0, 0, 1, 1], [], []>} : vector<16x32xf32>, vector<32x8xf32>, vector<16x8xf32> -> vector<16x8xf32>
    %c3_66 = arith.constant 3 : index
    %c0_67 = arith.constant 0 : index
    %c0_68 = arith.constant 0 : index
    %88 = vector.load %arg5[%c3_66, %c0_67, %c0_68] : memref<4x1x8xf32, #tpu.memory_space<vmem>>, vector<1x1x8xf32>
    %89 = vector.shape_cast %88 : vector<1x1x8xf32> to vector<1x8xf32>
    %90 = vector.broadcast %89 : vector<1x8xf32> to vector<16x8xf32>
    %91 = arith.addf %87, %90 : vector<16x8xf32>
    %c3_69 = arith.constant 3 : index
    %c0_70 = arith.constant 0 : index
    %c0_71 = arith.constant 0 : index
    %92 = vector.load %arg13[%c3_69, %c0_70, %c0_71] : memref<4x12x8xf32, #tpu.memory_space<vmem>>, vector<1x12x8xf32>
    %93 = vector.shape_cast %92 : vector<1x12x8xf32> to vector<12x8xf32>
    %c3_72 = arith.constant 3 : index
    %c0_73 = arith.constant 0 : index
    %c0_74 = arith.constant 0 : index
    %94 = vector.load %arg14[%c3_72, %c0_73, %c0_74] : memref<4x12x8xf32, #tpu.memory_space<vmem>>, vector<1x12x8xf32>
    %95 = vector.shape_cast %94 : vector<1x12x8xf32> to vector<12x8xf32>
    %cst_75 = arith.constant dense<0.000000e+00> : vector<16x12xf32>
    %96 = tpu.matmul %91, %93, %cst_75 {dimension_numbers = #tpu.dot_dimension_numbers<[1], [1], [0], [0], [0, 0, 1, 0], [], []>} : vector<16x8xf32>, vector<12x8xf32>, vector<16x12xf32> -> vector<16x12xf32>
    %cst_76 = arith.constant dense<0xFF800000> : vector<16xf32>
    %97 = vector.multi_reduction <maximumf>, %96, %cst_76 [1] : vector<16x12xf32> to vector<16xf32>
    %98 = vector.shape_cast %97 : vector<16xf32> to vector<16x1xf32>
    %99 = vector.broadcast %98 : vector<16x1xf32> to vector<16x12xf32>
    %100 = arith.subf %96, %99 : vector<16x12xf32>
    %101 = math.exp %100 : vector<16x12xf32>
    %cst_77 = arith.constant dense<0.000000e+00> : vector<16xf32>
    %102 = vector.multi_reduction <add>, %101, %cst_77 [1] : vector<16x12xf32> to vector<16xf32>
    %103 = vector.shape_cast %102 : vector<16xf32> to vector<16x1xf32>
    %cst_78 = arith.constant dense<0.000000e+00> : vector<16x8xf32>
    %104 = tpu.matmul %101, %95, %cst_78 {dimension_numbers = #tpu.dot_dimension_numbers<[1], [0], [0], [1], [0, 0, 1, 1], [], []>} : vector<16x12xf32>, vector<12x8xf32>, vector<16x8xf32> -> vector<16x8xf32>
    %105 = tpu.reciprocal %103 {approx = true} : vector<16x1xf32> -> vector<16x1xf32>
    %106 = vector.broadcast %105 : vector<16x1xf32> to vector<16x8xf32>
    %107 = arith.mulf %104, %106 : vector<16x8xf32>
    %c3_79 = arith.constant 3 : index
    %c0_80 = arith.constant 0 : index
    %c0_81 = arith.constant 0 : index
    %108 = vector.load %arg10[%c3_79, %c0_80, %c0_81] : memref<4x8x32xf32, #tpu.memory_space<vmem>>, vector<1x8x32xf32>
    %109 = vector.shape_cast %108 : vector<1x8x32xf32> to vector<8x32xf32>
    %cst_82 = arith.constant dense<0.000000e+00> : vector<16x32xf32>
    %110 = tpu.matmul %107, %109, %cst_82 {dimension_numbers = #tpu.dot_dimension_numbers<[1], [0], [0], [1], [0, 0, 1, 1], [], []>} : vector<16x8xf32>, vector<8x32xf32>, vector<16x32xf32> -> vector<16x32xf32>
    %111 = arith.addf %84, %110 : vector<16x32xf32>
    %c0_83 = arith.constant 0 : index
    %c0_84 = arith.constant 0 : index
    %112 = vector.load %arg11[%c0_83, %c0_84] : memref<1x32xf32, #tpu.memory_space<vmem>>, vector<1x32xf32>
    %113 = vector.broadcast %112 : vector<1x32xf32> to vector<16x32xf32>
    %114 = arith.addf %111, %113 : vector<16x32xf32>
    %c0_85 = arith.constant 0 : index
    %c0_86 = arith.constant 0 : index
    %c0_87 = arith.constant 0 : index
    %115 = vector.load %arg12[%c0_85, %c0_86, %c0_87] : memref<1x16x32xf32, #tpu.memory_space<vmem>>, vector<1x16x32xf32>
    %116 = vector.shape_cast %115 : vector<1x16x32xf32> to vector<16x32xf32>
    %117 = vector.shape_cast %114 : vector<16x32xf32> to vector<1x16x32xf32>
    tpu.vector_store %arg12[%c0_85, %c0_86, %c0_87], %117 {strides = array<i32>} : memref<1x16x32xf32, #tpu.memory_space<vmem>>, vector<1x16x32xf32>,
    return
  }
  func.func @transform_0(%arg0: i32, %arg1: i32) -> (i32, i32, i32) {
    %c0_i32 = arith.constant 0 : i32
    %c0_i32_0 = arith.constant 0 : i32
    return %arg0, %arg1, %c0_i32 : i32, i32, i32
  }
  func.func @transform_1(%arg0: i32, %arg1: i32) -> (i32, i32, i32) {
    %c0_i32 = arith.constant 0 : i32
    %c0_i32_0 = arith.constant 0 : i32
    %c0_i32_1 = arith.constant 0 : i32
    return %arg0, %c0_i32, %c0_i32_0 : i32, i32, i32
  }
  func.func @transform_2(%arg0: i32, %arg1: i32) -> (i32, i32, i32) {
    %c0_i32 = arith.constant 0 : i32
    %c0_i32_0 = arith.constant 0 : i32
    %c0_i32_1 = arith.constant 0 : i32
    %c0_i32_2 = arith.constant 0 : i32
    return %c0_i32, %c0_i32_0, %c0_i32_1 : i32, i32, i32
  }
  func.func @transform_3(%arg0: i32, %arg1: i32) -> (i32, i32, i32) {
    %c0_i32 = arith.constant 0 : i32
    %c0_i32_0 = arith.constant 0 : i32
    %c0_i32_1 = arith.constant 0 : i32
    %c0_i32_2 = arith.constant 0 : i32
    return %c0_i32, %c0_i32_0, %c0_i32_1 : i32, i32, i32
  }
  func.func @transform_4(%arg0: i32, %arg1: i32) -> (i32, i32, i32) {
    %c0_i32 = arith.constant 0 : i32
    %c0_i32_0 = arith.constant 0 : i32
    %c0_i32_1 = arith.constant 0 : i32
    %c0_i32_2 = arith.constant 0 : i32
    return %c0_i32, %c0_i32_0, %c0_i32_1 : i32, i32, i32
  }
  func.func @transform_5(%arg0: i32, %arg1: i32) -> (i32, i32, i32) {
    %c0_i32 = arith.constant 0 : i32
    %c0_i32_0 = arith.constant 0 : i32
    %c0_i32_1 = arith.constant 0 : i32
    %c0_i32_2 = arith.constant 0 : i32
    return %c0_i32, %c0_i32_0, %c0_i32_1 : i32, i32, i32
  }
  func.func @transform_6(%arg0: i32, %arg1: i32) -> (i32, i32, i32) {
    %c0_i32 = arith.constant 0 : i32
    %c0_i32_0 = arith.constant 0 : i32
    %c0_i32_1 = arith.constant 0 : i32
    %c0_i32_2 = arith.constant 0 : i32
    return %c0_i32, %c0_i32_0, %c0_i32_1 : i32, i32, i32
  }
  func.func @transform_7(%arg0: i32, %arg1: i32) -> (i32, i32, i32) {
    %c0_i32 = arith.constant 0 : i32
    %c0_i32_0 = arith.constant 0 : i32
    %c0_i32_1 = arith.constant 0 : i32
    %c0_i32_2 = arith.constant 0 : i32
    return %c0_i32, %c0_i32_0, %c0_i32_1 : i32, i32, i32
  }
  func.func @transform_8(%arg0: i32, %arg1: i32) -> (i32, i32, i32) {
    %c0_i32 = arith.constant 0 : i32
    %c0_i32_0 = arith.constant 0 : i32
    %c0_i32_1 = arith.constant 0 : i32
    %c0_i32_2 = arith.constant 0 : i32
    return %c0_i32, %c0_i32_0, %c0_i32_1 : i32, i32, i32
  }
  func.func @transform_9(%arg0: i32, %arg1: i32) -> (i32, i32) {
    %c0_i32 = arith.constant 0 : i32
    %c0_i32_0 = arith.constant 0 : i32
    %c0_i32_1 = arith.constant 0 : i32
    return %c0_i32, %c0_i32_0 : i32, i32
  }
  func.func @transform_10(%arg0: i32, %arg1: i32) -> (i32, i32, i32) {
    %c0_i32 = arith.constant 0 : i32
    %c0_i32_0 = arith.constant 0 : i32
    return %arg0, %arg1, %c0_i32 : i32, i32, i32
  }
}

</mosaic_0001>

<llo_original>
// kernel: tpu_custom_call.1
$region0: #{tpu_custom_call.1}
  #allocation0 [shape = 'u32[]', space=smem, size = 0x4, offset = 0x4, fixed_abs, tag = 'smem constant byte address 0x4 - core index']
  #allocation1 [shape = 'u32[144,128]{1,0:T(1,128)}', space=vmem, size = 0x12000, scoped, tag = 'internal scratch']
  #allocation2 [shape = 'f32[4,12,8]{2,1,0:T(8,128)}', space=vmem, size = 0x8000, scoped, tag = 'scratch operand']
  #allocation3 [shape = 'f32[4,12,8]{2,1,0:T(8,128)}', space=vmem, size = 0x8000, scoped, tag = 'scratch operand']
  %s0 = inlined_call_operand.vmem [shape: f32[2,16,32], index: 0, kind: input, shape index: {}]
  %s1 = inlined_call_operand.vmem [shape: f32[2,12,32], index: 1, kind: input, shape index: {}]
  %s2 = inlined_call_operand.vmem [shape: f32[4,32,8], index: 2, kind: input, shape index: {}]
  %s3 = inlined_call_operand.vmem [shape: f32[4,1,8], index: 3, kind: input, shape index: {}]
  %s4 = inlined_call_operand.vmem [shape: f32[4,32,8], index: 4, kind: input, shape index: {}]
  %s5 = inlined_call_operand.vmem [shape: f32[4,1,8], index: 5, kind: input, shape index: {}]
  %s6 = inlined_call_operand.vmem [shape: f32[4,32,8], index: 6, kind: input, shape index: {}]
  %s7 = inlined_call_operand.vmem [shape: f32[4,1,8], index: 7, kind: input, shape index: {}]
  %s8 = inlined_call_operand.vmem [shape: f32[4,8,32], index: 8, kind: input, shape index: {}]
  %s9 = inlined_call_operand.vmem [shape: f32[1,32], index: 9, kind: input, shape index: {}]
  %s10 = inlined_call_operand.hbm [shape: f32[2,16,32], index: 10, kind: output, shape index: {}]
  %s11 = sld [smem:[#allocation0]]
  $region77: #{tpu_custom_call.1} parent=0
    _
  %s13 = ssub.s32 1, %s11
  %s14 = scalar_select 0, %s13, %s11
  $region1: #{tpu_custom_call.1} parent=0
    #allocation4 [shape = 'u8[16384]{0}', space=vmem, size = 0x4000, scoped, tag = 'output window, operand 0']
    #allocation5 [shape = 's32[2]{0}', space=sflag, size = 0x8, scoped, tag = 'scoped memory for tpu_custom_call.1']
    %15 = vsyncpa [#allocation5], 0
    %s16 = scalar_lea.sflag [#allocation5], 1
    %17 = vsyncpa %s16, 0
    loop: start=0, step=1, limit=4
    $region2: #{tpu_custom_call.1} parent=1 // loop_pre_header
      _
    $region3: #{tpu_custom_call.1} parent=1 // loop_header
      %s19 = sphi 0, %s23
      %p20 = scmp.ge.s32.totalorder %s19, 4
      %s26 = sphi 0, %s38
      %s27 = sphi 0, %s34
      %s28 = sphi 0, %s26
      %s29 = sphi 0, %s27
      %s30 = sphi 0, %s28
      %s31 = sphi 0, %s29
      %s43 = sphi 0, %s45
      %s46 = sphi 0, %s43
      %s47 = sphi 0, %s46
      %s63 = sphi 0, %s47
      %s69 = sphi 0, %s71
      %s72 = sphi 0, %s69
      %s73 = sphi 0, %s72
      %s89 = sphi 0, %s73
      %s93 = sphi 0, %s93
      %s95 = sphi 0, %s93
      %s96 = sphi 0, %s95
      %s110 = sphi 0, %s96
      %s114 = sphi 0, %s114
      %s116 = sphi 0, %s114
      %s117 = sphi 0, %s116
      %s131 = sphi 0, %s117
      %s135 = sphi 0, %s135
      %s137 = sphi 0, %s135
      %s138 = sphi 0, %s137
      %s152 = sphi 0, %s138
      %s156 = sphi 0, %s156
      %s158 = sphi 0, %s156
      %s159 = sphi 0, %s158
      %s173 = sphi 0, %s159
      %s177 = sphi 0, %s177
      %s179 = sphi 0, %s177
      %s180 = sphi 0, %s179
      %s194 = sphi 0, %s180
      %s198 = sphi 0, %s198
      %s200 = sphi 0, %s198
      %s201 = sphi 0, %s200
      %s215 = sphi 0, %s201
      %s219 = sphi 0, %s219
      %s221 = sphi 0, %s219
      %s222 = sphi 0, %s221
      %s236 = sphi 0, %s222
      %s240 = sphi 0, %s240
      %s242 = sphi 0, %s240
      %s243 = sphi 0, %s242
      %s257 = sphi 0, %s243
      %s265 = sphi 0, %s267
      %s268 = sphi 0, %s265
      %s269 = sphi 0, %s268
      %s285 = sphi 0, %s269
    $region4: #{tpu_custom_call.1} parent=1 // loop_header_branch
      %22 = sbr.rel (%p20) target = $region8
    $region5: #{tpu_custom_call.1} parent=1 // loop_body
      %s24 = ssub.s32 %s19, 1
      %s25 = ssub.s32 %s19, 2
      %s32 = sadd.s32 1, %s27
      %p33 = scmp.ge.s32.totalorder %s32, 1
      %s34 = scalar_select %p33, 0, %s32
      %s35 = sadd.s32 1, %s26
      %s36 = scalar_select %p33, %s35, %s26
      %p37 = scmp.ge.s32.totalorder %s36, 2
      %s38 = scalar_select %p37, 0, %s36
      %s39 = ssub.s32 %s26, %s38
      %s40 = ssub.s32 %s27, %s34
      %s41 = sor.u32 %s39, %s40
      %p42 = scmp.eq.s32.totalorder %s41, 0
      %s44 = sadd.s32 %s43, 1
      %s45 = scalar_select %p42, %s43, %s44
      %p48 = pneg %p42
      %p49 = scmp.eq.s32.totalorder %s19, 1
      %p50 = por %p48, %p49
      %p51 = scmp.ne.s32.totalorder %s43, %s46
      %p52 = scmp.eq.s32.totalorder %s19, 0
      %p53 = por %p51, %p52
      %p54 = scmp.ne.s32.totalorder %s43, %s46
      %p55 = scmp.eq.s32.totalorder %s24, 1
      %p56 = por %p54, %p55
      %p57 = scmp.ne.s32.totalorder %s46, %s47
      %p58 = scmp.eq.s32.totalorder %s24, 0
      %p59 = por %p57, %p58
      %p60 = scmp.ne.s32.totalorder %s46, %s47
      %p61 = scmp.eq.s32.totalorder %s25, 1
      %p62 = por %p60, %p61
      %p64 = scmp.ne.s32.totalorder %s47, %s63
      %p65 = scmp.eq.s32.totalorder %s25, 0
      %p66 = por %p64, %p65
      %s67 = ssub.s32 %s26, %s38
      %p68 = scmp.eq.s32.totalorder %s67, 0
      %s70 = sadd.s32 %s69, 1
      %s71 = scalar_select %p68, %s69, %s70
      %p74 = pneg %p68
      %p75 = scmp.eq.s32.totalorder %s19, 1
      %p76 = por %p74, %p75
      %p77 = scmp.ne.s32.totalorder %s69, %s72
      %p78 = scmp.eq.s32.totalorder %s19, 0
      %p79 = por %p77, %p78
      %p80 = scmp.ne.s32.totalorder %s69, %s72
      %p81 = scmp.eq.s32.totalorder %s24, 1
      %p82 = por %p80, %p81
      %p83 = scmp.ne.s32.totalorder %s72, %s73
      %p84 = scmp.eq.s32.totalorder %s24, 0
      %p85 = por %p83, %p84
      %p86 = scmp.ne.s32.totalorder %s72, %s73
      %p87 = scmp.eq.s32.totalorder %s25, 1
      %p88 = por %p86, %p87
      %p90 = scmp.ne.s32.totalorder %s73, %s89
      %p91 = scmp.eq.s32.totalorder %s25, 0
      %p92 = por %p90, %p91
      %s94 = sadd.s32 %s93, 1
      %p97 = scmp.eq.s32.totalorder %s19, 1
      %p98 = scmp.ne.s32.totalorder %s93, %s95
      %p99 = scmp.eq.s32.totalorder %s19, 0
      %p100 = por %p98, %p99
      %p101 = scmp.ne.s32.totalorder %s93, %s95
      %p102 = scmp.eq.s32.totalorder %s24, 1
      %p103 = por %p101, %p102
      %p104 = scmp.ne.s32.totalorder %s95, %s96
      %p105 = scmp.eq.s32.totalorder %s24, 0
      %p106 = por %p104, %p105
      %p107 = scmp.ne.s32.totalorder %s95, %s96
      %p108 = scmp.eq.s32.totalorder %s25, 1
      %p109 = por %p107, %p108
      %p111 = scmp.ne.s32.totalorder %s96, %s110
      %p112 = scmp.eq.s32.totalorder %s25, 0
      %p113 = por %p111, %p112
      %s115 = sadd.s32 %s114, 1
      %p118 = scmp.eq.s32.totalorder %s19, 1
      %p119 = scmp.ne.s32.totalorder %s114, %s116
      %p120 = scmp.eq.s32.totalorder %s19, 0
      %p121 = por %p119, %p120
      %p122 = scmp.ne.s32.totalorder %s114, %s116
      %p123 = scmp.eq.s32.totalorder %s24, 1
      %p124 = por %p122, %p123
      %p125 = scmp.ne.s32.totalorder %s116, %s117
      %p126 = scmp.eq.s32.totalorder %s24, 0
      %p127 = por %p125, %p126
      %p128 = scmp.ne.s32.totalorder %s116, %s117
      %p129 = scmp.eq.s32.totalorder %s25, 1
      %p130 = por %p128, %p129
      %p132 = scmp.ne.s32.totalorder %s117, %s131
      %p133 = scmp.eq.s32.totalorder %s25, 0
      %p134 = por %p132, %p133
      %s136 = sadd.s32 %s135, 1
      %p139 = scmp.eq.s32.totalorder %s19, 1
      %p140 = scmp.ne.s32.totalorder %s135, %s137
      %p141 = scmp.eq.s32.totalorder %s19, 0
      %p142 = por %p140, %p141
      %p143 = scmp.ne.s32.totalorder %s135, %s137
      %p144 = scmp.eq.s32.totalorder %s24, 1
      %p145 = por %p143, %p144
      %p146 = scmp.ne.s32.totalorder %s137, %s138
      %p147 = scmp.eq.s32.totalorder %s24, 0
      %p148 = por %p146, %p147
      %p149 = scmp.ne.s32.totalorder %s137, %s138
      %p150 = scmp.eq.s32.totalorder %s25, 1
      %p151 = por %p149, %p150
      %p153 = scmp.ne.s32.totalorder %s138, %s152
      %p154 = scmp.eq.s32.totalorder %s25, 0
      %p155 = por %p153, %p154
      %s157 = sadd.s32 %s156, 1
      %p160 = scmp.eq.s32.totalorder %s19, 1
      %p161 = scmp.ne.s32.totalorder %s156, %s158
      %p162 = scmp.eq.s32.totalorder %s19, 0
      %p163 = por %p161, %p162
      %p164 = scmp.ne.s32.totalorder %s156, %s158
      %p165 = scmp.eq.s32.totalorder %s24, 1
      %p166 = por %p164, %p165
      %p167 = scmp.ne.s32.totalorder %s158, %s159
      %p168 = scmp.eq.s32.totalorder %s24, 0
      %p169 = por %p167, %p168
      %p170 = scmp.ne.s32.totalorder %s158, %s159
      %p171 = scmp.eq.s32.totalorder %s25, 1
      %p172 = por %p170, %p171
      %p174 = scmp.ne.s32.totalorder %s159, %s173
      %p175 = scmp.eq.s32.totalorder %s25, 0
      %p176 = por %p174, %p175
      %s178 = sadd.s32 %s177, 1
      %p181 = scmp.eq.s32.totalorder %s19, 1
      %p182 = scmp.ne.s32.totalorder %s177, %s179
      %p183 = scmp.eq.s32.totalorder %s19, 0
      %p184 = por %p182, %p183
      %p185 = scmp.ne.s32.totalorder %s177, %s179
      %p186 = scmp.eq.s32.totalorder %s24, 1
      %p187 = por %p185, %p186
      %p188 = scmp.ne.s32.totalorder %s179, %s180
      %p189 = scmp.eq.s32.totalorder %s24, 0
      %p190 = por %p188, %p189
      %p191 = scmp.ne.s32.totalorder %s179, %s180
      %p192 = scmp.eq.s32.totalorder %s25, 1
      %p193 = por %p191, %p192
      %p195 = scmp.ne.s32.totalorder %s180, %s194
      %p196 = scmp.eq.s32.totalorder %s25, 0
      %p197 = por %p195, %p196
      %s199 = sadd.s32 %s198, 1
      %p202 = scmp.eq.s32.totalorder %s19, 1
      %p203 = scmp.ne.s32.totalorder %s198, %s200
      %p204 = scmp.eq.s32.totalorder %s19, 0
      %p205 = por %p203, %p204
      %p206 = scmp.ne.s32.totalorder %s198, %s200
      %p207 = scmp.eq.s32.totalorder %s24, 1
      %p208 = por %p206, %p207
      %p209 = scmp.ne.s32.totalorder %s200, %s201
      %p210 = scmp.eq.s32.totalorder %s24, 0
      %p211 = por %p209, %p210
      %p212 = scmp.ne.s32.totalorder %s200, %s201
      %p213 = scmp.eq.s32.totalorder %s25, 1
      %p214 = por %p212, %p213
      %p216 = scmp.ne.s32.totalorder %s201, %s215
      %p217 = scmp.eq.s32.totalorder %s25, 0
      %p218 = por %p216, %p217
      %s220 = sadd.s32 %s219, 1
      %p223 = scmp.eq.s32.totalorder %s19, 1
      %p224 = scmp.ne.s32.totalorder %s219, %s221
      %p225 = scmp.eq.s32.totalorder %s19, 0
      %p226 = por %p224, %p225
      %p227 = scmp.ne.s32.totalorder %s219, %s221
      %p228 = scmp.eq.s32.totalorder %s24, 1
      %p229 = por %p227, %p228
      %p230 = scmp.ne.s32.totalorder %s221, %s222
      %p231 = scmp.eq.s32.totalorder %s24, 0
      %p232 = por %p230, %p231
      %p233 = scmp.ne.s32.totalorder %s221, %s222
      %p234 = scmp.eq.s32.totalorder %s25, 1
      %p235 = por %p233, %p234
      %p237 = scmp.ne.s32.totalorder %s222, %s236
      %p238 = scmp.eq.s32.totalorder %s25, 0
      %p239 = por %p237, %p238
      %s241 = sadd.s32 %s240, 1
      %p244 = scmp.eq.s32.totalorder %s19, 1
      %p245 = scmp.ne.s32.totalorder %s240, %s242
      %p246 = scmp.eq.s32.totalorder %s19, 0
      %p247 = por %p245, %p246
      %p248 = scmp.ne.s32.totalorder %s240, %s242
      %p249 = scmp.eq.s32.totalorder %s24, 1
      %p250 = por %p248, %p249
      %p251 = scmp.ne.s32.totalorder %s242, %s243
      %p252 = scmp.eq.s32.totalorder %s24, 0
      %p253 = por %p251, %p252
      %p254 = scmp.ne.s32.totalorder %s242, %s243
      %p255 = scmp.eq.s32.totalorder %s25, 1
      %p256 = por %p254, %p255
      %p258 = scmp.ne.s32.totalorder %s243, %s257
      %p259 = scmp.eq.s32.totalorder %s25, 0
      %p260 = por %p258, %p259
      %s261 = ssub.s32 %s26, %s38
      %s262 = ssub.s32 %s27, %s34
      %s263 = sor.u32 %s261, %s262
      %p264 = scmp.eq.s32.totalorder %s263, 0
      %s266 = sadd.s32 %s265, 1
      %s267 = scalar_select %p264, %s265, %s266
      %p270 = pneg %p264
      %p271 = scmp.eq.s32.totalorder %s19, 1
      %p272 = por %p270, %p271
      %p273 = scmp.ne.s32.totalorder %s265, %s268
      %p274 = scmp.eq.s32.totalorder %s19, 0
      %p275 = por %p273, %p274
      %p276 = scmp.ne.s32.totalorder %s265, %s268
      %p277 = scmp.eq.s32.totalorder %s24, 1
      %p278 = por %p276, %p277
      %p279 = scmp.ne.s32.totalorder %s268, %s269
      %p280 = scmp.eq.s32.totalorder %s24, 0
      %p281 = por %p279, %p280
      %p282 = scmp.ne.s32.totalorder %s268, %s269
      %p283 = scmp.eq.s32.totalorder %s25, 1
      %p284 = por %p282, %p283
      %p286 = scmp.ne.s32.totalorder %s269, %s285
      %p287 = scmp.eq.s32.totalorder %s25, 0
      %p288 = por %p286, %p287
      %p289 = scmp.le.s32.totalorder 1, %s19
      %p290 = scmp.lt.s32.totalorder %s19, 3
      %p291 = pnand %p289, %p290
      %p292 = pneg %p291
      // Predicated region
      $region9: #{tpu_custom_call.1} parent=5 // pred_check
        _
      $region10: #{tpu_custom_call.1} parent=5 // pred_check_branch
        %294 = sbr.rel (%p291) target = $region12
      $region11: #{tpu_custom_call.1} parent=5 // pred_region
        %s295 = ssub.s32 %s19, 1
        // Predicated region
        $region13: #{tpu_custom_call.1} parent=11 // pred_check
          %p296 = pneg %p106
        $region14: #{tpu_custom_call.1} parent=11 // pred_check_branch
          %298 = sbr.rel (%p296) target = $region16
        $region15: #{tpu_custom_call.1} parent=11 // pred_region
          _
        $region16: #{tpu_custom_call.1} parent=11 // pred_fallthru
          _
        // Predicated region
        $region17: #{tpu_custom_call.1} parent=11 // pred_check
          %p299 = pneg %p127
        $region18: #{tpu_custom_call.1} parent=11 // pred_check_branch
          %301 = sbr.rel (%p299) target = $region20
        $region19: #{tpu_custom_call.1} parent=11 // pred_region
          _
        $region20: #{tpu_custom_call.1} parent=11 // pred_fallthru
          _
        // Predicated region
        $region21: #{tpu_custom_call.1} parent=11 // pred_check
          %p302 = pneg %p148
        $region22: #{tpu_custom_call.1} parent=11 // pred_check_branch
          %304 = sbr.rel (%p302) target = $region24
        $region23: #{tpu_custom_call.1} parent=11 // pred_region
          _
        $region24: #{tpu_custom_call.1} parent=11 // pred_fallthru
          _
        // Predicated region
        $region25: #{tpu_custom_call.1} parent=11 // pred_check
          %p305 = pneg %p169
        $region26: #{tpu_custom_call.1} parent=11 // pred_check_branch
          %307 = sbr.rel (%p305) target = $region28
        $region27: #{tpu_custom_call.1} parent=11 // pred_region
          _
        $region28: #{tpu_custom_call.1} parent=11 // pred_fallthru
          _
        // Predicated region
        $region29: #{tpu_custom_call.1} parent=11 // pred_check
          %p308 = pneg %p190
        $region30: #{tpu_custom_call.1} parent=11 // pred_check_branch
          %310 = sbr.rel (%p308) target = $region32
        $region31: #{tpu_custom_call.1} parent=11 // pred_region
          _
        $region32: #{tpu_custom_call.1} parent=11 // pred_fallthru
          _
        // Predicated region
        $region33: #{tpu_custom_call.1} parent=11 // pred_check
          %p311 = pneg %p211
        $region34: #{tpu_custom_call.1} parent=11 // pred_check_branch
          %313 = sbr.rel (%p311) target = $region36
        $region35: #{tpu_custom_call.1} parent=11 // pred_region
          _
        $region36: #{tpu_custom_call.1} parent=11 // pred_fallthru
          _
        // Predicated region
        $region37: #{tpu_custom_call.1} parent=11 // pred_check
          %p314 = pneg %p232
        $region38: #{tpu_custom_call.1} parent=11 // pred_check_branch
          %316 = sbr.rel (%p314) target = $region40
        $region39: #{tpu_custom_call.1} parent=11 // pred_region
          _
        $region40: #{tpu_custom_call.1} parent=11 // pred_fallthru
          _
        // Predicated region
        $region41: #{tpu_custom_call.1} parent=11 // pred_check
          %p317 = pneg %p253
        $region42: #{tpu_custom_call.1} parent=11 // pred_check_branch
          %319 = sbr.rel (%p317) target = $region44
        $region43: #{tpu_custom_call.1} parent=11 // pred_region
          _
        $region44: #{tpu_custom_call.1} parent=11 // pred_fallthru
          _
      $region12: #{tpu_custom_call.1} parent=5 // pred_fallthru
        _
      %p320 = scmp.lt.s32.totalorder %s19, 2
      // Predicated region
      $region45: #{tpu_custom_call.1} parent=5 // pred_check
        %p321 = pneg %p320
      $region46: #{tpu_custom_call.1} parent=5 // pred_check_branch
        %323 = sbr.rel (%p321) target = $region48
      $region47: #{tpu_custom_call.1} parent=5 // pred_region
        // Predicated region
        $region49: #{tpu_custom_call.1} parent=47 // pred_check
          %p324 = pneg %p53
        $region50: #{tpu_custom_call.1} parent=47 // pred_check_branch
          %326 = sbr.rel (%p324) target = $region52
        $region51: #{tpu_custom_call.1} parent=47 // pred_region
          %s327 = smul.u32 2, %s27
          %p328 = scmp.lt.s32.totalorder %s26, 1
          %s329 = scalar_select %p328, %s26, 1
          %p330 = scmp.lt.s32.totalorder %s327, 1
          %s331 = scalar_select %p330, %s327, 1
          %s332 = smul.addr %s329, 2
          %s333 = sadd.s32 %s331, %s332
          %s334 = smul.addr %s333, 8
          %s335 = scalar_lea.vmem %s0, %s334
          %s336 = smul.u32 2, %s27
        $region52: #{tpu_custom_call.1} parent=47 // pred_fallthru
          _
        // Predicated region
        $region53: #{tpu_custom_call.1} parent=47 // pred_check
          %p337 = pneg %p79
        $region54: #{tpu_custom_call.1} parent=47 // pred_check_branch
          %339 = sbr.rel (%p337) target = $region56
        $region55: #{tpu_custom_call.1} parent=47 // pred_region
          %p340 = scmp.lt.s32.totalorder %s26, 1
          %s341 = scalar_select %p340, %s26, 1
          %s342 = smul.addr %s341, 2
          %s343 = smul.addr %s342, 8
          %s344 = scalar_lea.vmem %s1, %s343
        $region56: #{tpu_custom_call.1} parent=47 // pred_fallthru
          _
      $region48: #{tpu_custom_call.1} parent=5 // pred_fallthru
        _
      %p345 = scmp.le.s32.totalorder 1, %s19
      %p346 = scmp.lt.s32.totalorder %s19, 3
      %p347 = pnand %p345, %p346
      %p348 = pneg %p347
      // Predicated region
      $region57: #{tpu_custom_call.1} parent=5 // pred_check
        _
      $region58: #{tpu_custom_call.1} parent=5 // pred_check_branch
        %350 = sbr.rel (%p347) target = $region60
      $region59: #{tpu_custom_call.1} parent=5 // pred_region
        %s351 = ssub.s32 %s19, 1
        %s352 = smul.u32 2, %s29
        %p353 = scmp.lt.s32.totalorder %s28, 1
        %s354 = scalar_select %p353, %s28, 1
        %p355 = scmp.lt.s32.totalorder %s352, 1
        %s356 = scalar_select %p355, %s352, 1
        %s357 = smul.addr %s354, 2
        %s358 = sadd.s32 %s356, %s357
        %s359 = smul.addr %s358, 8
        %s360 = scalar_lea.vmem %s0, %s359
        %p361 = pneg %p59
        %p362 = pneg %p56
        %p363 = scmp.lt.s32.totalorder %s28, 1
        %s364 = scalar_select %p363, %s28, 1
        %s365 = smul.addr %s364, 2
        %s366 = smul.addr %s365, 8
        %s367 = scalar_lea.vmem %s1, %s366
        %p368 = pneg %p85
        %p369 = pneg %p82
        %p370 = pneg %p106
        %p371 = pneg %p103
        %p372 = pneg %p127
        %p373 = pneg %p124
        %p374 = pneg %p148
        %p375 = pneg %p145
        %p376 = pneg %p169
        %p377 = pneg %p166
        %p378 = pneg %p190
        %p379 = pneg %p187
        %p380 = pneg %p211
        %p381 = pneg %p208
        %p382 = pneg %p232
        %p383 = pneg %p229
        %p384 = pneg %p253
        %p385 = pneg %p250
        %p386 = pneg %p281
        %p387 = pneg %p278
        %s388 = sand.u32 %s268, 1
        %s389 = scalar_lea.sflag [#allocation5], %s388
        %s390 = sand.u32 %s268, 1
        %s391 = smul.addr %s390, 16
        %s392 = scalar_lea.vmem [#allocation4], %s391
        %s393 = smul.u32 2, %s29
        %p394 = scmp.lt.s32.totalorder %s28, 1
        %s395 = scalar_select %p394, %s28, 1
        %p396 = scmp.lt.s32.totalorder %s393, 1
        %s397 = scalar_select %p396, %s393, 1
        %s398 = smul.addr %s395, 2
        %s399 = sadd.s32 %s397, %s398
        %s400 = smul.addr %s399, 8
        %s401 = scalar_lea.vmem %s0, %s400
        %s402 = smul.u32 2, %s29
        %p403 = scmp.lt.s32.totalorder %s28, 1
        %s404 = scalar_select %p403, %s28, 1
        %s405 = smul.addr %s404, 2
        %s406 = smul.addr %s405, 8
        %s407 = scalar_lea.vmem %s1, %s406
        %s408 = smul.u32 2, %s29
        %p409 = scmp.eq.s32.totalorder %s29, 0
        // Predicated region
        $region61: #{tpu_custom_call.1} parent=59 // pred_check
          %p410 = pneg %p409
        $region62: #{tpu_custom_call.1} parent=59 // pred_check_branch
          %412 = sbr.rel (%p410) target = $region64
        $region63: #{tpu_custom_call.1} parent=59 // pred_region
          %v413 = vld [vmem:[%s407] sm:$0xff]
          %v414 = vld [vmem:[%s407 + $0x8] sm:$0xf]
          %v415 = vld [vmem:[%s4] sm:$0xff]
          %v416 = vld [vmem:[%s4 + $0x8] sm:$0xff]
          %v417 = vld [vmem:[%s4 + $0x10] sm:$0xff]
          %v418 = vld [vmem:[%s4 + $0x18] sm:$0xff]
          %v419 = vld [vmem:[%s6] sm:$0xff]
          %v420 = vld [vmem:[%s6 + $0x8] sm:$0xff]
          %v421 = vld [vmem:[%s6 + $0x10] sm:$0xff]
          %v422 = vld [vmem:[%s6 + $0x18] sm:$0xff]
          %v423 = vld [vmem:[%s5] sm:$0x1]
          %v425 = vlaneseq
          %v426 = vshrl.u32 %v425, 7
          %v427 = vsub.s32 0, %v426
          %v428 = vrot.slane %v423, %v427
          %vm430 = vcmask 261120
          %v432 = vsel %vm430, %v413, 0
          %v435 = vsel %vm430, %v414, 0
          %437 = vmatprep.subr.mxu0 0.0
          %438 = vmatpush1.msra.mxu0 %v415
          %439 = vmatprep.subr.mxu0 0.0
          %440 = vmatpush1.msra.mxu0 %v416
          %441 = vmatprep.subr.mxu0 0.0
          %442 = vmatpush1.msra.mxu0 %v417
          %443 = vmatprep.subr.mxu0 0.0
          %444 = vmatpush1.msra.mxu0 %v418
          %445 = vmatprep.subr.mxu0 0.0
          %446 = vmatpush1.msra.mxu0 0.0
          %447 = vmatprep.subr.mxu0 0.0
          %448 = vmatpush1.msra.mxu0 0.0
          %449 = vmatprep.subr.mxu0 0.0
          %450 = vmatpush1.msra.mxu0 0.0
          %451 = vmatprep.subr.mxu0 0.0
          %452 = vmatpush1.msra.mxu0 0.0
          %453 = vmatprep.subr.mxu0 0.0
          %454 = vmatpush1.msra.mxu0 0.0
          %455 = vmatprep.subr.mxu0 0.0
          %456 = vmatpush1.msra.mxu0 0.0
          %457 = vmatprep.subr.mxu0 0.0
          %458 = vmatpush1.msra.mxu0 0.0
          %459 = vmatprep.subr.mxu0 0.0
          %460 = vmatpush1.msra.mxu0 0.0
          %461 = vmatprep.subr.mxu0 0.0
          %462 = vmatpush1.msra.mxu0 0.0
          %463 = vmatprep.subr.mxu0 0.0
          %464 = vmatpush1.msra.mxu0 0.0
          %465 = vmatprep.subr.mxu0 0.0
          %466 = vmatpush1.msra.mxu0 0.0
          %467 = vmatprep.subr.mxu0 0.0
          %468 = vmatpush1.msra.mxu0 0.0
          %469 = vmatprep.subr.mxu0 0.0
          %470 = vmatpush1.msra.mxu0 0.0
          %471 = vmatprep.subr.mxu0 0.0
          %472 = vmatpush1.msra.mxu0 0.0
          %473 = vmatprep.subr.mxu0 0.0
          %474 = vmatpush1.msra.mxu0 0.0
          %475 = vmatprep.subr.mxu0 0.0
          %476 = vmatpush1.msra.mxu0 0.0
          %477 = vmatprep.subr.mxu0 0.0
          %478 = vmatpush1.msra.mxu0 0.0
          %479 = vmatprep.subr.mxu0 0.0
          %480 = vmatpush1.msra.mxu0 0.0
          %481 = vmatprep.subr.mxu0 0.0
          %482 = vmatpush1.msra.mxu0 0.0
          %483 = vmatprep.subr.mxu0 0.0
          %484 = vmatpush1.msra.mxu0 0.0
          %485 = vmatprep.subr.mxu0 0.0
          %486 = vmatpush1.msra.mxu0 0.0
          %487 = vmatprep.subr.mxu0 0.0
          %488 = vmatpush1.msra.mxu0 0.0
          %489 = vmatprep.subr.mxu0 0.0
          %490 = vmatpush1.msra.mxu0 0.0
          %491 = vmatprep.subr.mxu0 0.0
          %492 = vmatpush1.msra.mxu0 0.0
          %493 = vmatprep.subr.mxu0 0.0
          %494 = vmatpush1.msra.mxu0 0.0
          %495 = vmatprep.subr.mxu0 0.0
          %496 = vmatpush1.msra.mxu0 0.0
          %497 = vmatprep.subr.mxu0 0.0
          %498 = vmatpush1.msra.mxu0 0.0
          %499 = vmatprep.subr.mxu0 0.0
          %500 = vmatpush1.msra.mxu0 0.0
          %501 = vmatprep.mubr.f32.mxu0 0.0
          %502 = vmatmul.mubr.f32.gmra.mrb[0].mxu0 %v432
          %v503 = vpop.f32.mrb[0].mxu0
          %v504 = vadd.f32 %v428, %v503
          %v505 = vpop.f32.mrb[0].mxu0
          %506 = vmatprep.mubr.f32.mxu0 0.0
          %507 = vmatmul.mubr.f32.gmra.mrb[0].mxu0 %v435
          %v508 = vpop.f32.mrb[0].mxu0
          %v509 = vadd.f32 %v428, %v508
          %v510 = vpop.f32.mrb[0].mxu0
          %511 = vdwg.mxu0
          %vm512 = vcmask 64512
          %513 = vst.msk [vmem:[#allocation2] sm:$0xff] %vm512, %v504
          %vm514 = vcmask 60416
          %515 = vst.msk [vmem:[#allocation2 + $0x8] sm:$0xf] %vm514, %v509
          %v516 = vld [vmem:[%s7] sm:$0x1]
          %v518 = vlaneseq
          %v519 = vshrl.u32 %v518, 7
          %v520 = vsub.s32 0, %v519
          %v521 = vrot.slane %v516, %v520
          %523 = vmatprep.subr.mxu0 0.0
          %524 = vmatpush1.msra.mxu0 %v419
          %525 = vmatprep.subr.mxu0 0.0
          %526 = vmatpush1.msra.mxu0 %v420
          %527 = vmatprep.subr.mxu0 0.0
          %528 = vmatpush1.msra.mxu0 %v421
          %529 = vmatprep.subr.mxu0 0.0
          %530 = vmatpush1.msra.mxu0 %v422
          %531 = vmatprep.subr.mxu0 0.0
          %532 = vmatpush1.msra.mxu0 0.0
          %533 = vmatprep.subr.mxu0 0.0
          %534 = vmatpush1.msra.mxu0 0.0
          %535 = vmatprep.subr.mxu0 0.0
          %536 = vmatpush1.msra.mxu0 0.0
          %537 = vmatprep.subr.mxu0 0.0
          %538 = vmatpush1.msra.mxu0 0.0
          %539 = vmatprep.subr.mxu0 0.0
          %540 = vmatpush1.msra.mxu0 0.0
          %541 = vmatprep.subr.mxu0 0.0
          %542 = vmatpush1.msra.mxu0 0.0
          %543 = vmatprep.subr.mxu0 0.0
          %544 = vmatpush1.msra.mxu0 0.0
          %545 = vmatprep.subr.mxu0 0.0
          %546 = vmatpush1.msra.mxu0 0.0
          %547 = vmatprep.subr.mxu0 0.0
          %548 = vmatpush1.msra.mxu0 0.0
          %549 = vmatprep.subr.mxu0 0.0
          %550 = vmatpush1.msra.mxu0 0.0
          %551 = vmatprep.subr.mxu0 0.0
          %552 = vmatpush1.msra.mxu0 0.0
          %553 = vmatprep.subr.mxu0 0.0
          %554 = vmatpush1.msra.mxu0 0.0
          %555 = vmatprep.subr.mxu0 0.0
          %556 = vmatpush1.msra.mxu0 0.0
          %557 = vmatprep.subr.mxu0 0.0
          %558 = vmatpush1.msra.mxu0 0.0
          %559 = vmatprep.subr.mxu0 0.0
          %560 = vmatpush1.msra.mxu0 0.0
          %561 = vmatprep.subr.mxu0 0.0
          %562 = vmatpush1.msra.mxu0 0.0
          %563 = vmatprep.subr.mxu0 0.0
          %564 = vmatpush1.msra.mxu0 0.0
          %565 = vmatprep.subr.mxu0 0.0
          %566 = vmatpush1.msra.mxu0 0.0
          %567 = vmatprep.subr.mxu0 0.0
          %568 = vmatpush1.msra.mxu0 0.0
          %569 = vmatprep.subr.mxu0 0.0
          %570 = vmatpush1.msra.mxu0 0.0
          %571 = vmatprep.subr.mxu0 0.0
          %572 = vmatpush1.msra.mxu0 0.0
          %573 = vmatprep.subr.mxu0 0.0
          %574 = vmatpush1.msra.mxu0 0.0
          %575 = vmatprep.subr.mxu0 0.0
          %576 = vmatpush1.msra.mxu0 0.0
          %577 = vmatprep.subr.mxu0 0.0
          %578 = vmatpush1.msra.mxu0 0.0
          %579 = vmatprep.subr.mxu0 0.0
          %580 = vmatpush1.msra.mxu0 0.0
          %581 = vmatprep.subr.mxu0 0.0
          %582 = vmatpush1.msra.mxu0 0.0
          %583 = vmatprep.subr.mxu0 0.0
          %584 = vmatpush1.msra.mxu0 0.0
          %585 = vmatprep.subr.mxu0 0.0
          %586 = vmatpush1.msra.mxu0 0.0
          %587 = vmatprep.mubr.f32.mxu0 0.0
          %588 = vmatmul.mubr.f32.gmra.mrb[0].mxu0 %v432
          %v589 = vpop.f32.mrb[0].mxu0
          %v590 = vadd.f32 %v521, %v589
          %v591 = vpop.f32.mrb[0].mxu0
          %592 = vmatprep.mubr.f32.mxu0 0.0
          %593 = vmatmul.mubr.f32.gmra.mrb[0].mxu0 %v435
          %v594 = vpop.f32.mrb[0].mxu0
          %v595 = vadd.f32 %v521, %v594
          %v596 = vpop.f32.mrb[0].mxu0
          %597 = vdwg.mxu0
          %598 = vst.msk [vmem:[#allocation3] sm:$0xff] %vm512, %v590
          %599 = vst.msk [vmem:[#allocation3 + $0x8] sm:$0xf] %vm514, %v595
          %s600 = scalar_lea.vmem %s4, 32
          %v601 = vld [vmem:[%s600] sm:$0xff]
          %v602 = vld [vmem:[%s600 + $0x8] sm:$0xff]
          %v603 = vld [vmem:[%s600 + $0x10] sm:$0xff]
          %v604 = vld [vmem:[%s600 + $0x18] sm:$0xff]
          %s605 = scalar_lea.vmem %s6, 32
          %v606 = vld [vmem:[%s605] sm:$0xff]
          %v607 = vld [vmem:[%s605 + $0x8] sm:$0xff]
          %v608 = vld [vmem:[%s605 + $0x10] sm:$0xff]
          %v609 = vld [vmem:[%s605 + $0x18] sm:$0xff]
          %s610 = scalar_lea.vmem %s5, 1
          %v611 = vld [vmem:[%s610] sm:$0x1]
          %v613 = vlaneseq
          %v614 = vshrl.u32 %v613, 7
          %v615 = vsub.s32 0, %v614
          %v616 = vrot.slane %v611, %v615
          %618 = vmatprep.subr.mxu0 0.0
          %619 = vmatpush1.msra.mxu0 %v601
          %620 = vmatprep.subr.mxu0 0.0
          %621 = vmatpush1.msra.mxu0 %v602
          %622 = vmatprep.subr.mxu0 0.0
          %623 = vmatpush1.msra.mxu0 %v603
          %624 = vmatprep.subr.mxu0 0.0
          %625 = vmatpush1.msra.mxu0 %v604
          %626 = vmatprep.subr.mxu0 0.0
          %627 = vmatpush1.msra.mxu0 0.0
          %628 = vmatprep.subr.mxu0 0.0
          %629 = vmatpush1.msra.mxu0 0.0
          %630 = vmatprep.subr.mxu0 0.0
          %631 = vmatpush1.msra.mxu0 0.0
          %632 = vmatprep.subr.mxu0 0.0
          %633 = vmatpush1.msra.mxu0 0.0
          %634 = vmatprep.subr.mxu0 0.0
          %635 = vmatpush1.msra.mxu0 0.0
          %636 = vmatprep.subr.mxu0 0.0
          %637 = vmatpush1.msra.mxu0 0.0
          %638 = vmatprep.subr.mxu0 0.0
          %639 = vmatpush1.msra.mxu0 0.0
          %640 = vmatprep.subr.mxu0 0.0
          %641 = vmatpush1.msra.mxu0 0.0
          %642 = vmatprep.subr.mxu0 0.0
          %643 = vmatpush1.msra.mxu0 0.0
          %644 = vmatprep.subr.mxu0 0.0
          %645 = vmatpush1.msra.mxu0 0.0
          %646 = vmatprep.subr.mxu0 0.0
          %647 = vmatpush1.msra.mxu0 0.0
          %648 = vmatprep.subr.mxu0 0.0
          %649 = vmatpush1.msra.mxu0 0.0
          %650 = vmatprep.subr.mxu0 0.0
          %651 = vmatpush1.msra.mxu0 0.0
          %652 = vmatprep.subr.mxu0 0.0
          %653 = vmatpush1.msra.mxu0 0.0
          %654 = vmatprep.subr.mxu0 0.0
          %655 = vmatpush1.msra.mxu0 0.0
          %656 = vmatprep.subr.mxu0 0.0
          %657 = vmatpush1.msra.mxu0 0.0
          %658 = vmatprep.subr.mxu0 0.0
          %659 = vmatpush1.msra.mxu0 0.0
          %660 = vmatprep.subr.mxu0 0.0
          %661 = vmatpush1.msra.mxu0 0.0
          %662 = vmatprep.subr.mxu0 0.0
          %663 = vmatpush1.msra.mxu0 0.0
          %664 = vmatprep.subr.mxu0 0.0
          %665 = vmatpush1.msra.mxu0 0.0
          %666 = vmatprep.subr.mxu0 0.0
          %667 = vmatpush1.msra.mxu0 0.0
          %668 = vmatprep.subr.mxu0 0.0
          %669 = vmatpush1.msra.mxu0 0.0
          %670 = vmatprep.subr.mxu0 0.0
          %671 = vmatpush1.msra.mxu0 0.0
          %672 = vmatprep.subr.mxu0 0.0
          %673 = vmatpush1.msra.mxu0 0.0
          %674 = vmatprep.subr.mxu0 0.0
          %675 = vmatpush1.msra.mxu0 0.0
          %676 = vmatprep.subr.mxu0 0.0
          %677 = vmatpush1.msra.mxu0 0.0
          %678 = vmatprep.subr.mxu0 0.0
          %679 = vmatpush1.msra.mxu0 0.0
          %680 = vmatprep.subr.mxu0 0.0
          %681 = vmatpush1.msra.mxu0 0.0
          %682 = vmatprep.mubr.f32.mxu0 0.0
          %683 = vmatmul.mubr.f32.gmra.mrb[0].mxu0 %v432
          %v684 = vpop.f32.mrb[0].mxu0
          %v685 = vadd.f32 %v616, %v684
          %v686 = vpop.f32.mrb[0].mxu0
          %687 = vmatprep.mubr.f32.mxu0 0.0
          %688 = vmatmul.mubr.f32.gmra.mrb[0].mxu0 %v435
          %v689 = vpop.f32.mrb[0].mxu0
          %v690 = vadd.f32 %v616, %v689
          %v691 = vpop.f32.mrb[0].mxu0
          %692 = vdwg.mxu0
          %s693 = scalar_lea.vmem [#allocation2], 16
          %694 = vst.msk [vmem:[%s693] sm:$0xff] %vm512, %v685
          %695 = vst.msk [vmem:[%s693 + $0x8] sm:$0xf] %vm514, %v690
          %s696 = scalar_lea.vmem %s7, 1
          %v697 = vld [vmem:[%s696] sm:$0x1]
          %v699 = vlaneseq
          %v700 = vshrl.u32 %v699, 7
          %v701 = vsub.s32 0, %v700
          %v702 = vrot.slane %v697, %v701
          %704 = vmatprep.subr.mxu0 0.0
          %705 = vmatpush1.msra.mxu0 %v606
          %706 = vmatprep.subr.mxu0 0.0
          %707 = vmatpush1.msra.mxu0 %v607
          %708 = vmatprep.subr.mxu0 0.0
          %709 = vmatpush1.msra.mxu0 %v608
          %710 = vmatprep.subr.mxu0 0.0
          %711 = vmatpush1.msra.mxu0 %v609
          %712 = vmatprep.subr.mxu0 0.0
          %713 = vmatpush1.msra.mxu0 0.0
          %714 = vmatprep.subr.mxu0 0.0
          %715 = vmatpush1.msra.mxu0 0.0
          %716 = vmatprep.subr.mxu0 0.0
          %717 = vmatpush1.msra.mxu0 0.0
          %718 = vmatprep.subr.mxu0 0.0
          %719 = vmatpush1.msra.mxu0 0.0
          %720 = vmatprep.subr.mxu0 0.0
          %721 = vmatpush1.msra.mxu0 0.0
          %722 = vmatprep.subr.mxu0 0.0
          %723 = vmatpush1.msra.mxu0 0.0
          %724 = vmatprep.subr.mxu0 0.0
          %725 = vmatpush1.msra.mxu0 0.0
          %726 = vmatprep.subr.mxu0 0.0
          %727 = vmatpush1.msra.mxu0 0.0
          %728 = vmatprep.subr.mxu0 0.0
          %729 = vmatpush1.msra.mxu0 0.0
          %730 = vmatprep.subr.mxu0 0.0
          %731 = vmatpush1.msra.mxu0 0.0
          %732 = vmatprep.subr.mxu0 0.0
          %733 = vmatpush1.msra.mxu0 0.0
          %734 = vmatprep.subr.mxu0 0.0
          %735 = vmatpush1.msra.mxu0 0.0
          %736 = vmatprep.subr.mxu0 0.0
          %737 = vmatpush1.msra.mxu0 0.0
          %738 = vmatprep.subr.mxu0 0.0
          %739 = vmatpush1.msra.mxu0 0.0
          %740 = vmatprep.subr.mxu0 0.0
          %741 = vmatpush1.msra.mxu0 0.0
          %742 = vmatprep.subr.mxu0 0.0
          %743 = vmatpush1.msra.mxu0 0.0
          %744 = vmatprep.subr.mxu0 0.0
          %745 = vmatpush1.msra.mxu0 0.0
          %746 = vmatprep.subr.mxu0 0.0
          %747 = vmatpush1.msra.mxu0 0.0
          %748 = vmatprep.subr.mxu0 0.0
          %749 = vmatpush1.msra.mxu0 0.0
          %750 = vmatprep.subr.mxu0 0.0
          %751 = vmatpush1.msra.mxu0 0.0
          %752 = vmatprep.subr.mxu0 0.0
          %753 = vmatpush1.msra.mxu0 0.0
          %754 = vmatprep.subr.mxu0 0.0
          %755 = vmatpush1.msra.mxu0 0.0
          %756 = vmatprep.subr.mxu0 0.0
          %757 = vmatpush1.msra.mxu0 0.0
          %758 = vmatprep.subr.mxu0 0.0
          %759 = vmatpush1.msra.mxu0 0.0
          %760 = vmatprep.subr.mxu0 0.0
          %761 = vmatpush1.msra.mxu0 0.0
          %762 = vmatprep.subr.mxu0 0.0
          %763 = vmatpush1.msra.mxu0 0.0
          %764 = vmatprep.subr.mxu0 0.0
          %765 = vmatpush1.msra.mxu0 0.0
          %766 = vmatprep.subr.mxu0 0.0
          %767 = vmatpush1.msra.mxu0 0.0
          %768 = vmatprep.mubr.f32.mxu0 0.0
          %769 = vmatmul.mubr.f32.gmra.mrb[0].mxu0 %v432
          %v770 = vpop.f32.mrb[0].mxu0
          %v771 = vadd.f32 %v702, %v770
          %v772 = vpop.f32.mrb[0].mxu0
          %773 = vmatprep.mubr.f32.mxu0 0.0
          %774 = vmatmul.mubr.f32.gmra.mrb[0].mxu0 %v435
          %v775 = vpop.f32.mrb[0].mxu0
          %v776 = vadd.f32 %v702, %v775
          %v777 = vpop.f32.mrb[0].mxu0
          %778 = vdwg.mxu0
          %s779 = scalar_lea.vmem [#allocation3], 16
          %780 = vst.msk [vmem:[%s779] sm:$0xff] %vm512, %v771
          %781 = vst.msk [vmem:[%s779 + $0x8] sm:$0xf] %vm514, %v776
          %s782 = scalar_lea.vmem %s4, 64
          %v783 = vld [vmem:[%s782] sm:$0xff]
          %v784 = vld [vmem:[%s782 + $0x8] sm:$0xff]
          %v785 = vld [vmem:[%s782 + $0x10] sm:$0xff]
          %v786 = vld [vmem:[%s782 + $0x18] sm:$0xff]
          %s787 = scalar_lea.vmem %s6, 64
          %v788 = vld [vmem:[%s787] sm:$0xff]
          %v789 = vld [vmem:[%s787 + $0x8] sm:$0xff]
          %v790 = vld [vmem:[%s787 + $0x10] sm:$0xff]
          %v791 = vld [vmem:[%s787 + $0x18] sm:$0xff]
          %s792 = scalar_lea.vmem %s5, 2
          %v793 = vld [vmem:[%s792] sm:$0x1]
          %v795 = vlaneseq
          %v796 = vshrl.u32 %v795, 7
          %v797 = vsub.s32 0, %v796
          %v798 = vrot.slane %v793, %v797
          %800 = vmatprep.subr.mxu0 0.0
          %801 = vmatpush1.msra.mxu0 %v783
          %802 = vmatprep.subr.mxu0 0.0
          %803 = vmatpush1.msra.mxu0 %v784
          %804 = vmatprep.subr.mxu0 0.0
          %805 = vmatpush1.msra.mxu0 %v785
          %806 = vmatprep.subr.mxu0 0.0
          %807 = vmatpush1.msra.mxu0 %v786
          %808 = vmatprep.subr.mxu0 0.0
          %809 = vmatpush1.msra.mxu0 0.0
          %810 = vmatprep.subr.mxu0 0.0
          %811 = vmatpush1.msra.mxu0 0.0
          %812 = vmatprep.subr.mxu0 0.0
          %813 = vmatpush1.msra.mxu0 0.0
          %814 = vmatprep.subr.mxu0 0.0
          %815 = vmatpush1.msra.mxu0 0.0
          %816 = vmatprep.subr.mxu0 0.0
          %817 = vmatpush1.msra.mxu0 0.0
          %818 = vmatprep.subr.mxu0 0.0
          %819 = vmatpush1.msra.mxu0 0.0
          %820 = vmatprep.subr.mxu0 0.0
          %821 = vmatpush1.msra.mxu0 0.0
          %822 = vmatprep.subr.mxu0 0.0
          %823 = vmatpush1.msra.mxu0 0.0
          %824 = vmatprep.subr.mxu0 0.0
          %825 = vmatpush1.msra.mxu0 0.0
          %826 = vmatprep.subr.mxu0 0.0
          %827 = vmatpush1.msra.mxu0 0.0
          %828 = vmatprep.subr.mxu0 0.0
          %829 = vmatpush1.msra.mxu0 0.0
          %830 = vmatprep.subr.mxu0 0.0
          %831 = vmatpush1.msra.mxu0 0.0
          %832 = vmatprep.subr.mxu0 0.0
          %833 = vmatpush1.msra.mxu0 0.0
          %834 = vmatprep.subr.mxu0 0.0
          %835 = vmatpush1.msra.mxu0 0.0
          %836 = vmatprep.subr.mxu0 0.0
          %837 = vmatpush1.msra.mxu0 0.0
          %838 = vmatprep.subr.mxu0 0.0
          %839 = vmatpush1.msra.mxu0 0.0
          %840 = vmatprep.subr.mxu0 0.0
          %841 = vmatpush1.msra.mxu0 0.0
          %842 = vmatprep.subr.mxu0 0.0
          %843 = vmatpush1.msra.mxu0 0.0
          %844 = vmatprep.subr.mxu0 0.0
          %845 = vmatpush1.msra.mxu0 0.0
          %846 = vmatprep.subr.mxu0 0.0
          %847 = vmatpush1.msra.mxu0 0.0
          %848 = vmatprep.subr.mxu0 0.0
          %849 = vmatpush1.msra.mxu0 0.0
          %850 = vmatprep.subr.mxu0 0.0
          %851 = vmatpush1.msra.mxu0 0.0
          %852 = vmatprep.subr.mxu0 0.0
          %853 = vmatpush1.msra.mxu0 0.0
          %854 = vmatprep.subr.mxu0 0.0
          %855 = vmatpush1.msra.mxu0 0.0
          %856 = vmatprep.subr.mxu0 0.0
          %857 = vmatpush1.msra.mxu0 0.0
          %858 = vmatprep.subr.mxu0 0.0
          %859 = vmatpush1.msra.mxu0 0.0
          %860 = vmatprep.subr.mxu0 0.0
          %861 = vmatpush1.msra.mxu0 0.0
          %862 = vmatprep.subr.mxu0 0.0
          %863 = vmatpush1.msra.mxu0 0.0
          %864 = vmatprep.mubr.f32.mxu0 0.0
          %865 = vmatmul.mubr.f32.gmra.mrb[0].mxu0 %v432
          %v866 = vpop.f32.mrb[0].mxu0
          %v867 = vadd.f32 %v798, %v866
          %v868 = vpop.f32.mrb[0].mxu0
          %869 = vmatprep.mubr.f32.mxu0 0.0
          %870 = vmatmul.mubr.f32.gmra.mrb[0].mxu0 %v435
          %v871 = vpop.f32.mrb[0].mxu0
          %v872 = vadd.f32 %v798, %v871
          %v873 = vpop.f32.mrb[0].mxu0
          %874 = vdwg.mxu0
          %s875 = scalar_lea.vmem [#allocation2], 32
          %876 = vst.msk [vmem:[%s875] sm:$0xff] %vm512, %v867
          %877 = vst.msk [vmem:[%s875 + $0x8] sm:$0xf] %vm514, %v872
          %s878 = scalar_lea.vmem %s7, 2
          %v879 = vld [vmem:[%s878] sm:$0x1]
          %v881 = vlaneseq
          %v882 = vshrl.u32 %v881, 7
          %v883 = vsub.s32 0, %v882
          %v884 = vrot.slane %v879, %v883
          %886 = vmatprep.subr.mxu0 0.0
          %887 = vmatpush1.msra.mxu0 %v788
          %888 = vmatprep.subr.mxu0 0.0
          %889 = vmatpush1.msra.mxu0 %v789
          %890 = vmatprep.subr.mxu0 0.0
          %891 = vmatpush1.msra.mxu0 %v790
          %892 = vmatprep.subr.mxu0 0.0
          %893 = vmatpush1.msra.mxu0 %v791
          %894 = vmatprep.subr.mxu0 0.0
          %895 = vmatpush1.msra.mxu0 0.0
          %896 = vmatprep.subr.mxu0 0.0
          %897 = vmatpush1.msra.mxu0 0.0
          %898 = vmatprep.subr.mxu0 0.0
          %899 = vmatpush1.msra.mxu0 0.0
          %900 = vmatprep.subr.mxu0 0.0
          %901 = vmatpush1.msra.mxu0 0.0
          %902 = vmatprep.subr.mxu0 0.0
          %903 = vmatpush1.msra.mxu0 0.0
          %904 = vmatprep.subr.mxu0 0.0
          %905 = vmatpush1.msra.mxu0 0.0
          %906 = vmatprep.subr.mxu0 0.0
          %907 = vmatpush1.msra.mxu0 0.0
          %908 = vmatprep.subr.mxu0 0.0
          %909 = vmatpush1.msra.mxu0 0.0
          %910 = vmatprep.subr.mxu0 0.0
          %911 = vmatpush1.msra.mxu0 0.0
          %912 = vmatprep.subr.mxu0 0.0
          %913 = vmatpush1.msra.mxu0 0.0
          %914 = vmatprep.subr.mxu0 0.0
          %915 = vmatpush1.msra.mxu0 0.0
          %916 = vmatprep.subr.mxu0 0.0
          %917 = vmatpush1.msra.mxu0 0.0
          %918 = vmatprep.subr.mxu0 0.0
          %919 = vmatpush1.msra.mxu0 0.0
          %920 = vmatprep.subr.mxu0 0.0
          %921 = vmatpush1.msra.mxu0 0.0
          %922 = vmatprep.subr.mxu0 0.0
          %923 = vmatpush1.msra.mxu0 0.0
          %924 = vmatprep.subr.mxu0 0.0
          %925 = vmatpush1.msra.mxu0 0.0
          %926 = vmatprep.subr.mxu0 0.0
          %927 = vmatpush1.msra.mxu0 0.0
          %928 = vmatprep.subr.mxu0 0.0
          %929 = vmatpush1.msra.mxu0 0.0
          %930 = vmatprep.subr.mxu0 0.0
          %931 = vmatpush1.msra.mxu0 0.0
          %932 = vmatprep.subr.mxu0 0.0
          %933 = vmatpush1.msra.mxu0 0.0
          %934 = vmatprep.subr.mxu0 0.0
          %935 = vmatpush1.msra.mxu0 0.0
          %936 = vmatprep.subr.mxu0 0.0
          %937 = vmatpush1.msra.mxu0 0.0
          %938 = vmatprep.subr.mxu0 0.0
          %939 = vmatpush1.msra.mxu0 0.0
          %940 = vmatprep.subr.mxu0 0.0
          %941 = vmatpush1.msra.mxu0 0.0
          %942 = vmatprep.subr.mxu0 0.0
          %943 = vmatpush1.msra.mxu0 0.0
          %944 = vmatprep.subr.mxu0 0.0
          %945 = vmatpush1.msra.mxu0 0.0
          %946 = vmatprep.subr.mxu0 0.0
          %947 = vmatpush1.msra.mxu0 0.0
          %948 = vmatprep.subr.mxu0 0.0
          %949 = vmatpush1.msra.mxu0 0.0
          %950 = vmatprep.mubr.f32.mxu0 0.0
          %951 = vmatmul.mubr.f32.gmra.mrb[0].mxu0 %v432
          %v952 = vpop.f32.mrb[0].mxu0
          %v953 = vadd.f32 %v884, %v952
          %v954 = vpop.f32.mrb[0].mxu0
          %955 = vmatprep.mubr.f32.mxu0 0.0
          %956 = vmatmul.mubr.f32.gmra.mrb[0].mxu0 %v435
          %v957 = vpop.f32.mrb[0].mxu0
          %v958 = vadd.f32 %v884, %v957
          %v959 = vpop.f32.mrb[0].mxu0
          %960 = vdwg.mxu0
          %s961 = scalar_lea.vmem [#allocation3], 32
          %962 = vst.msk [vmem:[%s961] sm:$0xff] %vm512, %v953
          %963 = vst.msk [vmem:[%s961 + $0x8] sm:$0xf] %vm514, %v958
          %s964 = scalar_lea.vmem %s4, 96
          %v965 = vld [vmem:[%s964] sm:$0xff]
          %v966 = vld [vmem:[%s964 + $0x8] sm:$0xff]
          %v967 = vld [vmem:[%s964 + $0x10] sm:$0xff]
          %v968 = vld [vmem:[%s964 + $0x18] sm:$0xff]
          %s969 = scalar_lea.vmem %s6, 96
          %v970 = vld [vmem:[%s969] sm:$0xff]
          %v971 = vld [vmem:[%s969 + $0x8] sm:$0xff]
          %v972 = vld [vmem:[%s969 + $0x10] sm:$0xff]
          %v973 = vld [vmem:[%s969 + $0x18] sm:$0xff]
          %s974 = scalar_lea.vmem %s5, 3
          %v975 = vld [vmem:[%s974] sm:$0x1]
          %v977 = vlaneseq
          %v978 = vshrl.u32 %v977, 7
          %v979 = vsub.s32 0, %v978
          %v980 = vrot.slane %v975, %v979
          %982 = vmatprep.subr.mxu0 0.0
          %983 = vmatpush1.msra.mxu0 %v965
          %984 = vmatprep.subr.mxu0 0.0
          %985 = vmatpush1.msra.mxu0 %v966
          %986 = vmatprep.subr.mxu0 0.0
          %987 = vmatpush1.msra.mxu0 %v967
          %988 = vmatprep.subr.mxu0 0.0
          %989 = vmatpush1.msra.mxu0 %v968
          %990 = vmatprep.subr.mxu0 0.0
          %991 = vmatpush1.msra.mxu0 0.0
          %992 = vmatprep.subr.mxu0 0.0
          %993 = vmatpush1.msra.mxu0 0.0
          %994 = vmatprep.subr.mxu0 0.0
          %995 = vmatpush1.msra.mxu0 0.0
          %996 = vmatprep.subr.mxu0 0.0
          %997 = vmatpush1.msra.mxu0 0.0
          %998 = vmatprep.subr.mxu0 0.0
          %999 = vmatpush1.msra.mxu0 0.0
          %1000 = vmatprep.subr.mxu0 0.0
          %1001 = vmatpush1.msra.mxu0 0.0
          %1002 = vmatprep.subr.mxu0 0.0
          %1003 = vmatpush1.msra.mxu0 0.0
          %1004 = vmatprep.subr.mxu0 0.0
          %1005 = vmatpush1.msra.mxu0 0.0
          %1006 = vmatprep.subr.mxu0 0.0
          %1007 = vmatpush1.msra.mxu0 0.0
          %1008 = vmatprep.subr.mxu0 0.0
          %1009 = vmatpush1.msra.mxu0 0.0
          %1010 = vmatprep.subr.mxu0 0.0
          %1011 = vmatpush1.msra.mxu0 0.0
          %1012 = vmatprep.subr.mxu0 0.0
          %1013 = vmatpush1.msra.mxu0 0.0
          %1014 = vmatprep.subr.mxu0 0.0
          %1015 = vmatpush1.msra.mxu0 0.0
          %1016 = vmatprep.subr.mxu0 0.0
          %1017 = vmatpush1.msra.mxu0 0.0
          %1018 = vmatprep.subr.mxu0 0.0
          %1019 = vmatpush1.msra.mxu0 0.0
          %1020 = vmatprep.subr.mxu0 0.0
          %1021 = vmatpush1.msra.mxu0 0.0
          %1022 = vmatprep.subr.mxu0 0.0
          %1023 = vmatpush1.msra.mxu0 0.0
          %1024 = vmatprep.subr.mxu0 0.0
          %1025 = vmatpush1.msra.mxu0 0.0
          %1026 = vmatprep.subr.mxu0 0.0
          %1027 = vmatpush1.msra.mxu0 0.0
          %1028 = vmatprep.subr.mxu0 0.0
          %1029 = vmatpush1.msra.mxu0 0.0
          %1030 = vmatprep.subr.mxu0 0.0
          %1031 = vmatpush1.msra.mxu0 0.0
          %1032 = vmatprep.subr.mxu0 0.0
          %1033 = vmatpush1.msra.mxu0 0.0
          %1034 = vmatprep.subr.mxu0 0.0
          %1035 = vmatpush1.msra.mxu0 0.0
          %1036 = vmatprep.subr.mxu0 0.0
          %1037 = vmatpush1.msra.mxu0 0.0
          %1038 = vmatprep.subr.mxu0 0.0
          %1039 = vmatpush1.msra.mxu0 0.0
          %1040 = vmatprep.subr.mxu0 0.0
          %1041 = vmatpush1.msra.mxu0 0.0
          %1042 = vmatprep.subr.mxu0 0.0
          %1043 = vmatpush1.msra.mxu0 0.0
          %1044 = vmatprep.subr.mxu0 0.0
          %1045 = vmatpush1.msra.mxu0 0.0
          %1046 = vmatprep.mubr.f32.mxu0 0.0
          %1047 = vmatmul.mubr.f32.gmra.mrb[0].mxu0 %v432
          %v1048 = vpop.f32.mrb[0].mxu0
          %v1049 = vadd.f32 %v980, %v1048
          %v1050 = vpop.f32.mrb[0].mxu0
          %1051 = vmatprep.mubr.f32.mxu0 0.0
          %1052 = vmatmul.mubr.f32.gmra.mrb[0].mxu0 %v435
          %v1053 = vpop.f32.mrb[0].mxu0
          %v1054 = vadd.f32 %v980, %v1053
          %v1055 = vpop.f32.mrb[0].mxu0
          %1056 = vdwg.mxu0
          %s1057 = scalar_lea.vmem [#allocation2], 48
          %1058 = vst.msk [vmem:[%s1057] sm:$0xff] %vm512, %v1049
          %1059 = vst.msk [vmem:[%s1057 + $0x8] sm:$0xf] %vm514, %v1054
          %s1060 = scalar_lea.vmem %s7, 3
          %v1061 = vld [vmem:[%s1060] sm:$0x1]
          %v1063 = vlaneseq
          %v1064 = vshrl.u32 %v1063, 7
          %v1065 = vsub.s32 0, %v1064
          %v1066 = vrot.slane %v1061, %v1065
          %1068 = vmatprep.subr.mxu0 0.0
          %1069 = vmatpush1.msra.mxu0 %v970
          %1070 = vmatprep.subr.mxu0 0.0
          %1071 = vmatpush1.msra.mxu0 %v971
          %1072 = vmatprep.subr.mxu0 0.0
          %1073 = vmatpush1.msra.mxu0 %v972
          %1074 = vmatprep.subr.mxu0 0.0
          %1075 = vmatpush1.msra.mxu0 %v973
          %1076 = vmatprep.subr.mxu0 0.0
          %1077 = vmatpush1.msra.mxu0 0.0
          %1078 = vmatprep.subr.mxu0 0.0
          %1079 = vmatpush1.msra.mxu0 0.0
          %1080 = vmatprep.subr.mxu0 0.0
          %1081 = vmatpush1.msra.mxu0 0.0
          %1082 = vmatprep.subr.mxu0 0.0
          %1083 = vmatpush1.msra.mxu0 0.0
          %1084 = vmatprep.subr.mxu0 0.0
          %1085 = vmatpush1.msra.mxu0 0.0
          %1086 = vmatprep.subr.mxu0 0.0
          %1087 = vmatpush1.msra.mxu0 0.0
          %1088 = vmatprep.subr.mxu0 0.0
          %1089 = vmatpush1.msra.mxu0 0.0
          %1090 = vmatprep.subr.mxu0 0.0
          %1091 = vmatpush1.msra.mxu0 0.0
          %1092 = vmatprep.subr.mxu0 0.0
          %1093 = vmatpush1.msra.mxu0 0.0
          %1094 = vmatprep.subr.mxu0 0.0
          %1095 = vmatpush1.msra.mxu0 0.0
          %1096 = vmatprep.subr.mxu0 0.0
          %1097 = vmatpush1.msra.mxu0 0.0
          %1098 = vmatprep.subr.mxu0 0.0
          %1099 = vmatpush1.msra.mxu0 0.0
          %1100 = vmatprep.subr.mxu0 0.0
          %1101 = vmatpush1.msra.mxu0 0.0
          %1102 = vmatprep.subr.mxu0 0.0
          %1103 = vmatpush1.msra.mxu0 0.0
          %1104 = vmatprep.subr.mxu0 0.0
          %1105 = vmatpush1.msra.mxu0 0.0
          %1106 = vmatprep.subr.mxu0 0.0
          %1107 = vmatpush1.msra.mxu0 0.0
          %1108 = vmatprep.subr.mxu0 0.0
          %1109 = vmatpush1.msra.mxu0 0.0
          %1110 = vmatprep.subr.mxu0 0.0
          %1111 = vmatpush1.msra.mxu0 0.0
          %1112 = vmatprep.subr.mxu0 0.0
          %1113 = vmatpush1.msra.mxu0 0.0
          %1114 = vmatprep.subr.mxu0 0.0
          %1115 = vmatpush1.msra.mxu0 0.0
          %1116 = vmatprep.subr.mxu0 0.0
          %1117 = vmatpush1.msra.mxu0 0.0
          %1118 = vmatprep.subr.mxu0 0.0
          %1119 = vmatpush1.msra.mxu0 0.0
          %1120 = vmatprep.subr.mxu0 0.0
          %1121 = vmatpush1.msra.mxu0 0.0
          %1122 = vmatprep.subr.mxu0 0.0
          %1123 = vmatpush1.msra.mxu0 0.0
          %1124 = vmatprep.subr.mxu0 0.0
          %1125 = vmatpush1.msra.mxu0 0.0
          %1126 = vmatprep.subr.mxu0 0.0
          %1127 = vmatpush1.msra.mxu0 0.0
          %1128 = vmatprep.subr.mxu0 0.0
          %1129 = vmatpush1.msra.mxu0 0.0
          %1130 = vmatprep.subr.mxu0 0.0
          %1131 = vmatpush1.msra.mxu0 0.0
          %1132 = vmatprep.mubr.f32.mxu0 0.0
          %1133 = vmatmul.mubr.f32.gmra.mrb[0].mxu0 %v432
          %v1134 = vpop.f32.mrb[0].mxu0
          %v1135 = vadd.f32 %v1066, %v1134
          %v1136 = vpop.f32.mrb[0].mxu0
          %1137 = vmatprep.mubr.f32.mxu0 0.0
          %1138 = vmatmul.mubr.f32.gmra.mrb[0].mxu0 %v435
          %v1139 = vpop.f32.mrb[0].mxu0
          %v1140 = vadd.f32 %v1066, %v1139
          %v1141 = vpop.f32.mrb[0].mxu0
          %1142 = vdwg.mxu0
          %s1143 = scalar_lea.vmem [#allocation3], 48
          %1144 = vst.msk [vmem:[%s1143] sm:$0xff] %vm512, %v1135
          %1145 = vst.msk [vmem:[%s1143 + $0x8] sm:$0xf] %vm514, %v1140
        $region64: #{tpu_custom_call.1} parent=59 // pred_fallthru
          _
        %v1146 = vld [vmem:[%s401] sm:$0xff]
        %v1147 = vld [vmem:[%s401 + $0x8] sm:$0xff]
        %v1148 = vld [vmem:[%s2] sm:$0xff]
        %v1149 = vld [vmem:[%s2 + $0x8] sm:$0xff]
        %v1150 = vld [vmem:[%s2 + $0x10] sm:$0xff]
        %v1151 = vld [vmem:[%s2 + $0x18] sm:$0xff]
        %v1152 = vld [vmem:[%s3] sm:$0x1]
        %v1154 = vlaneseq
        %v1155 = vshrl.u32 %v1154, 7
        %v1156 = vsub.s32 0, %v1155
        %v1157 = vrot.slane %v1152, %v1156
        %vm1159 = vcmask 261120
        %v1161 = vsel %vm1159, %v1146, 0
        %v1164 = vsel %vm1159, %v1147, 0
        %1166 = vmatprep.subr.mxu0 0.0
        %1167 = vmatpush1.msra.mxu0 %v1148
        %1168 = vmatprep.subr.mxu0 0.0
        %1169 = vmatpush1.msra.mxu0 %v1149
        %1170 = vmatprep.subr.mxu0 0.0
        %1171 = vmatpush1.msra.mxu0 %v1150
        %1172 = vmatprep.subr.mxu0 0.0
        %1173 = vmatpush1.msra.mxu0 %v1151
        %1174 = vmatprep.subr.mxu0 0.0
        %1175 = vmatpush1.msra.mxu0 0.0
        %1176 = vmatprep.subr.mxu0 0.0
        %1177 = vmatpush1.msra.mxu0 0.0
        %1178 = vmatprep.subr.mxu0 0.0
        %1179 = vmatpush1.msra.mxu0 0.0
        %1180 = vmatprep.subr.mxu0 0.0
        %1181 = vmatpush1.msra.mxu0 0.0
        %1182 = vmatprep.subr.mxu0 0.0
        %1183 = vmatpush1.msra.mxu0 0.0
        %1184 = vmatprep.subr.mxu0 0.0
        %1185 = vmatpush1.msra.mxu0 0.0
        %1186 = vmatprep.subr.mxu0 0.0
        %1187 = vmatpush1.msra.mxu0 0.0
        %1188 = vmatprep.subr.mxu0 0.0
        %1189 = vmatpush1.msra.mxu0 0.0
        %1190 = vmatprep.subr.mxu0 0.0
        %1191 = vmatpush1.msra.mxu0 0.0
        %1192 = vmatprep.subr.mxu0 0.0
        %1193 = vmatpush1.msra.mxu0 0.0
        %1194 = vmatprep.subr.mxu0 0.0
        %1195 = vmatpush1.msra.mxu0 0.0
        %1196 = vmatprep.subr.mxu0 0.0
        %1197 = vmatpush1.msra.mxu0 0.0
        %1198 = vmatprep.subr.mxu0 0.0
        %1199 = vmatpush1.msra.mxu0 0.0
        %1200 = vmatprep.subr.mxu0 0.0
        %1201 = vmatpush1.msra.mxu0 0.0
        %1202 = vmatprep.subr.mxu0 0.0
        %1203 = vmatpush1.msra.mxu0 0.0
        %1204 = vmatprep.subr.mxu0 0.0
        %1205 = vmatpush1.msra.mxu0 0.0
        %1206 = vmatprep.subr.mxu0 0.0
        %1207 = vmatpush1.msra.mxu0 0.0
        %1208 = vmatprep.subr.mxu0 0.0
        %1209 = vmatpush1.msra.mxu0 0.0
        %1210 = vmatprep.subr.mxu0 0.0
        %1211 = vmatpush1.msra.mxu0 0.0
        %1212 = vmatprep.subr.mxu0 0.0
        %1213 = vmatpush1.msra.mxu0 0.0
        %1214 = vmatprep.subr.mxu0 0.0
        %1215 = vmatpush1.msra.mxu0 0.0
        %1216 = vmatprep.subr.mxu0 0.0
        %1217 = vmatpush1.msra.mxu0 0.0
        %1218 = vmatprep.subr.mxu0 0.0
        %1219 = vmatpush1.msra.mxu0 0.0
        %1220 = vmatprep.subr.mxu0 0.0
        %1221 = vmatpush1.msra.mxu0 0.0
        %1222 = vmatprep.subr.mxu0 0.0
        %1223 = vmatpush1.msra.mxu0 0.0
        %1224 = vmatprep.subr.mxu0 0.0
        %1225 = vmatpush1.msra.mxu0 0.0
        %1226 = vmatprep.subr.mxu0 0.0
        %1227 = vmatpush1.msra.mxu0 0.0
        %1228 = vmatprep.subr.mxu0 0.0
        %1229 = vmatpush1.msra.mxu0 0.0
        %1230 = vmatprep.mubr.f32.mxu0 0.0
        %1231 = vmatmul.mubr.f32.gmra.mrb[0].mxu0 %v1161
        %v1232 = vpop.f32.mrb[0].mxu0
        %v1233 = vadd.f32 %v1157, %v1232
        %v1234 = vpop.f32.mrb[0].mxu0
        %1235 = vmatprep.mubr.f32.mxu0 0.0
        %1236 = vmatmul.mubr.f32.gmra.mrb[0].mxu0 %v1164
        %v1237 = vpop.f32.mrb[0].mxu0
        %v1238 = vadd.f32 %v1157, %v1237
        %v1239 = vpop.f32.mrb[0].mxu0
        %1240 = vdwg.mxu0
        %v1241 = vld [vmem:[#allocation2] sm:$0xff]
        %v1242 = vld [vmem:[#allocation2 + $0x8] sm:$0xf]
        %v1243 = vld [vmem:[#allocation3] sm:$0xff]
        %v1244 = vld [vmem:[#allocation3 + $0x8] sm:$0xf]
        %vm1245 = vcmask 64512
        %v1247 = vsel %vm1245, %v1233, 0
        %v1250 = vsel %vm1245, %v1238, 0
        %v1253 = vsel %vm1245, %v1241, 0
        %v1256 = vsel %vm1245, %v1242, 0
        %1258 = vmatprep.subr.mxu0 0.0
        %1259 = vmatpush1.xpose.msra.mxu0 %v1253
        %1260 = vmatprep.subr.mxu0 0.0
        %1261 = vmatpush1.xpose.msra.mxu0 %v1256
        %1262 = vmatprep.subr.mxu0 0.0
        %1263 = vmatpush1.xpose.msra.mxu0 0.0
        %1264 = vmatprep.subr.mxu0 0.0
        %1265 = vmatpush1.xpose.msra.mxu0 0.0
        %1266 = vmatprep.subr.mxu0 0.0
        %1267 = vmatpush1.xpose.msra.mxu0 0.0
        %1268 = vmatprep.subr.mxu0 0.0
        %1269 = vmatpush1.xpose.msra.mxu0 0.0
        %1270 = vmatprep.subr.mxu0 0.0
        %1271 = vmatpush1.xpose.msra.mxu0 0.0
        %1272 = vmatprep.subr.mxu0 0.0
        %1273 = vmatpush1.xpose.msra.mxu0 0.0
        %1274 = vmatprep.subr.mxu0 0.0
        %1275 = vmatpush1.xpose.msra.mxu0 0.0
        %1276 = vmatprep.subr.mxu0 0.0
        %1277 = vmatpush1.xpose.msra.mxu0 0.0
        %1278 = vmatprep.subr.mxu0 0.0
        %1279 = vmatpush1.xpose.msra.mxu0 0.0
        %1280 = vmatprep.subr.mxu0 0.0
        %1281 = vmatpush1.xpose.msra.mxu0 0.0
        %1282 = vmatprep.subr.mxu0 0.0
        %1283 = vmatpush1.xpose.msra.mxu0 0.0
        %1284 = vmatprep.subr.mxu0 0.0
        %1285 = vmatpush1.xpose.msra.mxu0 0.0
        %1286 = vmatprep.subr.mxu0 0.0
        %1287 = vmatpush1.xpose.msra.mxu0 0.0
        %1288 = vmatprep.subr.mxu0 0.0
        %1289 = vmatpush1.xpose.msra.mxu0 0.0
        %1290 = vmatprep.subr.mxu0 0.0
        %1291 = vmatpush1.xpose.msra.mxu0 0.0
        %1292 = vmatprep.subr.mxu0 0.0
        %1293 = vmatpush1.xpose.msra.mxu0 0.0
        %1294 = vmatprep.subr.mxu0 0.0
        %1295 = vmatpush1.xpose.msra.mxu0 0.0
        %1296 = vmatprep.subr.mxu0 0.0
        %1297 = vmatpush1.xpose.msra.mxu0 0.0
        %1298 = vmatprep.subr.mxu0 0.0
        %1299 = vmatpush1.xpose.msra.mxu0 0.0
        %1300 = vmatprep.subr.mxu0 0.0
        %1301 = vmatpush1.xpose.msra.mxu0 0.0
        %1302 = vmatprep.subr.mxu0 0.0
        %1303 = vmatpush1.xpose.msra.mxu0 0.0
        %1304 = vmatprep.subr.mxu0 0.0
        %1305 = vmatpush1.xpose.msra.mxu0 0.0
        %1306 = vmatprep.subr.mxu0 0.0
        %1307 = vmatpush1.xpose.msra.mxu0 0.0
        %1308 = vmatprep.subr.mxu0 0.0
        %1309 = vmatpush1.xpose.msra.mxu0 0.0
        %1310 = vmatprep.subr.mxu0 0.0
        %1311 = vmatpush1.xpose.msra.mxu0 0.0
        %1312 = vmatprep.subr.mxu0 0.0
        %1313 = vmatpush1.xpose.msra.mxu0 0.0
        %1314 = vmatprep.subr.mxu0 0.0
        %1315 = vmatpush1.xpose.msra.mxu0 0.0
        %1316 = vmatprep.subr.mxu0 0.0
        %1317 = vmatpush1.xpose.msra.mxu0 0.0
        %1318 = vmatprep.subr.mxu0 0.0
        %1319 = vmatpush1.xpose.msra.mxu0 0.0
        %1320 = vmatprep.subr.mxu0 0.0
        %1321 = vmatpush1.xpose.msra.mxu0 0.0
        %1322 = vmatprep.mubr.f32.mxu0 0.0
        %1323 = vmatmul.mubr.f32.gmra.mrb[0].mxu0 %v1247
        %v1324 = vpop.f32.mrb[0].mxu0
        %v1325 = vadd.f32 0.0, %v1324
        %v1326 = vpop.f32.mrb[0].mxu0
        %1327 = vmatprep.mubr.f32.mxu0 0.0
        %1328 = vmatmul.mubr.f32.gmra.mrb[0].mxu0 %v1250
        %v1329 = vpop.f32.mrb[0].mxu0
        %v1330 = vadd.f32 0.0, %v1329
        %v1331 = vpop.f32.mrb[0].mxu0
        %1332 = vdwg.mxu0
        %vm1333 = vcmask 97280
        %v1334 = vsel %vm1333, %v1325, -inf
        %1335 = vmax.xlane.f32.xlu0 %v1334
        %v1336 = vpop.xlane.xlu0 %1335
        %v1337 = vsel %vm1333, %v1330, -inf
        %1338 = vmax.xlane.f32.xlu0 %v1337
        %v1339 = vpop.xlane.xlu0 %1338
        %v1340 = vsub.f32 %v1325, %v1336
        %v1341 = vsub.f32 %v1330, %v1339
        %v1342 = vmul.f32 %v1340, 1.442695
        %v1343 = vpow.pop %v1342
        %v1344 = vmul.f32 %v1341, 1.442695
        %v1345 = vpow.pop %v1344
        %v1346 = vsel %vm1333, %v1343, 0.0
        %1347 = vadd.xlane.f32.xlu0 %v1346
        %v1348 = vpop.xlane.xlu0 %1347
        %v1349 = vsel %vm1333, %v1345, 0.0
        %1350 = vadd.xlane.f32.xlu0 %v1349
        %v1351 = vpop.xlane.xlu0 %1350
        %v1353 = vsel %vm1333, %v1343, 0
        %v1356 = vsel %vm1333, %v1345, 0
        %vm1358 = vcmask 1043456
        %v1360 = vsel %vm1358, %v1244, 0
        %1362 = vmatprep.subr.mxu0 0.0
        %1363 = vmatpush1.msra.mxu0 %v1243
        %1364 = vmatprep.subr.mxu0 0.0
        %1365 = vmatpush1.msra.mxu0 %v1360
        %1366 = vmatprep.subr.mxu0 0.0
        %1367 = vmatpush1.msra.mxu0 0.0
        %1368 = vmatprep.subr.mxu0 0.0
        %1369 = vmatpush1.msra.mxu0 0.0
        %1370 = vmatprep.subr.mxu0 0.0
        %1371 = vmatpush1.msra.mxu0 0.0
        %1372 = vmatprep.subr.mxu0 0.0
        %1373 = vmatpush1.msra.mxu0 0.0
        %1374 = vmatprep.subr.mxu0 0.0
        %1375 = vmatpush1.msra.mxu0 0.0
        %1376 = vmatprep.subr.mxu0 0.0
        %1377 = vmatpush1.msra.mxu0 0.0
        %1378 = vmatprep.subr.mxu0 0.0
        %1379 = vmatpush1.msra.mxu0 0.0
        %1380 = vmatprep.subr.mxu0 0.0
        %1381 = vmatpush1.msra.mxu0 0.0
        %1382 = vmatprep.subr.mxu0 0.0
        %1383 = vmatpush1.msra.mxu0 0.0
        %1384 = vmatprep.subr.mxu0 0.0
        %1385 = vmatpush1.msra.mxu0 0.0
        %1386 = vmatprep.subr.mxu0 0.0
        %1387 = vmatpush1.msra.mxu0 0.0
        %1388 = vmatprep.subr.mxu0 0.0
        %1389 = vmatpush1.msra.mxu0 0.0
        %1390 = vmatprep.subr.mxu0 0.0
        %1391 = vmatpush1.msra.mxu0 0.0
        %1392 = vmatprep.subr.mxu0 0.0
        %1393 = vmatpush1.msra.mxu0 0.0
        %1394 = vmatprep.subr.mxu0 0.0
        %1395 = vmatpush1.msra.mxu0 0.0
        %1396 = vmatprep.subr.mxu0 0.0
        %1397 = vmatpush1.msra.mxu0 0.0
        %1398 = vmatprep.subr.mxu0 0.0
        %1399 = vmatpush1.msra.mxu0 0.0
        %1400 = vmatprep.subr.mxu0 0.0
        %1401 = vmatpush1.msra.mxu0 0.0
        %1402 = vmatprep.subr.mxu0 0.0
        %1403 = vmatpush1.msra.mxu0 0.0
        %1404 = vmatprep.subr.mxu0 0.0
        %1405 = vmatpush1.msra.mxu0 0.0
        %1406 = vmatprep.subr.mxu0 0.0
        %1407 = vmatpush1.msra.mxu0 0.0
        %1408 = vmatprep.subr.mxu0 0.0
        %1409 = vmatpush1.msra.mxu0 0.0
        %1410 = vmatprep.subr.mxu0 0.0
        %1411 = vmatpush1.msra.mxu0 0.0
        %1412 = vmatprep.subr.mxu0 0.0
        %1413 = vmatpush1.msra.mxu0 0.0
        %1414 = vmatprep.subr.mxu0 0.0
        %1415 = vmatpush1.msra.mxu0 0.0
        %1416 = vmatprep.subr.mxu0 0.0
        %1417 = vmatpush1.msra.mxu0 0.0
        %1418 = vmatprep.subr.mxu0 0.0
        %1419 = vmatpush1.msra.mxu0 0.0
        %1420 = vmatprep.subr.mxu0 0.0
        %1421 = vmatpush1.msra.mxu0 0.0
        %1422 = vmatprep.subr.mxu0 0.0
        %1423 = vmatpush1.msra.mxu0 0.0
        %1424 = vmatprep.subr.mxu0 0.0
        %1425 = vmatpush1.msra.mxu0 0.0
        %1426 = vmatprep.mubr.f32.mxu0 0.0
        %1427 = vmatmul.mubr.f32.gmra.mrb[0].mxu0 %v1353
        %v1428 = vpop.f32.mrb[0].mxu0
        %v1429 = vadd.f32 0.0, %v1428
        %v1430 = vpop.f32.mrb[0].mxu0
        %1431 = vmatprep.mubr.f32.mxu0 0.0
        %1432 = vmatmul.mubr.f32.gmra.mrb[0].mxu0 %v1356
        %v1433 = vpop.f32.mrb[0].mxu0
        %v1434 = vadd.f32 0.0, %v1433
        %v1435 = vpop.f32.mrb[0].mxu0
        %1436 = vdwg.mxu0
        %v1437 = vrcp.pop %v1348
        %v1438 = vrcp.pop %v1351
        %v1439 = vmul.f32 %v1429, %v1437
        %v1440 = vmul.f32 %v1434, %v1438
        %v1441 = vld [vmem:[%s8] sm:$0xff]
        %s1442 = scalar_lea.vmem %s2, 32
        %v1443 = vld [vmem:[%s1442] sm:$0xff]
        %v1444 = vld [vmem:[%s1442 + $0x8] sm:$0xff]
        %v1445 = vld [vmem:[%s1442 + $0x10] sm:$0xff]
        %v1446 = vld [vmem:[%s1442 + $0x18] sm:$0xff]
        %s1447 = scalar_lea.vmem %s3, 1
        %v1448 = vld [vmem:[%s1447] sm:$0x1]
        %v1450 = vlaneseq
        %v1451 = vshrl.u32 %v1450, 7
        %v1452 = vsub.s32 0, %v1451
        %v1453 = vrot.slane %v1448, %v1452
        %1455 = vmatprep.subr.mxu0 0.0
        %1456 = vmatpush1.msra.mxu0 %v1443
        %1457 = vmatprep.subr.mxu0 0.0
        %1458 = vmatpush1.msra.mxu0 %v1444
        %1459 = vmatprep.subr.mxu0 0.0
        %1460 = vmatpush1.msra.mxu0 %v1445
        %1461 = vmatprep.subr.mxu0 0.0
        %1462 = vmatpush1.msra.mxu0 %v1446
        %1463 = vmatprep.subr.mxu0 0.0
        %1464 = vmatpush1.msra.mxu0 0.0
        %1465 = vmatprep.subr.mxu0 0.0
        %1466 = vmatpush1.msra.mxu0 0.0
        %1467 = vmatprep.subr.mxu0 0.0
        %1468 = vmatpush1.msra.mxu0 0.0
        %1469 = vmatprep.subr.mxu0 0.0
        %1470 = vmatpush1.msra.mxu0 0.0
        %1471 = vmatprep.subr.mxu0 0.0
        %1472 = vmatpush1.msra.mxu0 0.0
        %1473 = vmatprep.subr.mxu0 0.0
        %1474 = vmatpush1.msra.mxu0 0.0
        %1475 = vmatprep.subr.mxu0 0.0
        %1476 = vmatpush1.msra.mxu0 0.0
        %1477 = vmatprep.subr.mxu0 0.0
        %1478 = vmatpush1.msra.mxu0 0.0
        %1479 = vmatprep.subr.mxu0 0.0
        %1480 = vmatpush1.msra.mxu0 0.0
        %1481 = vmatprep.subr.mxu0 0.0
        %1482 = vmatpush1.msra.mxu0 0.0
        %1483 = vmatprep.subr.mxu0 0.0
        %1484 = vmatpush1.msra.mxu0 0.0
        %1485 = vmatprep.subr.mxu0 0.0
        %1486 = vmatpush1.msra.mxu0 0.0
        %1487 = vmatprep.subr.mxu0 0.0
        %1488 = vmatpush1.msra.mxu0 0.0
        %1489 = vmatprep.subr.mxu0 0.0
        %1490 = vmatpush1.msra.mxu0 0.0
        %1491 = vmatprep.subr.mxu0 0.0
        %1492 = vmatpush1.msra.mxu0 0.0
        %1493 = vmatprep.subr.mxu0 0.0
        %1494 = vmatpush1.msra.mxu0 0.0
        %1495 = vmatprep.subr.mxu0 0.0
        %1496 = vmatpush1.msra.mxu0 0.0
        %1497 = vmatprep.subr.mxu0 0.0
        %1498 = vmatpush1.msra.mxu0 0.0
        %1499 = vmatprep.subr.mxu0 0.0
        %1500 = vmatpush1.msra.mxu0 0.0
        %1501 = vmatprep.subr.mxu0 0.0
        %1502 = vmatpush1.msra.mxu0 0.0
        %1503 = vmatprep.subr.mxu0 0.0
        %1504 = vmatpush1.msra.mxu0 0.0
        %1505 = vmatprep.subr.mxu0 0.0
        %1506 = vmatpush1.msra.mxu0 0.0
        %1507 = vmatprep.subr.mxu0 0.0
        %1508 = vmatpush1.msra.mxu0 0.0
        %1509 = vmatprep.subr.mxu0 0.0
        %1510 = vmatpush1.msra.mxu0 0.0
        %1511 = vmatprep.subr.mxu0 0.0
        %1512 = vmatpush1.msra.mxu0 0.0
        %1513 = vmatprep.subr.mxu0 0.0
        %1514 = vmatpush1.msra.mxu0 0.0
        %1515 = vmatprep.subr.mxu0 0.0
        %1516 = vmatpush1.msra.mxu0 0.0
        %1517 = vmatprep.subr.mxu0 0.0
        %1518 = vmatpush1.msra.mxu0 0.0
        %1519 = vmatprep.mubr.f32.mxu0 0.0
        %1520 = vmatmul.mubr.f32.gmra.mrb[0].mxu0 %v1161
        %v1521 = vpop.f32.mrb[0].mxu0
        %v1522 = vadd.f32 %v1453, %v1521
        %v1523 = vpop.f32.mrb[0].mxu0
        %1524 = vmatprep.mubr.f32.mxu0 0.0
        %1525 = vmatmul.mubr.f32.gmra.mrb[0].mxu0 %v1164
        %v1526 = vpop.f32.mrb[0].mxu0
        %v1527 = vadd.f32 %v1453, %v1526
        %v1528 = vpop.f32.mrb[0].mxu0
        %1529 = vdwg.mxu0
        %s1530 = scalar_lea.vmem [#allocation2], 16
        %v1531 = vld [vmem:[%s1530] sm:$0xff]
        %v1532 = vld [vmem:[%s1530 + $0x8] sm:$0xf]
        %s1533 = scalar_lea.vmem [#allocation3], 16
        %v1534 = vld [vmem:[%s1533] sm:$0xff]
        %v1535 = vld [vmem:[%s1533 + $0x8] sm:$0xf]
        %v1537 = vsel %vm1245, %v1522, 0
        %v1540 = vsel %vm1245, %v1527, 0
        %v1543 = vsel %vm1245, %v1531, 0
        %v1546 = vsel %vm1245, %v1532, 0
        %1548 = vmatprep.subr.mxu0 0.0
        %1549 = vmatpush1.xpose.msra.mxu0 %v1543
        %1550 = vmatprep.subr.mxu0 0.0
        %1551 = vmatpush1.xpose.msra.mxu0 %v1546
        %1552 = vmatprep.subr.mxu0 0.0
        %1553 = vmatpush1.xpose.msra.mxu0 0.0
        %1554 = vmatprep.subr.mxu0 0.0
        %1555 = vmatpush1.xpose.msra.mxu0 0.0
        %1556 = vmatprep.subr.mxu0 0.0
        %1557 = vmatpush1.xpose.msra.mxu0 0.0
        %1558 = vmatprep.subr.mxu0 0.0
        %1559 = vmatpush1.xpose.msra.mxu0 0.0
        %1560 = vmatprep.subr.mxu0 0.0
        %1561 = vmatpush1.xpose.msra.mxu0 0.0
        %1562 = vmatprep.subr.mxu0 0.0
        %1563 = vmatpush1.xpose.msra.mxu0 0.0
        %1564 = vmatprep.subr.mxu0 0.0
        %1565 = vmatpush1.xpose.msra.mxu0 0.0
        %1566 = vmatprep.subr.mxu0 0.0
        %1567 = vmatpush1.xpose.msra.mxu0 0.0
        %1568 = vmatprep.subr.mxu0 0.0
        %1569 = vmatpush1.xpose.msra.mxu0 0.0
        %1570 = vmatprep.subr.mxu0 0.0
        %1571 = vmatpush1.xpose.msra.mxu0 0.0
        %1572 = vmatprep.subr.mxu0 0.0
        %1573 = vmatpush1.xpose.msra.mxu0 0.0
        %1574 = vmatprep.subr.mxu0 0.0
        %1575 = vmatpush1.xpose.msra.mxu0 0.0
        %1576 = vmatprep.subr.mxu0 0.0
        %1577 = vmatpush1.xpose.msra.mxu0 0.0
        %1578 = vmatprep.subr.mxu0 0.0
        %1579 = vmatpush1.xpose.msra.mxu0 0.0
        %1580 = vmatprep.subr.mxu0 0.0
        %1581 = vmatpush1.xpose.msra.mxu0 0.0
        %1582 = vmatprep.subr.mxu0 0.0
        %1583 = vmatpush1.xpose.msra.mxu0 0.0
        %1584 = vmatprep.subr.mxu0 0.0
        %1585 = vmatpush1.xpose.msra.mxu0 0.0
        %1586 = vmatprep.subr.mxu0 0.0
        %1587 = vmatpush1.xpose.msra.mxu0 0.0
        %1588 = vmatprep.subr.mxu0 0.0
        %1589 = vmatpush1.xpose.msra.mxu0 0.0
        %1590 = vmatprep.subr.mxu0 0.0
        %1591 = vmatpush1.xpose.msra.mxu0 0.0
        %1592 = vmatprep.subr.mxu0 0.0
        %1593 = vmatpush1.xpose.msra.mxu0 0.0
        %1594 = vmatprep.subr.mxu0 0.0
        %1595 = vmatpush1.xpose.msra.mxu0 0.0
        %1596 = vmatprep.subr.mxu0 0.0
        %1597 = vmatpush1.xpose.msra.mxu0 0.0
        %1598 = vmatprep.subr.mxu0 0.0
        %1599 = vmatpush1.xpose.msra.mxu0 0.0
        %1600 = vmatprep.subr.mxu0 0.0
        %1601 = vmatpush1.xpose.msra.mxu0 0.0
        %1602 = vmatprep.subr.mxu0 0.0
        %1603 = vmatpush1.xpose.msra.mxu0 0.0
        %1604 = vmatprep.subr.mxu0 0.0
        %1605 = vmatpush1.xpose.msra.mxu0 0.0
        %1606 = vmatprep.subr.mxu0 0.0
        %1607 = vmatpush1.xpose.msra.mxu0 0.0
        %1608 = vmatprep.subr.mxu0 0.0
        %1609 = vmatpush1.xpose.msra.mxu0 0.0
        %1610 = vmatprep.subr.mxu0 0.0
        %1611 = vmatpush1.xpose.msra.mxu0 0.0
        %1612 = vmatprep.mubr.f32.mxu0 0.0
        %1613 = vmatmul.mubr.f32.gmra.mrb[0].mxu0 %v1537
        %v1614 = vpop.f32.mrb[0].mxu0
        %v1615 = vadd.f32 0.0, %v1614
        %v1616 = vpop.f32.mrb[0].mxu0
        %1617 = vmatprep.mubr.f32.mxu0 0.0
        %1618 = vmatmul.mubr.f32.gmra.mrb[0].mxu0 %v1540
        %v1619 = vpop.f32.mrb[0].mxu0
        %v1620 = vadd.f32 0.0, %v1619
        %v1621 = vpop.f32.mrb[0].mxu0
        %1622 = vdwg.mxu0
        %v1623 = vsel %vm1333, %v1615, -inf
        %1624 = vmax.xlane.f32.xlu0 %v1623
        %v1625 = vpop.xlane.xlu0 %1624
        %v1626 = vsel %vm1333, %v1620, -inf
        %1627 = vmax.xlane.f32.xlu0 %v1626
        %v1628 = vpop.xlane.xlu0 %1627
        %v1629 = vsub.f32 %v1615, %v1625
        %v1630 = vsub.f32 %v1620, %v1628
        %v1631 = vmul.f32 %v1629, 1.442695
        %v1632 = vpow.pop %v1631
        %v1633 = vmul.f32 %v1630, 1.442695
        %v1634 = vpow.pop %v1633
        %v1635 = vsel %vm1333, %v1632, 0.0
        %1636 = vadd.xlane.f32.xlu0 %v1635
        %v1637 = vpop.xlane.xlu0 %1636
        %v1638 = vsel %vm1333, %v1634, 0.0
        %1639 = vadd.xlane.f32.xlu0 %v1638
        %v1640 = vpop.xlane.xlu0 %1639
        %v1642 = vsel %vm1333, %v1632, 0
        %v1645 = vsel %vm1333, %v1634, 0
        %v1648 = vsel %vm1358, %v1535, 0
        %1650 = vmatprep.subr.mxu0 0.0
        %1651 = vmatpush1.msra.mxu0 %v1534
        %1652 = vmatprep.subr.mxu0 0.0
        %1653 = vmatpush1.msra.mxu0 %v1648
        %1654 = vmatprep.subr.mxu0 0.0
        %1655 = vmatpush1.msra.mxu0 0.0
        %1656 = vmatprep.subr.mxu0 0.0
        %1657 = vmatpush1.msra.mxu0 0.0
        %1658 = vmatprep.subr.mxu0 0.0
        %1659 = vmatpush1.msra.mxu0 0.0
        %1660 = vmatprep.subr.mxu0 0.0
        %1661 = vmatpush1.msra.mxu0 0.0
        %1662 = vmatprep.subr.mxu0 0.0
        %1663 = vmatpush1.msra.mxu0 0.0
        %1664 = vmatprep.subr.mxu0 0.0
        %1665 = vmatpush1.msra.mxu0 0.0
        %1666 = vmatprep.subr.mxu0 0.0
        %1667 = vmatpush1.msra.mxu0 0.0
        %1668 = vmatprep.subr.mxu0 0.0
        %1669 = vmatpush1.msra.mxu0 0.0
        %1670 = vmatprep.subr.mxu0 0.0
        %1671 = vmatpush1.msra.mxu0 0.0
        %1672 = vmatprep.subr.mxu0 0.0
        %1673 = vmatpush1.msra.mxu0 0.0
        %1674 = vmatprep.subr.mxu0 0.0
        %1675 = vmatpush1.msra.mxu0 0.0
        %1676 = vmatprep.subr.mxu0 0.0
        %1677 = vmatpush1.msra.mxu0 0.0
        %1678 = vmatprep.subr.mxu0 0.0
        %1679 = vmatpush1.msra.mxu0 0.0
        %1680 = vmatprep.subr.mxu0 0.0
        %1681 = vmatpush1.msra.mxu0 0.0
        %1682 = vmatprep.subr.mxu0 0.0
        %1683 = vmatpush1.msra.mxu0 0.0
        %1684 = vmatprep.subr.mxu0 0.0
        %1685 = vmatpush1.msra.mxu0 0.0
        %1686 = vmatprep.subr.mxu0 0.0
        %1687 = vmatpush1.msra.mxu0 0.0
        %1688 = vmatprep.subr.mxu0 0.0
        %1689 = vmatpush1.msra.mxu0 0.0
        %1690 = vmatprep.subr.mxu0 0.0
        %1691 = vmatpush1.msra.mxu0 0.0
        %1692 = vmatprep.subr.mxu0 0.0
        %1693 = vmatpush1.msra.mxu0 0.0
        %1694 = vmatprep.subr.mxu0 0.0
        %1695 = vmatpush1.msra.mxu0 0.0
        %1696 = vmatprep.subr.mxu0 0.0
        %1697 = vmatpush1.msra.mxu0 0.0
        %1698 = vmatprep.subr.mxu0 0.0
        %1699 = vmatpush1.msra.mxu0 0.0
        %1700 = vmatprep.subr.mxu0 0.0
        %1701 = vmatpush1.msra.mxu0 0.0
        %1702 = vmatprep.subr.mxu0 0.0
        %1703 = vmatpush1.msra.mxu0 0.0
        %1704 = vmatprep.subr.mxu0 0.0
        %1705 = vmatpush1.msra.mxu0 0.0
        %1706 = vmatprep.subr.mxu0 0.0
        %1707 = vmatpush1.msra.mxu0 0.0
        %1708 = vmatprep.subr.mxu0 0.0
        %1709 = vmatpush1.msra.mxu0 0.0
        %1710 = vmatprep.subr.mxu0 0.0
        %1711 = vmatpush1.msra.mxu0 0.0
        %1712 = vmatprep.subr.mxu0 0.0
        %1713 = vmatpush1.msra.mxu0 0.0
        %1714 = vmatprep.mubr.f32.mxu0 0.0
        %1715 = vmatmul.mubr.f32.gmra.mrb[0].mxu0 %v1642
        %v1716 = vpop.f32.mrb[0].mxu0
        %v1717 = vadd.f32 0.0, %v1716
        %v1718 = vpop.f32.mrb[0].mxu0
        %1719 = vmatprep.mubr.f32.mxu0 0.0
        %1720 = vmatmul.mubr.f32.gmra.mrb[0].mxu0 %v1645
        %v1721 = vpop.f32.mrb[0].mxu0
        %v1722 = vadd.f32 0.0, %v1721
        %v1723 = vpop.f32.mrb[0].mxu0
        %1724 = vdwg.mxu0
        %v1725 = vrcp.pop %v1637
        %v1726 = vrcp.pop %v1640
        %v1727 = vmul.f32 %v1717, %v1725
        %v1728 = vmul.f32 %v1722, %v1726
        %s1729 = scalar_lea.vmem %s8, 8
        %v1730 = vld [vmem:[%s1729] sm:$0xff]
        %v1732 = vsel %vm1245, %v1727, 0
        %v1735 = vsel %vm1245, %v1728, 0
        %1737 = vmatprep.subr.mxu0 0.0
        %1738 = vmatpush1.msra.mxu0 %v1730
        %1739 = vmatprep.subr.mxu0 0.0
        %1740 = vmatpush1.msra.mxu0 0.0
        %1741 = vmatprep.subr.mxu0 0.0
        %1742 = vmatpush1.msra.mxu0 0.0
        %1743 = vmatprep.subr.mxu0 0.0
        %1744 = vmatpush1.msra.mxu0 0.0
        %1745 = vmatprep.subr.mxu0 0.0
        %1746 = vmatpush1.msra.mxu0 0.0
        %1747 = vmatprep.subr.mxu0 0.0
        %1748 = vmatpush1.msra.mxu0 0.0
        %1749 = vmatprep.subr.mxu0 0.0
        %1750 = vmatpush1.msra.mxu0 0.0
        %1751 = vmatprep.subr.mxu0 0.0
        %1752 = vmatpush1.msra.mxu0 0.0
        %1753 = vmatprep.subr.mxu0 0.0
        %1754 = vmatpush1.msra.mxu0 0.0
        %1755 = vmatprep.subr.mxu0 0.0
        %1756 = vmatpush1.msra.mxu0 0.0
        %1757 = vmatprep.subr.mxu0 0.0
        %1758 = vmatpush1.msra.mxu0 0.0
        %1759 = vmatprep.subr.mxu0 0.0
        %1760 = vmatpush1.msra.mxu0 0.0
        %1761 = vmatprep.subr.mxu0 0.0
        %1762 = vmatpush1.msra.mxu0 0.0
        %1763 = vmatprep.subr.mxu0 0.0
        %1764 = vmatpush1.msra.mxu0 0.0
        %1765 = vmatprep.subr.mxu0 0.0
        %1766 = vmatpush1.msra.mxu0 0.0
        %1767 = vmatprep.subr.mxu0 0.0
        %1768 = vmatpush1.msra.mxu0 0.0
        %1769 = vmatprep.subr.mxu0 0.0
        %1770 = vmatpush1.msra.mxu0 0.0
        %1771 = vmatprep.subr.mxu0 0.0
        %1772 = vmatpush1.msra.mxu0 0.0
        %1773 = vmatprep.subr.mxu0 0.0
        %1774 = vmatpush1.msra.mxu0 0.0
        %1775 = vmatprep.subr.mxu0 0.0
        %1776 = vmatpush1.msra.mxu0 0.0
        %1777 = vmatprep.subr.mxu0 0.0
        %1778 = vmatpush1.msra.mxu0 0.0
        %1779 = vmatprep.subr.mxu0 0.0
        %1780 = vmatpush1.msra.mxu0 0.0
        %1781 = vmatprep.subr.mxu0 0.0
        %1782 = vmatpush1.msra.mxu0 0.0
        %1783 = vmatprep.subr.mxu0 0.0
        %1784 = vmatpush1.msra.mxu0 0.0
        %1785 = vmatprep.subr.mxu0 0.0
        %1786 = vmatpush1.msra.mxu0 0.0
        %1787 = vmatprep.subr.mxu0 0.0
        %1788 = vmatpush1.msra.mxu0 0.0
        %1789 = vmatprep.subr.mxu0 0.0
        %1790 = vmatpush1.msra.mxu0 0.0
        %1791 = vmatprep.subr.mxu0 0.0
        %1792 = vmatpush1.msra.mxu0 0.0
        %1793 = vmatprep.subr.mxu0 0.0
        %1794 = vmatpush1.msra.mxu0 0.0
        %1795 = vmatprep.subr.mxu0 0.0
        %1796 = vmatpush1.msra.mxu0 0.0
        %1797 = vmatprep.subr.mxu0 0.0
        %1798 = vmatpush1.msra.mxu0 0.0
        %1799 = vmatprep.subr.mxu0 0.0
        %1800 = vmatpush1.msra.mxu0 0.0
        %1801 = vmatprep.mubr.f32.mxu0 0.0
        %1802 = vmatmul.mubr.f32.gmra.mrb[0].mxu0 %v1732
        %v1803 = vpop.f32.mrb[0].mxu0
        %v1804 = vadd.f32 0.0, %v1803
        %v1805 = vpop.f32.mrb[0].mxu0
        %1806 = vmatprep.mubr.f32.mxu0 0.0
        %1807 = vmatmul.mubr.f32.gmra.mrb[0].mxu0 %v1735
        %v1808 = vpop.f32.mrb[0].mxu0
        %v1809 = vadd.f32 0.0, %v1808
        %v1810 = vpop.f32.mrb[0].mxu0
        %1811 = vdwg.mxu0
        %v1813 = vsel %vm1245, %v1439, 0
        %v1816 = vsel %vm1245, %v1440, 0
        %1818 = vmatprep.subr.mxu0 0.0
        %1819 = vmatpush1.msra.mxu0 %v1441
        %1820 = vmatprep.subr.mxu0 0.0
        %1821 = vmatpush1.msra.mxu0 0.0
        %1822 = vmatprep.subr.mxu0 0.0
        %1823 = vmatpush1.msra.mxu0 0.0
        %1824 = vmatprep.subr.mxu0 0.0
        %1825 = vmatpush1.msra.mxu0 0.0
        %1826 = vmatprep.subr.mxu0 0.0
        %1827 = vmatpush1.msra.mxu0 0.0
        %1828 = vmatprep.subr.mxu0 0.0
        %1829 = vmatpush1.msra.mxu0 0.0
        %1830 = vmatprep.subr.mxu0 0.0
        %1831 = vmatpush1.msra.mxu0 0.0
        %1832 = vmatprep.subr.mxu0 0.0
        %1833 = vmatpush1.msra.mxu0 0.0
        %1834 = vmatprep.subr.mxu0 0.0
        %1835 = vmatpush1.msra.mxu0 0.0
        %1836 = vmatprep.subr.mxu0 0.0
        %1837 = vmatpush1.msra.mxu0 0.0
        %1838 = vmatprep.subr.mxu0 0.0
        %1839 = vmatpush1.msra.mxu0 0.0
        %1840 = vmatprep.subr.mxu0 0.0
        %1841 = vmatpush1.msra.mxu0 0.0
        %1842 = vmatprep.subr.mxu0 0.0
        %1843 = vmatpush1.msra.mxu0 0.0
        %1844 = vmatprep.subr.mxu0 0.0
        %1845 = vmatpush1.msra.mxu0 0.0
        %1846 = vmatprep.subr.mxu0 0.0
        %1847 = vmatpush1.msra.mxu0 0.0
        %1848 = vmatprep.subr.mxu0 0.0
        %1849 = vmatpush1.msra.mxu0 0.0
        %1850 = vmatprep.subr.mxu0 0.0
        %1851 = vmatpush1.msra.mxu0 0.0
        %1852 = vmatprep.subr.mxu0 0.0
        %1853 = vmatpush1.msra.mxu0 0.0
        %1854 = vmatprep.subr.mxu0 0.0
        %1855 = vmatpush1.msra.mxu0 0.0
        %1856 = vmatprep.subr.mxu0 0.0
        %1857 = vmatpush1.msra.mxu0 0.0
        %1858 = vmatprep.subr.mxu0 0.0
        %1859 = vmatpush1.msra.mxu0 0.0
        %1860 = vmatprep.subr.mxu0 0.0
        %1861 = vmatpush1.msra.mxu0 0.0
        %1862 = vmatprep.subr.mxu0 0.0
        %1863 = vmatpush1.msra.mxu0 0.0
        %1864 = vmatprep.subr.mxu0 0.0
        %1865 = vmatpush1.msra.mxu0 0.0
        %1866 = vmatprep.subr.mxu0 0.0
        %1867 = vmatpush1.msra.mxu0 0.0
        %1868 = vmatprep.subr.mxu0 0.0
        %1869 = vmatpush1.msra.mxu0 0.0
        %1870 = vmatprep.subr.mxu0 0.0
        %1871 = vmatpush1.msra.mxu0 0.0
        %1872 = vmatprep.subr.mxu0 0.0
        %1873 = vmatpush1.msra.mxu0 0.0
        %1874 = vmatprep.subr.mxu0 0.0
        %1875 = vmatpush1.msra.mxu0 0.0
        %1876 = vmatprep.subr.mxu0 0.0
        %1877 = vmatpush1.msra.mxu0 0.0
        %1878 = vmatprep.subr.mxu0 0.0
        %1879 = vmatpush1.msra.mxu0 0.0
        %1880 = vmatprep.subr.mxu0 0.0
        %1881 = vmatpush1.msra.mxu0 0.0
        %1882 = vmatprep.mubr.f32.mxu0 0.0
        %1883 = vmatmul.mubr.f32.gmra.mrb[0].mxu0 %v1813
        %v1884 = vpop.f32.mrb[0].mxu0
        %v1885 = vadd.f32 %v1804, %v1884
        %v1886 = vpop.f32.mrb[0].mxu0
        %1887 = vmatprep.mubr.f32.mxu0 0.0
        %1888 = vmatmul.mubr.f32.gmra.mrb[0].mxu0 %v1816
        %v1889 = vpop.f32.mrb[0].mxu0
        %v1890 = vadd.f32 %v1809, %v1889
        %v1891 = vpop.f32.mrb[0].mxu0
        %1892 = vdwg.mxu0
        %s1893 = scalar_lea.vmem %s2, 64
        %v1894 = vld [vmem:[%s1893] sm:$0xff]
        %v1895 = vld [vmem:[%s1893 + $0x8] sm:$0xff]
        %v1896 = vld [vmem:[%s1893 + $0x10] sm:$0xff]
        %v1897 = vld [vmem:[%s1893 + $0x18] sm:$0xff]
        %s1898 = scalar_lea.vmem %s3, 2
        %v1899 = vld [vmem:[%s1898] sm:$0x1]
        %v1901 = vlaneseq
        %v1902 = vshrl.u32 %v1901, 7
        %v1903 = vsub.s32 0, %v1902
        %v1904 = vrot.slane %v1899, %v1903
        %1906 = vmatprep.subr.mxu0 0.0
        %1907 = vmatpush1.msra.mxu0 %v1894
        %1908 = vmatprep.subr.mxu0 0.0
        %1909 = vmatpush1.msra.mxu0 %v1895
        %1910 = vmatprep.subr.mxu0 0.0
        %1911 = vmatpush1.msra.mxu0 %v1896
        %1912 = vmatprep.subr.mxu0 0.0
        %1913 = vmatpush1.msra.mxu0 %v1897
        %1914 = vmatprep.subr.mxu0 0.0
        %1915 = vmatpush1.msra.mxu0 0.0
        %1916 = vmatprep.subr.mxu0 0.0
        %1917 = vmatpush1.msra.mxu0 0.0
        %1918 = vmatprep.subr.mxu0 0.0
        %1919 = vmatpush1.msra.mxu0 0.0
        %1920 = vmatprep.subr.mxu0 0.0
        %1921 = vmatpush1.msra.mxu0 0.0
        %1922 = vmatprep.subr.mxu0 0.0
        %1923 = vmatpush1.msra.mxu0 0.0
        %1924 = vmatprep.subr.mxu0 0.0
        %1925 = vmatpush1.msra.mxu0 0.0
        %1926 = vmatprep.subr.mxu0 0.0
        %1927 = vmatpush1.msra.mxu0 0.0
        %1928 = vmatprep.subr.mxu0 0.0
        %1929 = vmatpush1.msra.mxu0 0.0
        %1930 = vmatprep.subr.mxu0 0.0
        %1931 = vmatpush1.msra.mxu0 0.0
        %1932 = vmatprep.subr.mxu0 0.0
        %1933 = vmatpush1.msra.mxu0 0.0
        %1934 = vmatprep.subr.mxu0 0.0
        %1935 = vmatpush1.msra.mxu0 0.0
        %1936 = vmatprep.subr.mxu0 0.0
        %1937 = vmatpush1.msra.mxu0 0.0
        %1938 = vmatprep.subr.mxu0 0.0
        %1939 = vmatpush1.msra.mxu0 0.0
        %1940 = vmatprep.subr.mxu0 0.0
        %1941 = vmatpush1.msra.mxu0 0.0
        %1942 = vmatprep.subr.mxu0 0.0
        %1943 = vmatpush1.msra.mxu0 0.0
        %1944 = vmatprep.subr.mxu0 0.0
        %1945 = vmatpush1.msra.mxu0 0.0
        %1946 = vmatprep.subr.mxu0 0.0
        %1947 = vmatpush1.msra.mxu0 0.0
        %1948 = vmatprep.subr.mxu0 0.0
        %1949 = vmatpush1.msra.mxu0 0.0
        %1950 = vmatprep.subr.mxu0 0.0
        %1951 = vmatpush1.msra.mxu0 0.0
        %1952 = vmatprep.subr.mxu0 0.0
        %1953 = vmatpush1.msra.mxu0 0.0
        %1954 = vmatprep.subr.mxu0 0.0
        %1955 = vmatpush1.msra.mxu0 0.0
        %1956 = vmatprep.subr.mxu0 0.0
        %1957 = vmatpush1.msra.mxu0 0.0
        %1958 = vmatprep.subr.mxu0 0.0
        %1959 = vmatpush1.msra.mxu0 0.0
        %1960 = vmatprep.subr.mxu0 0.0
        %1961 = vmatpush1.msra.mxu0 0.0
        %1962 = vmatprep.subr.mxu0 0.0
        %1963 = vmatpush1.msra.mxu0 0.0
        %1964 = vmatprep.subr.mxu0 0.0
        %1965 = vmatpush1.msra.mxu0 0.0
        %1966 = vmatprep.subr.mxu0 0.0
        %1967 = vmatpush1.msra.mxu0 0.0
        %1968 = vmatprep.subr.mxu0 0.0
        %1969 = vmatpush1.msra.mxu0 0.0
        %1970 = vmatprep.mubr.f32.mxu0 0.0
        %1971 = vmatmul.mubr.f32.gmra.mrb[0].mxu0 %v1161
        %v1972 = vpop.f32.mrb[0].mxu0
        %v1973 = vadd.f32 %v1904, %v1972
        %v1974 = vpop.f32.mrb[0].mxu0
        %1975 = vmatprep.mubr.f32.mxu0 0.0
        %1976 = vmatmul.mubr.f32.gmra.mrb[0].mxu0 %v1164
        %v1977 = vpop.f32.mrb[0].mxu0
        %v1978 = vadd.f32 %v1904, %v1977
        %v1979 = vpop.f32.mrb[0].mxu0
        %1980 = vdwg.mxu0
        %s1981 = scalar_lea.vmem [#allocation2], 32
        %v1982 = vld [vmem:[%s1981] sm:$0xff]
        %v1983 = vld [vmem:[%s1981 + $0x8] sm:$0xf]
        %s1984 = scalar_lea.vmem [#allocation3], 32
        %v1985 = vld [vmem:[%s1984] sm:$0xff]
        %v1986 = vld [vmem:[%s1984 + $0x8] sm:$0xf]
        %v1988 = vsel %vm1245, %v1973, 0
        %v1991 = vsel %vm1245, %v1978, 0
        %v1994 = vsel %vm1245, %v1982, 0
        %v1997 = vsel %vm1245, %v1983, 0
        %1999 = vmatprep.subr.mxu0 0.0
        %2000 = vmatpush1.xpose.msra.mxu0 %v1994
        %2001 = vmatprep.subr.mxu0 0.0
        %2002 = vmatpush1.xpose.msra.mxu0 %v1997
        %2003 = vmatprep.subr.mxu0 0.0
        %2004 = vmatpush1.xpose.msra.mxu0 0.0
        %2005 = vmatprep.subr.mxu0 0.0
        %2006 = vmatpush1.xpose.msra.mxu0 0.0
        %2007 = vmatprep.subr.mxu0 0.0
        %2008 = vmatpush1.xpose.msra.mxu0 0.0
        %2009 = vmatprep.subr.mxu0 0.0
        %2010 = vmatpush1.xpose.msra.mxu0 0.0
        %2011 = vmatprep.subr.mxu0 0.0
        %2012 = vmatpush1.xpose.msra.mxu0 0.0
        %2013 = vmatprep.subr.mxu0 0.0
        %2014 = vmatpush1.xpose.msra.mxu0 0.0
        %2015 = vmatprep.subr.mxu0 0.0
        %2016 = vmatpush1.xpose.msra.mxu0 0.0
        %2017 = vmatprep.subr.mxu0 0.0
        %2018 = vmatpush1.xpose.msra.mxu0 0.0
        %2019 = vmatprep.subr.mxu0 0.0
        %2020 = vmatpush1.xpose.msra.mxu0 0.0
        %2021 = vmatprep.subr.mxu0 0.0
        %2022 = vmatpush1.xpose.msra.mxu0 0.0
        %2023 = vmatprep.subr.mxu0 0.0
        %2024 = vmatpush1.xpose.msra.mxu0 0.0
        %2025 = vmatprep.subr.mxu0 0.0
        %2026 = vmatpush1.xpose.msra.mxu0 0.0
        %2027 = vmatprep.subr.mxu0 0.0
        %2028 = vmatpush1.xpose.msra.mxu0 0.0
        %2029 = vmatprep.subr.mxu0 0.0
        %2030 = vmatpush1.xpose.msra.mxu0 0.0
        %2031 = vmatprep.subr.mxu0 0.0
        %2032 = vmatpush1.xpose.msra.mxu0 0.0
        %2033 = vmatprep.subr.mxu0 0.0
        %2034 = vmatpush1.xpose.msra.mxu0 0.0
        %2035 = vmatprep.subr.mxu0 0.0
        %2036 = vmatpush1.xpose.msra.mxu0 0.0
        %2037 = vmatprep.subr.mxu0 0.0
        %2038 = vmatpush1.xpose.msra.mxu0 0.0
        %2039 = vmatprep.subr.mxu0 0.0
        %2040 = vmatpush1.xpose.msra.mxu0 0.0
        %2041 = vmatprep.subr.mxu0 0.0
        %2042 = vmatpush1.xpose.msra.mxu0 0.0
        %2043 = vmatprep.subr.mxu0 0.0
        %2044 = vmatpush1.xpose.msra.mxu0 0.0
        %2045 = vmatprep.subr.mxu0 0.0
        %2046 = vmatpush1.xpose.msra.mxu0 0.0
        %2047 = vmatprep.subr.mxu0 0.0
        %2048 = vmatpush1.xpose.msra.mxu0 0.0
        %2049 = vmatprep.subr.mxu0 0.0
        %2050 = vmatpush1.xpose.msra.mxu0 0.0
        %2051 = vmatprep.subr.mxu0 0.0
        %2052 = vmatpush1.xpose.msra.mxu0 0.0
        %2053 = vmatprep.subr.mxu0 0.0
        %2054 = vmatpush1.xpose.msra.mxu0 0.0
        %2055 = vmatprep.subr.mxu0 0.0
        %2056 = vmatpush1.xpose.msra.mxu0 0.0
        %2057 = vmatprep.subr.mxu0 0.0
        %2058 = vmatpush1.xpose.msra.mxu0 0.0
        %2059 = vmatprep.subr.mxu0 0.0
        %2060 = vmatpush1.xpose.msra.mxu0 0.0
        %2061 = vmatprep.subr.mxu0 0.0
        %2062 = vmatpush1.xpose.msra.mxu0 0.0
        %2063 = vmatprep.mubr.f32.mxu0 0.0
        %2064 = vmatmul.mubr.f32.gmra.mrb[0].mxu0 %v1988
        %v2065 = vpop.f32.mrb[0].mxu0
        %v2066 = vadd.f32 0.0, %v2065
        %v2067 = vpop.f32.mrb[0].mxu0
        %2068 = vmatprep.mubr.f32.mxu0 0.0
        %2069 = vmatmul.mubr.f32.gmra.mrb[0].mxu0 %v1991
        %v2070 = vpop.f32.mrb[0].mxu0
        %v2071 = vadd.f32 0.0, %v2070
        %v2072 = vpop.f32.mrb[0].mxu0
        %2073 = vdwg.mxu0
        %v2074 = vsel %vm1333, %v2066, -inf
        %2075 = vmax.xlane.f32.xlu0 %v2074
        %v2076 = vpop.xlane.xlu0 %2075
        %v2077 = vsel %vm1333, %v2071, -inf
        %2078 = vmax.xlane.f32.xlu0 %v2077
        %v2079 = vpop.xlane.xlu0 %2078
        %v2080 = vsub.f32 %v2066, %v2076
        %v2081 = vsub.f32 %v2071, %v2079
        %v2082 = vmul.f32 %v2080, 1.442695
        %v2083 = vpow.pop %v2082
        %v2084 = vmul.f32 %v2081, 1.442695
        %v2085 = vpow.pop %v2084
        %v2086 = vsel %vm1333, %v2083, 0.0
        %2087 = vadd.xlane.f32.xlu0 %v2086
        %v2088 = vpop.xlane.xlu0 %2087
        %v2089 = vsel %vm1333, %v2085, 0.0
        %2090 = vadd.xlane.f32.xlu0 %v2089
        %v2091 = vpop.xlane.xlu0 %2090
        %v2093 = vsel %vm1333, %v2083, 0
        %v2096 = vsel %vm1333, %v2085, 0
        %v2099 = vsel %vm1358, %v1986, 0
        %2101 = vmatprep.subr.mxu0 0.0
        %2102 = vmatpush1.msra.mxu0 %v1985
        %2103 = vmatprep.subr.mxu0 0.0
        %2104 = vmatpush1.msra.mxu0 %v2099
        %2105 = vmatprep.subr.mxu0 0.0
        %2106 = vmatpush1.msra.mxu0 0.0
        %2107 = vmatprep.subr.mxu0 0.0
        %2108 = vmatpush1.msra.mxu0 0.0
        %2109 = vmatprep.subr.mxu0 0.0
        %2110 = vmatpush1.msra.mxu0 0.0
        %2111 = vmatprep.subr.mxu0 0.0
        %2112 = vmatpush1.msra.mxu0 0.0
        %2113 = vmatprep.subr.mxu0 0.0
        %2114 = vmatpush1.msra.mxu0 0.0
        %2115 = vmatprep.subr.mxu0 0.0
        %2116 = vmatpush1.msra.mxu0 0.0
        %2117 = vmatprep.subr.mxu0 0.0
        %2118 = vmatpush1.msra.mxu0 0.0
        %2119 = vmatprep.subr.mxu0 0.0
        %2120 = vmatpush1.msra.mxu0 0.0
        %2121 = vmatprep.subr.mxu0 0.0
        %2122 = vmatpush1.msra.mxu0 0.0
        %2123 = vmatprep.subr.mxu0 0.0
        %2124 = vmatpush1.msra.mxu0 0.0
        %2125 = vmatprep.subr.mxu0 0.0
        %2126 = vmatpush1.msra.mxu0 0.0
        %2127 = vmatprep.subr.mxu0 0.0
        %2128 = vmatpush1.msra.mxu0 0.0
        %2129 = vmatprep.subr.mxu0 0.0
        %2130 = vmatpush1.msra.mxu0 0.0
        %2131 = vmatprep.subr.mxu0 0.0
        %2132 = vmatpush1.msra.mxu0 0.0
        %2133 = vmatprep.subr.mxu0 0.0
        %2134 = vmatpush1.msra.mxu0 0.0
        %2135 = vmatprep.subr.mxu0 0.0
        %2136 = vmatpush1.msra.mxu0 0.0
        %2137 = vmatprep.subr.mxu0 0.0
        %2138 = vmatpush1.msra.mxu0 0.0
        %2139 = vmatprep.subr.mxu0 0.0
        %2140 = vmatpush1.msra.mxu0 0.0
        %2141 = vmatprep.subr.mxu0 0.0
        %2142 = vmatpush1.msra.mxu0 0.0
        %2143 = vmatprep.subr.mxu0 0.0
        %2144 = vmatpush1.msra.mxu0 0.0
        %2145 = vmatprep.subr.mxu0 0.0
        %2146 = vmatpush1.msra.mxu0 0.0
        %2147 = vmatprep.subr.mxu0 0.0
        %2148 = vmatpush1.msra.mxu0 0.0
        %2149 = vmatprep.subr.mxu0 0.0
        %2150 = vmatpush1.msra.mxu0 0.0
        %2151 = vmatprep.subr.mxu0 0.0
        %2152 = vmatpush1.msra.mxu0 0.0
        %2153 = vmatprep.subr.mxu0 0.0
        %2154 = vmatpush1.msra.mxu0 0.0
        %2155 = vmatprep.subr.mxu0 0.0
        %2156 = vmatpush1.msra.mxu0 0.0
        %2157 = vmatprep.subr.mxu0 0.0
        %2158 = vmatpush1.msra.mxu0 0.0
        %2159 = vmatprep.subr.mxu0 0.0
        %2160 = vmatpush1.msra.mxu0 0.0
        %2161 = vmatprep.subr.mxu0 0.0
        %2162 = vmatpush1.msra.mxu0 0.0
        %2163 = vmatprep.subr.mxu0 0.0
        %2164 = vmatpush1.msra.mxu0 0.0
        %2165 = vmatprep.mubr.f32.mxu0 0.0
        %2166 = vmatmul.mubr.f32.gmra.mrb[0].mxu0 %v2093
        %v2167 = vpop.f32.mrb[0].mxu0
        %v2168 = vadd.f32 0.0, %v2167
        %v2169 = vpop.f32.mrb[0].mxu0
        %2170 = vmatprep.mubr.f32.mxu0 0.0
        %2171 = vmatmul.mubr.f32.gmra.mrb[0].mxu0 %v2096
        %v2172 = vpop.f32.mrb[0].mxu0
        %v2173 = vadd.f32 0.0, %v2172
        %v2174 = vpop.f32.mrb[0].mxu0
        %2175 = vdwg.mxu0
        %v2176 = vrcp.pop %v2088
        %v2177 = vrcp.pop %v2091
        %v2178 = vmul.f32 %v2168, %v2176
        %v2179 = vmul.f32 %v2173, %v2177
        %s2180 = scalar_lea.vmem %s8, 16
        %v2181 = vld [vmem:[%s2180] sm:$0xff]
        %v2183 = vsel %vm1245, %v2178, 0
        %v2186 = vsel %vm1245, %v2179, 0
        %2188 = vmatprep.subr.mxu0 0.0
        %2189 = vmatpush1.msra.mxu0 %v2181
        %2190 = vmatprep.subr.mxu0 0.0
        %2191 = vmatpush1.msra.mxu0 0.0
        %2192 = vmatprep.subr.mxu0 0.0
        %2193 = vmatpush1.msra.mxu0 0.0
        %2194 = vmatprep.subr.mxu0 0.0
        %2195 = vmatpush1.msra.mxu0 0.0
        %2196 = vmatprep.subr.mxu0 0.0
        %2197 = vmatpush1.msra.mxu0 0.0
        %2198 = vmatprep.subr.mxu0 0.0
        %2199 = vmatpush1.msra.mxu0 0.0
        %2200 = vmatprep.subr.mxu0 0.0
        %2201 = vmatpush1.msra.mxu0 0.0
        %2202 = vmatprep.subr.mxu0 0.0
        %2203 = vmatpush1.msra.mxu0 0.0
        %2204 = vmatprep.subr.mxu0 0.0
        %2205 = vmatpush1.msra.mxu0 0.0
        %2206 = vmatprep.subr.mxu0 0.0
        %2207 = vmatpush1.msra.mxu0 0.0
        %2208 = vmatprep.subr.mxu0 0.0
        %2209 = vmatpush1.msra.mxu0 0.0
        %2210 = vmatprep.subr.mxu0 0.0
        %2211 = vmatpush1.msra.mxu0 0.0
        %2212 = vmatprep.subr.mxu0 0.0
        %2213 = vmatpush1.msra.mxu0 0.0
        %2214 = vmatprep.subr.mxu0 0.0
        %2215 = vmatpush1.msra.mxu0 0.0
        %2216 = vmatprep.subr.mxu0 0.0
        %2217 = vmatpush1.msra.mxu0 0.0
        %2218 = vmatprep.subr.mxu0 0.0
        %2219 = vmatpush1.msra.mxu0 0.0
        %2220 = vmatprep.subr.mxu0 0.0
        %2221 = vmatpush1.msra.mxu0 0.0
        %2222 = vmatprep.subr.mxu0 0.0
        %2223 = vmatpush1.msra.mxu0 0.0
        %2224 = vmatprep.subr.mxu0 0.0
        %2225 = vmatpush1.msra.mxu0 0.0
        %2226 = vmatprep.subr.mxu0 0.0
        %2227 = vmatpush1.msra.mxu0 0.0
        %2228 = vmatprep.subr.mxu0 0.0
        %2229 = vmatpush1.msra.mxu0 0.0
        %2230 = vmatprep.subr.mxu0 0.0
        %2231 = vmatpush1.msra.mxu0 0.0
        %2232 = vmatprep.subr.mxu0 0.0
        %2233 = vmatpush1.msra.mxu0 0.0
        %2234 = vmatprep.subr.mxu0 0.0
        %2235 = vmatpush1.msra.mxu0 0.0
        %2236 = vmatprep.subr.mxu0 0.0
        %2237 = vmatpush1.msra.mxu0 0.0
        %2238 = vmatprep.subr.mxu0 0.0
        %2239 = vmatpush1.msra.mxu0 0.0
        %2240 = vmatprep.subr.mxu0 0.0
        %2241 = vmatpush1.msra.mxu0 0.0
        %2242 = vmatprep.subr.mxu0 0.0
        %2243 = vmatpush1.msra.mxu0 0.0
        %2244 = vmatprep.subr.mxu0 0.0
        %2245 = vmatpush1.msra.mxu0 0.0
        %2246 = vmatprep.subr.mxu0 0.0
        %2247 = vmatpush1.msra.mxu0 0.0
        %2248 = vmatprep.subr.mxu0 0.0
        %2249 = vmatpush1.msra.mxu0 0.0
        %2250 = vmatprep.subr.mxu0 0.0
        %2251 = vmatpush1.msra.mxu0 0.0
        %2252 = vmatprep.mubr.f32.mxu0 0.0
        %2253 = vmatmul.mubr.f32.gmra.mrb[0].mxu0 %v2183
        %v2254 = vpop.f32.mrb[0].mxu0
        %v2255 = vadd.f32 0.0, %v2254
        %v2256 = vpop.f32.mrb[0].mxu0
        %2257 = vmatprep.mubr.f32.mxu0 0.0
        %2258 = vmatmul.mubr.f32.gmra.mrb[0].mxu0 %v2186
        %v2259 = vpop.f32.mrb[0].mxu0
        %v2260 = vadd.f32 0.0, %v2259
        %v2261 = vpop.f32.mrb[0].mxu0
        %2262 = vdwg.mxu0
        %v2263 = vadd.f32 %v1885, %v2255
        %v2264 = vadd.f32 %v1890, %v2260
        %s2265 = scalar_lea.vmem %s2, 96
        %v2266 = vld [vmem:[%s2265] sm:$0xff]
        %v2267 = vld [vmem:[%s2265 + $0x8] sm:$0xff]
        %v2268 = vld [vmem:[%s2265 + $0x10] sm:$0xff]
        %v2269 = vld [vmem:[%s2265 + $0x18] sm:$0xff]
        %s2270 = scalar_lea.vmem %s3, 3
        %v2271 = vld [vmem:[%s2270] sm:$0x1]
        %v2273 = vlaneseq
        %v2274 = vshrl.u32 %v2273, 7
        %v2275 = vsub.s32 0, %v2274
        %v2276 = vrot.slane %v2271, %v2275
        %2278 = vmatprep.subr.mxu0 0.0
        %2279 = vmatpush1.msra.mxu0 %v2266
        %2280 = vmatprep.subr.mxu0 0.0
        %2281 = vmatpush1.msra.mxu0 %v2267
        %2282 = vmatprep.subr.mxu0 0.0
        %2283 = vmatpush1.msra.mxu0 %v2268
        %2284 = vmatprep.subr.mxu0 0.0
        %2285 = vmatpush1.msra.mxu0 %v2269
        %2286 = vmatprep.subr.mxu0 0.0
        %2287 = vmatpush1.msra.mxu0 0.0
        %2288 = vmatprep.subr.mxu0 0.0
        %2289 = vmatpush1.msra.mxu0 0.0
        %2290 = vmatprep.subr.mxu0 0.0
        %2291 = vmatpush1.msra.mxu0 0.0
        %2292 = vmatprep.subr.mxu0 0.0
        %2293 = vmatpush1.msra.mxu0 0.0
        %2294 = vmatprep.subr.mxu0 0.0
        %2295 = vmatpush1.msra.mxu0 0.0
        %2296 = vmatprep.subr.mxu0 0.0
        %2297 = vmatpush1.msra.mxu0 0.0
        %2298 = vmatprep.subr.mxu0 0.0
        %2299 = vmatpush1.msra.mxu0 0.0
        %2300 = vmatprep.subr.mxu0 0.0
        %2301 = vmatpush1.msra.mxu0 0.0
        %2302 = vmatprep.subr.mxu0 0.0
        %2303 = vmatpush1.msra.mxu0 0.0
        %2304 = vmatprep.subr.mxu0 0.0
        %2305 = vmatpush1.msra.mxu0 0.0
        %2306 = vmatprep.subr.mxu0 0.0
        %2307 = vmatpush1.msra.mxu0 0.0
        %2308 = vmatprep.subr.mxu0 0.0
        %2309 = vmatpush1.msra.mxu0 0.0
        %2310 = vmatprep.subr.mxu0 0.0
        %2311 = vmatpush1.msra.mxu0 0.0
        %2312 = vmatprep.subr.mxu0 0.0
        %2313 = vmatpush1.msra.mxu0 0.0
        %2314 = vmatprep.subr.mxu0 0.0
        %2315 = vmatpush1.msra.mxu0 0.0
        %2316 = vmatprep.subr.mxu0 0.0
        %2317 = vmatpush1.msra.mxu0 0.0
        %2318 = vmatprep.subr.mxu0 0.0
        %2319 = vmatpush1.msra.mxu0 0.0
        %2320 = vmatprep.subr.mxu0 0.0
        %2321 = vmatpush1.msra.mxu0 0.0
        %2322 = vmatprep.subr.mxu0 0.0
        %2323 = vmatpush1.msra.mxu0 0.0
        %2324 = vmatprep.subr.mxu0 0.0
        %2325 = vmatpush1.msra.mxu0 0.0
        %2326 = vmatprep.subr.mxu0 0.0
        %2327 = vmatpush1.msra.mxu0 0.0
        %2328 = vmatprep.subr.mxu0 0.0
        %2329 = vmatpush1.msra.mxu0 0.0
        %2330 = vmatprep.subr.mxu0 0.0
        %2331 = vmatpush1.msra.mxu0 0.0
        %2332 = vmatprep.subr.mxu0 0.0
        %2333 = vmatpush1.msra.mxu0 0.0
        %2334 = vmatprep.subr.mxu0 0.0
        %2335 = vmatpush1.msra.mxu0 0.0
        %2336 = vmatprep.subr.mxu0 0.0
        %2337 = vmatpush1.msra.mxu0 0.0
        %2338 = vmatprep.subr.mxu0 0.0
        %2339 = vmatpush1.msra.mxu0 0.0
        %2340 = vmatprep.subr.mxu0 0.0
        %2341 = vmatpush1.msra.mxu0 0.0
        %2342 = vmatprep.mubr.f32.mxu0 0.0
        %2343 = vmatmul.mubr.f32.gmra.mrb[0].mxu0 %v1161
        %v2344 = vpop.f32.mrb[0].mxu0
        %v2345 = vadd.f32 %v2276, %v2344
        %v2346 = vpop.f32.mrb[0].mxu0
        %2347 = vmatprep.mubr.f32.mxu0 0.0
        %2348 = vmatmul.mubr.f32.gmra.mrb[0].mxu0 %v1164
        %v2349 = vpop.f32.mrb[0].mxu0
        %v2350 = vadd.f32 %v2276, %v2349
        %v2351 = vpop.f32.mrb[0].mxu0
        %2352 = vdwg.mxu0
        %s2353 = scalar_lea.vmem [#allocation2], 48
        %v2354 = vld [vmem:[%s2353] sm:$0xff]
        %v2355 = vld [vmem:[%s2353 + $0x8] sm:$0xf]
        %s2356 = scalar_lea.vmem [#allocation3], 48
        %v2357 = vld [vmem:[%s2356] sm:$0xff]
        %v2358 = vld [vmem:[%s2356 + $0x8] sm:$0xf]
        %v2360 = vsel %vm1245, %v2345, 0
        %v2363 = vsel %vm1245, %v2350, 0
        %v2366 = vsel %vm1245, %v2354, 0
        %v2369 = vsel %vm1245, %v2355, 0
        %2371 = vmatprep.subr.mxu0 0.0
        %2372 = vmatpush1.xpose.msra.mxu0 %v2366
        %2373 = vmatprep.subr.mxu0 0.0
        %2374 = vmatpush1.xpose.msra.mxu0 %v2369
        %2375 = vmatprep.subr.mxu0 0.0
        %2376 = vmatpush1.xpose.msra.mxu0 0.0
        %2377 = vmatprep.subr.mxu0 0.0
        %2378 = vmatpush1.xpose.msra.mxu0 0.0
        %2379 = vmatprep.subr.mxu0 0.0
        %2380 = vmatpush1.xpose.msra.mxu0 0.0
        %2381 = vmatprep.subr.mxu0 0.0
        %2382 = vmatpush1.xpose.msra.mxu0 0.0
        %2383 = vmatprep.subr.mxu0 0.0
        %2384 = vmatpush1.xpose.msra.mxu0 0.0
        %2385 = vmatprep.subr.mxu0 0.0
        %2386 = vmatpush1.xpose.msra.mxu0 0.0
        %2387 = vmatprep.subr.mxu0 0.0
        %2388 = vmatpush1.xpose.msra.mxu0 0.0
        %2389 = vmatprep.subr.mxu0 0.0
        %2390 = vmatpush1.xpose.msra.mxu0 0.0
        %2391 = vmatprep.subr.mxu0 0.0
        %2392 = vmatpush1.xpose.msra.mxu0 0.0
        %2393 = vmatprep.subr.mxu0 0.0
        %2394 = vmatpush1.xpose.msra.mxu0 0.0
        %2395 = vmatprep.subr.mxu0 0.0
        %2396 = vmatpush1.xpose.msra.mxu0 0.0
        %2397 = vmatprep.subr.mxu0 0.0
        %2398 = vmatpush1.xpose.msra.mxu0 0.0
        %2399 = vmatprep.subr.mxu0 0.0
        %2400 = vmatpush1.xpose.msra.mxu0 0.0
        %2401 = vmatprep.subr.mxu0 0.0
        %2402 = vmatpush1.xpose.msra.mxu0 0.0
        %2403 = vmatprep.subr.mxu0 0.0
        %2404 = vmatpush1.xpose.msra.mxu0 0.0
        %2405 = vmatprep.subr.mxu0 0.0
        %2406 = vmatpush1.xpose.msra.mxu0 0.0
        %2407 = vmatprep.subr.mxu0 0.0
        %2408 = vmatpush1.xpose.msra.mxu0 0.0
        %2409 = vmatprep.subr.mxu0 0.0
        %2410 = vmatpush1.xpose.msra.mxu0 0.0
        %2411 = vmatprep.subr.mxu0 0.0
        %2412 = vmatpush1.xpose.msra.mxu0 0.0
        %2413 = vmatprep.subr.mxu0 0.0
        %2414 = vmatpush1.xpose.msra.mxu0 0.0
        %2415 = vmatprep.subr.mxu0 0.0
        %2416 = vmatpush1.xpose.msra.mxu0 0.0
        %2417 = vmatprep.subr.mxu0 0.0
        %2418 = vmatpush1.xpose.msra.mxu0 0.0
        %2419 = vmatprep.subr.mxu0 0.0
        %2420 = vmatpush1.xpose.msra.mxu0 0.0
        %2421 = vmatprep.subr.mxu0 0.0
        %2422 = vmatpush1.xpose.msra.mxu0 0.0
        %2423 = vmatprep.subr.mxu0 0.0
        %2424 = vmatpush1.xpose.msra.mxu0 0.0
        %2425 = vmatprep.subr.mxu0 0.0
        %2426 = vmatpush1.xpose.msra.mxu0 0.0
        %2427 = vmatprep.subr.mxu0 0.0
        %2428 = vmatpush1.xpose.msra.mxu0 0.0
        %2429 = vmatprep.subr.mxu0 0.0
        %2430 = vmatpush1.xpose.msra.mxu0 0.0
        %2431 = vmatprep.subr.mxu0 0.0
        %2432 = vmatpush1.xpose.msra.mxu0 0.0
        %2433 = vmatprep.subr.mxu0 0.0
        %2434 = vmatpush1.xpose.msra.mxu0 0.0
        %2435 = vmatprep.mubr.f32.mxu0 0.0
        %2436 = vmatmul.mubr.f32.gmra.mrb[0].mxu0 %v2360
        %v2437 = vpop.f32.mrb[0].mxu0
        %v2438 = vadd.f32 0.0, %v2437
        %v2439 = vpop.f32.mrb[0].mxu0
        %2440 = vmatprep.mubr.f32.mxu0 0.0
        %2441 = vmatmul.mubr.f32.gmra.mrb[0].mxu0 %v2363
        %v2442 = vpop.f32.mrb[0].mxu0
        %v2443 = vadd.f32 0.0, %v2442
        %v2444 = vpop.f32.mrb[0].mxu0
        %2445 = vdwg.mxu0
        %v2446 = vsel %vm1333, %v2438, -inf
        %2447 = vmax.xlane.f32.xlu0 %v2446
        %v2448 = vpop.xlane.xlu0 %2447
        %v2449 = vsel %vm1333, %v2443, -inf
        %2450 = vmax.xlane.f32.xlu0 %v2449
        %v2451 = vpop.xlane.xlu0 %2450
        %v2452 = vsub.f32 %v2438, %v2448
        %v2453 = vsub.f32 %v2443, %v2451
        %v2454 = vmul.f32 %v2452, 1.442695
        %v2455 = vpow.pop %v2454
        %v2456 = vmul.f32 %v2453, 1.442695
        %v2457 = vpow.pop %v2456
        %v2458 = vsel %vm1333, %v2455, 0.0
        %2459 = vadd.xlane.f32.xlu0 %v2458
        %v2460 = vpop.xlane.xlu0 %2459
        %v2461 = vsel %vm1333, %v2457, 0.0
        %2462 = vadd.xlane.f32.xlu0 %v2461
        %v2463 = vpop.xlane.xlu0 %2462
        %v2465 = vsel %vm1333, %v2455, 0
        %v2468 = vsel %vm1333, %v2457, 0
        %v2471 = vsel %vm1358, %v2358, 0
        %2473 = vmatprep.subr.mxu0 0.0
        %2474 = vmatpush1.msra.mxu0 %v2357
        %2475 = vmatprep.subr.mxu0 0.0
        %2476 = vmatpush1.msra.mxu0 %v2471
        %2477 = vmatprep.subr.mxu0 0.0
        %2478 = vmatpush1.msra.mxu0 0.0
        %2479 = vmatprep.subr.mxu0 0.0
        %2480 = vmatpush1.msra.mxu0 0.0
        %2481 = vmatprep.subr.mxu0 0.0
        %2482 = vmatpush1.msra.mxu0 0.0
        %2483 = vmatprep.subr.mxu0 0.0
        %2484 = vmatpush1.msra.mxu0 0.0
        %2485 = vmatprep.subr.mxu0 0.0
        %2486 = vmatpush1.msra.mxu0 0.0
        %2487 = vmatprep.subr.mxu0 0.0
        %2488 = vmatpush1.msra.mxu0 0.0
        %2489 = vmatprep.subr.mxu0 0.0
        %2490 = vmatpush1.msra.mxu0 0.0
        %2491 = vmatprep.subr.mxu0 0.0
        %2492 = vmatpush1.msra.mxu0 0.0
        %2493 = vmatprep.subr.mxu0 0.0
        %2494 = vmatpush1.msra.mxu0 0.0
        %2495 = vmatprep.subr.mxu0 0.0
        %2496 = vmatpush1.msra.mxu0 0.0
        %2497 = vmatprep.subr.mxu0 0.0
        %2498 = vmatpush1.msra.mxu0 0.0
        %2499 = vmatprep.subr.mxu0 0.0
        %2500 = vmatpush1.msra.mxu0 0.0
        %2501 = vmatprep.subr.mxu0 0.0
        %2502 = vmatpush1.msra.mxu0 0.0
        %2503 = vmatprep.subr.mxu0 0.0
        %2504 = vmatpush1.msra.mxu0 0.0
        %2505 = vmatprep.subr.mxu0 0.0
        %2506 = vmatpush1.msra.mxu0 0.0
        %2507 = vmatprep.subr.mxu0 0.0
        %2508 = vmatpush1.msra.mxu0 0.0
        %2509 = vmatprep.subr.mxu0 0.0
        %2510 = vmatpush1.msra.mxu0 0.0
        %2511 = vmatprep.subr.mxu0 0.0
        %2512 = vmatpush1.msra.mxu0 0.0
        %2513 = vmatprep.subr.mxu0 0.0
        %2514 = vmatpush1.msra.mxu0 0.0
        %2515 = vmatprep.subr.mxu0 0.0
        %2516 = vmatpush1.msra.mxu0 0.0
        %2517 = vmatprep.subr.mxu0 0.0
        %2518 = vmatpush1.msra.mxu0 0.0
        %2519 = vmatprep.subr.mxu0 0.0
        %2520 = vmatpush1.msra.mxu0 0.0
        %2521 = vmatprep.subr.mxu0 0.0
        %2522 = vmatpush1.msra.mxu0 0.0
        %2523 = vmatprep.subr.mxu0 0.0
        %2524 = vmatpush1.msra.mxu0 0.0
        %2525 = vmatprep.subr.mxu0 0.0
        %2526 = vmatpush1.msra.mxu0 0.0
        %2527 = vmatprep.subr.mxu0 0.0
        %2528 = vmatpush1.msra.mxu0 0.0
        %2529 = vmatprep.subr.mxu0 0.0
        %2530 = vmatpush1.msra.mxu0 0.0
        %2531 = vmatprep.subr.mxu0 0.0
        %2532 = vmatpush1.msra.mxu0 0.0
        %2533 = vmatprep.subr.mxu0 0.0
        %2534 = vmatpush1.msra.mxu0 0.0
        %2535 = vmatprep.subr.mxu0 0.0
        %2536 = vmatpush1.msra.mxu0 0.0
        %2537 = vmatprep.mubr.f32.mxu0 0.0
        %2538 = vmatmul.mubr.f32.gmra.mrb[0].mxu0 %v2465
        %v2539 = vpop.f32.mrb[0].mxu0
        %v2540 = vadd.f32 0.0, %v2539
        %v2541 = vpop.f32.mrb[0].mxu0
        %2542 = vmatprep.mubr.f32.mxu0 0.0
        %2543 = vmatmul.mubr.f32.gmra.mrb[0].mxu0 %v2468
        %v2544 = vpop.f32.mrb[0].mxu0
        %v2545 = vadd.f32 0.0, %v2544
        %v2546 = vpop.f32.mrb[0].mxu0
        %2547 = vdwg.mxu0
        %v2548 = vrcp.pop %v2460
        %v2549 = vrcp.pop %v2463
        %v2550 = vmul.f32 %v2540, %v2548
        %v2551 = vmul.f32 %v2545, %v2549
        %s2552 = scalar_lea.vmem %s8, 24
        %v2553 = vld [vmem:[%s2552] sm:$0xff]
        %v2555 = vsel %vm1245, %v2550, 0
        %v2558 = vsel %vm1245, %v2551, 0
        %2560 = vmatprep.subr.mxu0 0.0
        %2561 = vmatpush1.msra.mxu0 %v2553
        %2562 = vmatprep.subr.mxu0 0.0
        %2563 = vmatpush1.msra.mxu0 0.0
        %2564 = vmatprep.subr.mxu0 0.0
        %2565 = vmatpush1.msra.mxu0 0.0
        %2566 = vmatprep.subr.mxu0 0.0
        %2567 = vmatpush1.msra.mxu0 0.0
        %2568 = vmatprep.subr.mxu0 0.0
        %2569 = vmatpush1.msra.mxu0 0.0
        %2570 = vmatprep.subr.mxu0 0.0
        %2571 = vmatpush1.msra.mxu0 0.0
        %2572 = vmatprep.subr.mxu0 0.0
        %2573 = vmatpush1.msra.mxu0 0.0
        %2574 = vmatprep.subr.mxu0 0.0
        %2575 = vmatpush1.msra.mxu0 0.0
        %2576 = vmatprep.subr.mxu0 0.0
        %2577 = vmatpush1.msra.mxu0 0.0
        %2578 = vmatprep.subr.mxu0 0.0
        %2579 = vmatpush1.msra.mxu0 0.0
        %2580 = vmatprep.subr.mxu0 0.0
        %2581 = vmatpush1.msra.mxu0 0.0
        %2582 = vmatprep.subr.mxu0 0.0
        %2583 = vmatpush1.msra.mxu0 0.0
        %2584 = vmatprep.subr.mxu0 0.0
        %2585 = vmatpush1.msra.mxu0 0.0
        %2586 = vmatprep.subr.mxu0 0.0
        %2587 = vmatpush1.msra.mxu0 0.0
        %2588 = vmatprep.subr.mxu0 0.0
        %2589 = vmatpush1.msra.mxu0 0.0
        %2590 = vmatprep.subr.mxu0 0.0
        %2591 = vmatpush1.msra.mxu0 0.0
        %2592 = vmatprep.subr.mxu0 0.0
        %2593 = vmatpush1.msra.mxu0 0.0
        %2594 = vmatprep.subr.mxu0 0.0
        %2595 = vmatpush1.msra.mxu0 0.0
        %2596 = vmatprep.subr.mxu0 0.0
        %2597 = vmatpush1.msra.mxu0 0.0
        %2598 = vmatprep.subr.mxu0 0.0
        %2599 = vmatpush1.msra.mxu0 0.0
        %2600 = vmatprep.subr.mxu0 0.0
        %2601 = vmatpush1.msra.mxu0 0.0
        %2602 = vmatprep.subr.mxu0 0.0
        %2603 = vmatpush1.msra.mxu0 0.0
        %2604 = vmatprep.subr.mxu0 0.0
        %2605 = vmatpush1.msra.mxu0 0.0
        %2606 = vmatprep.subr.mxu0 0.0
        %2607 = vmatpush1.msra.mxu0 0.0
        %2608 = vmatprep.subr.mxu0 0.0
        %2609 = vmatpush1.msra.mxu0 0.0
        %2610 = vmatprep.subr.mxu0 0.0
        %2611 = vmatpush1.msra.mxu0 0.0
        %2612 = vmatprep.subr.mxu0 0.0
        %2613 = vmatpush1.msra.mxu0 0.0
        %2614 = vmatprep.subr.mxu0 0.0
        %2615 = vmatpush1.msra.mxu0 0.0
        %2616 = vmatprep.subr.mxu0 0.0
        %2617 = vmatpush1.msra.mxu0 0.0
        %2618 = vmatprep.subr.mxu0 0.0
        %2619 = vmatpush1.msra.mxu0 0.0
        %2620 = vmatprep.subr.mxu0 0.0
        %2621 = vmatpush1.msra.mxu0 0.0
        %2622 = vmatprep.subr.mxu0 0.0
        %2623 = vmatpush1.msra.mxu0 0.0
        %2624 = vmatprep.mubr.f32.mxu0 0.0
        %2625 = vmatmul.mubr.f32.gmra.mrb[0].mxu0 %v2555
        %v2626 = vpop.f32.mrb[0].mxu0
        %v2627 = vadd.f32 0.0, %v2626
        %v2628 = vpop.f32.mrb[0].mxu0
        %2629 = vmatprep.mubr.f32.mxu0 0.0
        %2630 = vmatmul.mubr.f32.gmra.mrb[0].mxu0 %v2558
        %v2631 = vpop.f32.mrb[0].mxu0
        %v2632 = vadd.f32 0.0, %v2631
        %v2633 = vpop.f32.mrb[0].mxu0
        %2634 = vdwg.mxu0
        %v2635 = vadd.f32 %v2263, %v2627
        %v2636 = vadd.f32 %v2264, %v2632
        %v2637 = vld [vmem:[%s9] sm:$0x1]
        %v2639 = vlaneseq
        %v2640 = vshrl.u32 %v2639, 7
        %v2641 = vsub.s32 0, %v2640
        %v2642 = vrot.slane %v2637, %v2641
        %v2644 = vadd.f32 %v2635, %v2642
        %v2645 = vadd.f32 %v2636, %v2642
        %2646 = vst.msk [vmem:[%s392] sm:$0xff] %vm1159, %v2644
        %2647 = vst.msk [vmem:[%s392 + $0x8] sm:$0xff] %vm1159, %v2645
        %s2648 = sand.u32 %s268, 1
        %s2649 = scalar_lea.sflag [#allocation5], %s2648
        %s2650 = sand.u32 %s268, 1
        %s2651 = smul.addr %s2650, 16
        %s2652 = scalar_lea.vmem [#allocation4], %s2651
        // Predicated region
        $region65: #{tpu_custom_call.1} parent=59 // pred_check
          %p2653 = pneg %p278
        $region66: #{tpu_custom_call.1} parent=59 // pred_check_branch
          %2655 = sbr.rel (%p2653) target = $region68
        $region67: #{tpu_custom_call.1} parent=59 // pred_region
          %s2656 = smul.u32 2, %s29
          %s2658 = ssub.s32 256, 256
          %2659 = vsyncadd %s2649, %s2658
          %s2660 = smul.addr %s28, 2
          %s2661 = sadd.s32 %s2656, %s2660
          %s2662 = smul.addr %s2661, 128
          %s2663 = scalar_lea.hbm %s10, %s2662
          %s2664 = sshll.u32 %s2652, 4
          %s2665 = int_to_ptr.vmem [resolvable:$true] %s2664
          %2670 = dma.vmem_to_hbm [thread:$0]  %s2665, 256, %s2663, %s2649, 128, 128, 8
        $region68: #{tpu_custom_call.1} parent=59 // pred_fallthru
          _
      $region60: #{tpu_custom_call.1} parent=5 // pred_fallthru
        _
      %p2671 = scmp.le.s32.totalorder 2, %s19
      // Predicated region
      $region69: #{tpu_custom_call.1} parent=5 // pred_check
        %p2672 = pneg %p2671
      $region70: #{tpu_custom_call.1} parent=5 // pred_check_branch
        %2674 = sbr.rel (%p2672) target = $region72
      $region71: #{tpu_custom_call.1} parent=5 // pred_region
        %s2675 = ssub.s32 %s19, 2
        // Predicated region
        $region73: #{tpu_custom_call.1} parent=71 // pred_check
          %p2676 = pneg %p284
        $region74: #{tpu_custom_call.1} parent=71 // pred_check_branch
          %2678 = sbr.rel (%p2676) target = $region76
        $region75: #{tpu_custom_call.1} parent=71 // pred_region
          %s2679 = sand.u32 %s269, 1
          %s2680 = scalar_lea.sflag [#allocation5], %s2679
          %s2681 = sand.u32 %s269, 1
          %s2682 = smul.addr %s2681, 16
          %s2683 = scalar_lea.vmem [#allocation4], %s2682
          %2684 = dma.done %s2680, 256
        $region76: #{tpu_custom_call.1} parent=71 // pred_fallthru
          _
      $region72: #{tpu_custom_call.1} parent=5 // pred_fallthru
        _
    $region6: #{tpu_custom_call.1} parent=1 // loop_footer
      %s23 = sadd.s32 1, %s19
    $region7: #{tpu_custom_call.1} parent=1 // loop_footer_branch
      %18 = sbr.rel target = $region3
    $region8: #{tpu_custom_call.1} parent=1 // loop_exit
      _
    %2685 = vsyncpa [#allocation5], 1
    %s2686 = scalar_lea.sflag [#allocation5], 1
    %2687 = vsyncpa %s2686, 1

</llo_original>
